<compile_context>
chip_gen: v5e
topology: v5e:2x2
jax: 0.10.0
libtpu: 0.0.40
codegen_flags: <defaults>
</compile_context>

<pallas_src>
import numpy as np
import jax
import jax.numpy as jnp
from jax import lax
from jax.experimental import pallas as pl
from jax.experimental.pallas import tpu as pltpu

NEG_SLOPE = 0.2
LN_EPS = 1e-5
SCAN_K = 8          # timesteps processed per sequential grid step


# ----------------------------------------------------------------------------
# Pallas kernels
# ----------------------------------------------------------------------------
def _emb_gates_kernel(x_ref, we_ref, be_ref, wgf_ref, bgf_ref, wgb_ref, bgb_ref,
                      xgf_ref, xgb_ref):
    """e = x @ We + be ; xgf = e @ Wg_f + bg_f ; xgb = e @ Wg_b + bg_b.

    x / We / Wg_* are bf16 (MXU bf16 path, f32 accumulation); biases f32;
    the two gate outputs are stored bf16 (halves HBM writeback + scan reads).
    """
    e = jnp.dot(x_ref[...], we_ref[...],
                preferred_element_type=jnp.float32) + be_ref[...]
    e = e.astype(wgf_ref.dtype)
    xgf_ref[...] = (jnp.dot(e, wgf_ref[...], preferred_element_type=jnp.float32)
                    + bgf_ref[...]).astype(xgf_ref.dtype)
    xgb_ref[...] = (jnp.dot(e, wgb_ref[...], preferred_element_type=jnp.float32)
                    + bgb_ref[...]).astype(xgb_ref.dtype)


def _bigru_scan_kernel(lens_ref, xgf_ref, xgb_ref, whf_ref, whb_ref,
                       bhf_ref, bhb_ref, h0_ref, hf_ref, hb_ref):
    """K bidirectional GRU time steps per grid iteration.

    lens_ref : (B, 1) int32 valid lengths
    xgf_ref  : (K, B, 3H) bf16 forward gates for times  c*K .. c*K+K-1
    xgb_ref  : (K, B, 3H) bf16 backward gates for times (C-1-c)*K .. +K-1
    whf/whb  : (H, 3H) bf16 hidden-side weights (transposed)
    bhf/bhb  : (1, 3H) f32 hidden-side biases
    h0_ref   : (2, 1, H) learned initial hidden (broadcast over batch here)
    hf/hb    : (B, H) f32 VMEM-resident carries == final hidden outputs
    """
    c = pl.program_id(0)
    C = pl.num_programs(0)
    K = xgf_ref.shape[0]
    H = hf_ref.shape[1]

    @pl.when(c == 0)
    def _():
        hf_ref[...] = jnp.broadcast_to(h0_ref[0], hf_ref.shape)
        hb_ref[...] = jnp.broadcast_to(h0_ref[1], hb_ref.shape)

    lens = lens_ref[...]                      # (B, 1) int32
    whf = whf_ref[...]
    whb = whb_ref[...]
    bhf = bhf_ref[...]
    bhb = bhb_ref[...]

    def gru_step(h, xg, whh, bhh, valid):
        # Gate math kept f32 (v5e has no bf16 VPU/EUP); MXU operands bf16.
        hg = jnp.dot(h.astype(whh.dtype), whh,
                     preferred_element_type=jnp.float32) + bhh
        xg = xg.astype(jnp.float32)
        r = jax.nn.sigmoid(xg[:, 0:H] + hg[:, 0:H])
        z = jax.nn.sigmoid(xg[:, H:2 * H] + hg[:, H:2 * H])
        n = jnp.tanh(xg[:, 2 * H:3 * H] + r * hg[:, 2 * H:3 * H])
        h_new = (1.0 - z) * n + z * h
        return jnp.where(valid, h_new, h)     # mask == packed-sequence stop

    t0_f = c * K                              # first forward time in this chunk
    t0_b = (C - 1 - c) * K                    # first time of the backward chunk

    def body(k, carry):
        hf, hb = carry
        tf = t0_f + k                         # forward walks 0 .. T_pad-1
        tb = t0_b + (K - 1 - k)               # backward walks T_pad-1 .. 0
        hf = gru_step(hf, xgf_ref[k], whf, bhf, tf < lens)
        hb = gru_step(hb, xgb_ref[K - 1 - k], whb, bhb, tb < lens)
        return hf, hb

    hf, hb = lax.fori_loop(0, K, body, (hf_ref[...], hb_ref[...]), unroll=True)
    hf_ref[...] = hf
    hb_ref[...] = hb


def _head_kernel(x_ref, w1_ref, b1_ref, g_ref, beta_ref, w2_ref, b2_ref, o_ref):
    """Linear(2H->H) + LayerNorm + LeakyReLU(0.2) + Linear(H->out), fused, f32."""
    y = jnp.dot(x_ref[...], w1_ref[...],
                preferred_element_type=jnp.float32) + b1_ref[...]
    mu = jnp.mean(y, axis=-1, keepdims=True)
    var = jnp.mean(jnp.square(y - mu), axis=-1, keepdims=True)
    yn = (y - mu) * lax.rsqrt(var + LN_EPS)
    yn = yn * g_ref[...] + beta_ref[...]
    a = jnp.where(yn > 0, yn, NEG_SLOPE * yn)
    o_ref[...] = jnp.dot(a, w2_ref[...],
                         preferred_element_type=jnp.float32) + b2_ref[...]


# ----------------------------------------------------------------------------
# Wrapper helpers
# ----------------------------------------------------------------------------
def _vmem_limit_bytes():
    """Size the scoped VMEM limit from the actual chip instead of hardcoding."""
    try:
        cap = int(pltpu.get_tpu_info().vmem_capacity_bytes)
    except Exception:
        cap = 128 * 1024 * 1024
    return int(min(cap * 0.6, 100 * 1024 * 1024))


def _stage1_time_tile(t_pad, batch, target_rows=512):
    """Largest multiple of SCAN_K dividing t_pad with tile*batch <= target_rows."""
    tile = SCAN_K
    while t_pad % (tile * 2) == 0 and (tile * 2) * batch <= target_rows:
        tile *= 2
    return tile


def _row_tiling(n_rows, max_tile=256):
    """Row tile for the tiny head; full-extent block when small (always legal)."""
    if n_rows <= max_tile:
        return n_rows, n_rows
    tile = max_tile                       # multiple of 8
    padded = pl.cdiv(n_rows, tile) * tile
    return tile, padded


# ----------------------------------------------------------------------------
# Forward
# ----------------------------------------------------------------------------
def motion_encoder_bigru_co(x, m_lens, packed):
    """x: (B, T, input_size), m_lens: (B,) int -> (B, output_size)."""
    B, T, Din = x.shape
    H = packed["we"].shape[1]
    Dout = packed["w2"].shape[1]
    f32, bf16 = jnp.float32, jnp.bfloat16
    vmem_limit = _vmem_limit_bytes()

    # ---- Stage 1: fused embedding + per-timestep GRU input gates (bf16 MXU) --
    T_pad = pl.cdiv(T, SCAN_K) * SCAN_K
    x_tm = jnp.transpose(x, (1, 0, 2))                 # time-major (T, B, Din)
    if T_pad != T:
        x_tm = jnp.pad(x_tm, ((0, T_pad - T), (0, 0), (0, 0)))
    rows = T_pad * B
    x_rows = x_tm.reshape(rows, Din).astype(bf16)      # leading-dim reshape: free

    tile_t = _stage1_time_tile(T_pad, B)
    tile_rows = tile_t * B                             # divides rows exactly

    xgf, xgb = pl.pallas_call(
        _emb_gates_kernel,
        grid=(rows // tile_rows,),
        in_specs=[
            pl.BlockSpec((tile_rows, Din), lambda i: (i, 0)),
            pl.BlockSpec((Din, H), lambda i: (0, 0)),
            pl.BlockSpec((1, H), lambda i: (0, 0)),
            pl.BlockSpec((H, 3 * H), lambda i: (0, 0)),
            pl.BlockSpec((1, 3 * H), lambda i: (0, 0)),
            pl.BlockSpec((H, 3 * H), lambda i: (0, 0)),
            pl.BlockSpec((1, 3 * H), lambda i: (0, 0)),
        ],
        out_specs=[
            pl.BlockSpec((tile_rows, 3 * H), lambda i: (i, 0)),
            pl.BlockSpec((tile_rows, 3 * H), lambda i: (i, 0)),
        ],
        out_shape=[
            jax.ShapeDtypeStruct((rows, 3 * H), bf16),
            jax.ShapeDtypeStruct((rows, 3 * H), bf16),
        ],
        compiler_params=pltpu.CompilerParams(
            dimension_semantics=("parallel",),
            vmem_limit_bytes=vmem_limit),
    )(x_rows, packed["we"], packed["be"], packed["wg_f"], packed["bg_f"],
      packed["wg_b"], packed["bg_b"])

    # Exact-size outputs -> leading-dim split reshapes only (no slice/copy).
    xgf = xgf.reshape(T_pad, B, 3 * H)
    xgb = xgb.reshape(T_pad, B, 3 * H)

    # ---- Stage 2: bidirectional GRU scan, SCAN_K steps per grid iteration ----
    lens = m_lens.astype(jnp.int32).reshape(B, 1)
    C = T_pad // SCAN_K

    hf, hb = pl.pallas_call(
        _bigru_scan_kernel,
        grid=(C,),
        in_specs=[
            pl.BlockSpec((B, 1), lambda c: (0, 0)),                      # lens
            pl.BlockSpec((SCAN_K, B, 3 * H), lambda c: (c, 0, 0)),       # fwd gates
            pl.BlockSpec((SCAN_K, B, 3 * H), lambda c: (C - 1 - c, 0, 0)),  # bwd gates
            pl.BlockSpec((H, 3 * H), lambda c: (0, 0)),                  # whh_f (bf16)
            pl.BlockSpec((H, 3 * H), lambda c: (0, 0)),                  # whh_b (bf16)
            pl.BlockSpec((1, 3 * H), lambda c: (0, 0)),                  # bhh_f
            pl.BlockSpec((1, 3 * H), lambda c: (0, 0)),                  # bhh_b
            pl.BlockSpec((2, 1, H), lambda c: (0, 0, 0)),                # h0
        ],
        out_specs=[
            pl.BlockSpec((B, H), lambda c: (0, 0)),
            pl.BlockSpec((B, H), lambda c: (0, 0)),
        ],
        out_shape=[
            jax.ShapeDtypeStruct((B, H), f32),
            jax.ShapeDtypeStruct((B, H), f32),
        ],
        compiler_params=pltpu.CompilerParams(
            dimension_semantics=("arbitrary",),
            vmem_limit_bytes=vmem_limit),
    )(lens, xgf, xgb, packed["whh_f"], packed["whh_b"],
      packed["bhh_f"], packed["bhh_b"], packed["h0"])

    gru_last = jnp.concatenate([hf, hb], axis=-1)                        # (B, 2H)

    # ---- Stage 3: fused output head (tiny; f32 for LayerNorm fidelity) -------
    tile_b, padded_b = _row_tiling(B)
    g_in = gru_last
    if padded_b != B:
        g_in = jnp.pad(g_in, ((0, padded_b - B), (0, 0)))

    out = pl.pallas_call(
        _head_kernel,
        grid=(padded_b // tile_b,),
        in_specs=[
            pl.BlockSpec((tile_b, 2 * H), lambda i: (i, 0)),
            pl.BlockSpec((2 * H, H), lambda i: (0, 0)),
            pl.BlockSpec((1, H), lambda i: (0, 0)),
            pl.BlockSpec((1, H), lambda i: (0, 0)),
            pl.BlockSpec((1, H), lambda i: (0, 0)),
            pl.BlockSpec((H, Dout), lambda i: (0, 0)),
            pl.BlockSpec((1, Dout), lambda i: (0, 0)),
        ],
        out_specs=pl.BlockSpec((tile_b, Dout), lambda i: (i, 0)),
        out_shape=jax.ShapeDtypeStruct((padded_b, Dout), f32),
        compiler_params=pltpu.CompilerParams(
            dimension_semantics=("parallel",)),
    )(g_in, packed["w1"], packed["b1"], packed["ln_g"], packed["ln_b"],
      packed["w2"], packed["b2"])
    return out[:B]


# ----------------------------------------------------------------------------
# Parameters (torch-layout) + packing into kernel layouts
# ----------------------------------------------------------------------------
def init_params(key, input_size, hidden_size, output_size):
    H = hidden_size
    ks = jax.random.split(key, 12)

    def xavier(k, out_f, in_f):
        std = float(np.sqrt(2.0 / (in_f + out_f)))
        return std * jax.random.normal(k, (out_f, in_f), jnp.float32)

    def gru_uniform(k, shape):
        bound = 1.0 / float(np.sqrt(H))
        return jax.random.uniform(k, shape, jnp.float32, -bound, bound)

    return {
        "w_emb": xavier(ks[0], H, input_size),          # (H, input)
        "b_emb": jnp.zeros((H,), jnp.float32),
        "w_ih_f": gru_uniform(ks[1], (3 * H, H)),
        "w_hh_f": gru_uniform(ks[2], (3 * H, H)),
        "b_ih_f": gru_uniform(ks[3], (3 * H,)),
        "b_hh_f": gru_uniform(ks[4], (3 * H,)),
        "w_ih_b": gru_uniform(ks[5], (3 * H, H)),
        "w_hh_b": gru_uniform(ks[6], (3 * H, H)),
        "b_ih_b": gru_uniform(ks[7], (3 * H,)),
        "b_hh_b": gru_uniform(ks[8], (3 * H,)),
        "h0": jax.random.normal(ks[9], (2, 1, H), jnp.float32),
        "w_out1": xavier(ks[10], H, 2 * H),             # (H, 2H)
        "b_out1": jnp.zeros((H,), jnp.float32),
        "ln_g": jnp.ones((H,), jnp.float32),
        "ln_b": jnp.zeros((H,), jnp.float32),
        "w_out2": xavier(ks[11], output_size, H),       # (out, H)
        "b_out2": jnp.zeros((output_size,), jnp.float32),
    }


def pack_params(p):
    H = p["w_emb"].shape[0]
    bf16, f32 = jnp.bfloat16, jnp.float32
    return {
        # bf16 matmul operands (f32 accumulation in-kernel)
        "we": p["w_emb"].T.astype(bf16),                                # (in, H)
        "wg_f": p["w_ih_f"].T.astype(bf16),                             # (H, 3H)
        "wg_b": p["w_ih_b"].T.astype(bf16),                             # (H, 3H)
        "whh_f": p["w_hh_f"].T.astype(bf16),                            # (H, 3H)
        "whh_b": p["w_hh_b"].T.astype(bf16),                            # (H, 3H)
        # f32 biases / initial hidden / head
        "be": p["b_emb"].reshape(1, H).astype(f32),
        "bg_f": p["b_ih_f"].reshape(1, 3 * H).astype(f32),
        "bg_b": p["b_ih_b"].reshape(1, 3 * H).astype(f32),
        "bhh_f": p["b_hh_f"].reshape(1, 3 * H).astype(f32),
        "bhh_b": p["b_hh_b"].reshape(1, 3 * H).astype(f32),
        "h0": p["h0"].astype(f32),                                      # (2, 1, H)
        "w1": p["w_out1"].T.astype(f32),                                # (2H, H)
        "b1": p["b_out1"].reshape(1, H).astype(f32),
        "ln_g": p["ln_g"].reshape(1, H).astype(f32),
        "ln_b": p["ln_b"].reshape(1, H).astype(f32),
        "w2": p["w_out2"].T.astype(f32),                                # (H, out)
        "b2": p["b_out2"].reshape(1, -1).astype(f32),
    }


# ----------------------------------------------------------------------------
# NumPy float64 reference (PyTorch GRU semantics incl. packed-sequence masking)
# ----------------------------------------------------------------------------
def _sigmoid(x):
    return 1.0 / (1.0 + np.exp(-x))


def reference_forward(x, m_lens, p):
    x = np.asarray(x, np.float64)
    lens = np.asarray(m_lens, np.int64)
    B, T, _ = x.shape
    H = p["w_emb"].shape[0]
    f64 = lambda a: np.asarray(a, np.float64)

    emb = x @ f64(p["w_emb"]).T + f64(p["b_emb"])            # (B, T, H)

    def cell(xt, h, w_ih, w_hh, b_ih, b_hh):
        gi = xt @ w_ih.T + b_ih
        gh = h @ w_hh.T + b_hh
        r = _sigmoid(gi[:, :H] + gh[:, :H])
        z = _sigmoid(gi[:, H:2 * H] + gh[:, H:2 * H])
        n = np.tanh(gi[:, 2 * H:] + r * gh[:, 2 * H:])
        return (1.0 - z) * n + z * h

    h0 = f64(p["h0"])
    hf = np.repeat(h0[0], B, axis=0)
    hb = np.repeat(h0[1], B, axis=0)

    wf = (f64(p["w_ih_f"]), f64(p["w_hh_f"]), f64(p["b_ih_f"]), f64(p["b_hh_f"]))
    wb = (f64(p["w_ih_b"]), f64(p["w_hh_b"]), f64(p["b_ih_b"]), f64(p["b_hh_b"]))

    for t in range(T):                              # forward direction
        valid = (t < lens)[:, None]
        hf = np.where(valid, cell(emb[:, t], hf, *wf), hf)
    for t in range(T - 1, -1, -1):                  # backward direction
        valid = (t < lens)[:, None]
        hb = np.where(valid, cell(emb[:, t], hb, *wb), hb)

    g = np.concatenate([hf, hb], axis=-1)           # (B, 2H)
    y = g @ f64(p["w_out1"]).T + f64(p["b_out1"])
    mu = y.mean(-1, keepdims=True)
    var = ((y - mu) ** 2).mean(-1, keepdims=True)
    yn = (y - mu) / np.sqrt(var + LN_EPS) * f64(p["ln_g"]) + f64(p["ln_b"])
    a = np.where(yn > 0, yn, NEG_SLOPE * yn)
    return a @ f64(p["w_out2"]).T + f64(p["b_out2"])


# ----------------------------------------------------------------------------
if __name__ == "__main__":
    B, T = 2, 8
    input_size, hidden_size, output_size = 16, 32, 16

    key = jax.random.PRNGKey(0)
    kx, kp = jax.random.split(key)
    x = jax.random.normal(kx, (B, T, input_size), dtype=jnp.float32)
    # pack_padded_sequence(enforce_sorted=True) expects descending lengths
    m_lens = jnp.array([8, 5], dtype=jnp.int32)

    params = init_params(kp, input_size, hidden_size, output_size)
    packed = pack_params(params)

    fwd = jax.jit(motion_encoder_bigru_co)
    out = jax.block_until_ready(fwd(x, m_lens, packed))
    assert out.shape == (B, output_size), out.shape

    ref = reference_forward(x, m_lens, params)
    # bf16 matmul operands / stored gates -> looser tolerance vs. f64 reference.
    np.testing.assert_allclose(np.asarray(out, np.float64), ref,
                               rtol=3e-2, atol=3e-2)

    print("KERNEL_OK")
</pallas_src>

<mosaic_0001>
module attributes {stable_mosaic.version = 11 : i64} {
  func.func @_emb_gates_kernel(%arg0: i32, %arg1: memref<16x16xbf16, #tpu.memory_space<vmem>>, %arg2: memref<16x32xbf16, #tpu.memory_space<vmem>>, %arg3: memref<1x32xf32, #tpu.memory_space<vmem>>, %arg4: memref<32x96xbf16, #tpu.memory_space<vmem>>, %arg5: memref<1x96xf32, #tpu.memory_space<vmem>>, %arg6: memref<32x96xbf16, #tpu.memory_space<vmem>>, %arg7: memref<1x96xf32, #tpu.memory_space<vmem>>, %arg8: memref<16x96xbf16, #tpu.memory_space<vmem>>, %arg9: memref<16x96xbf16, #tpu.memory_space<vmem>>) attributes {dimension_semantics = [#tpu.dimension_semantics<parallel>], iteration_bounds = array<i64: 1>, scalar_prefetch = 0 : i64, scratch_operands = 0 : i64, tpu.core_type = #tpu.core_type<tc>, window_params = [{transform_indices = @transform_0, window_bounds = array<i64: 16, 16>}, {pipeline_mode = #tpu.pipeline_mode<synchronous>, transform_indices = @transform_1, window_bounds = array<i64: 16, 32>}, {pipeline_mode = #tpu.pipeline_mode<synchronous>, transform_indices = @transform_2, window_bounds = array<i64: 1, 32>}, {pipeline_mode = #tpu.pipeline_mode<synchronous>, transform_indices = @transform_3, window_bounds = array<i64: 32, 96>}, {pipeline_mode = #tpu.pipeline_mode<synchronous>, transform_indices = @transform_4, window_bounds = array<i64: 1, 96>}, {pipeline_mode = #tpu.pipeline_mode<synchronous>, transform_indices = @transform_5, window_bounds = array<i64: 32, 96>}, {pipeline_mode = #tpu.pipeline_mode<synchronous>, transform_indices = @transform_6, window_bounds = array<i64: 1, 96>}, {transform_indices = @transform_7, window_bounds = array<i64: 16, 96>}, {transform_indices = @transform_8, window_bounds = array<i64: 16, 96>}]} {
    %c0 = arith.constant 0 : index
    %c0_0 = arith.constant 0 : index
    %0 = vector.load %arg1[%c0, %c0_0] : memref<16x16xbf16, #tpu.memory_space<vmem>>, vector<16x16xbf16>
    %c0_1 = arith.constant 0 : index
    %c0_2 = arith.constant 0 : index
    %1 = vector.load %arg2[%c0_1, %c0_2] : memref<16x32xbf16, #tpu.memory_space<vmem>>, vector<16x32xbf16>
    %cst = arith.constant dense<0.000000e+00> : vector<16x32xf32>
    %2 = tpu.matmul %0, %1, %cst {dimension_numbers = #tpu.dot_dimension_numbers<[1], [0], [0], [1], [0, 0, 1, 1], [], []>} : vector<16x16xbf16>, vector<16x32xbf16>, vector<16x32xf32> -> vector<16x32xf32>
    %c0_3 = arith.constant 0 : index
    %c0_4 = arith.constant 0 : index
    %3 = vector.load %arg3[%c0_3, %c0_4] : memref<1x32xf32, #tpu.memory_space<vmem>>, vector<1x32xf32>
    %4 = vector.broadcast %3 : vector<1x32xf32> to vector<16x32xf32>
    %5 = arith.addf %2, %4 : vector<16x32xf32>
    %6 = arith.truncf %5 : vector<16x32xf32> to vector<16x32xbf16>
    %c0_5 = arith.constant 0 : index
    %c0_6 = arith.constant 0 : index
    %7 = vector.load %arg4[%c0_5, %c0_6] : memref<32x96xbf16, #tpu.memory_space<vmem>>, vector<32x96xbf16>
    %cst_7 = arith.constant dense<0.000000e+00> : vector<16x96xf32>
    %8 = tpu.matmul %6, %7, %cst_7 {dimension_numbers = #tpu.dot_dimension_numbers<[1], [0], [0], [1], [0, 0, 1, 1], [], []>} : vector<16x32xbf16>, vector<32x96xbf16>, vector<16x96xf32> -> vector<16x96xf32>
    %c0_8 = arith.constant 0 : index
    %c0_9 = arith.constant 0 : index
    %9 = vector.load %arg5[%c0_8, %c0_9] : memref<1x96xf32, #tpu.memory_space<vmem>>, vector<1x96xf32>
    %10 = vector.broadcast %9 : vector<1x96xf32> to vector<16x96xf32>
    %11 = arith.addf %8, %10 : vector<16x96xf32>
    %12 = arith.truncf %11 : vector<16x96xf32> to vector<16x96xbf16>
    %c0_10 = arith.constant 0 : index
    %c0_11 = arith.constant 0 : index
    %13 = vector.load %arg8[%c0_10, %c0_11] : memref<16x96xbf16, #tpu.memory_space<vmem>>, vector<16x96xbf16>
    tpu.vector_store %arg8[%c0_10, %c0_11], %12 {strides = array<i32>} : memref<16x96xbf16, #tpu.memory_space<vmem>>, vector<16x96xbf16>,
    %c0_12 = arith.constant 0 : index
    %c0_13 = arith.constant 0 : index
    %14 = vector.load %arg6[%c0_12, %c0_13] : memref<32x96xbf16, #tpu.memory_space<vmem>>, vector<32x96xbf16>
    %cst_14 = arith.constant dense<0.000000e+00> : vector<16x96xf32>
    %15 = tpu.matmul %6, %14, %cst_14 {dimension_numbers = #tpu.dot_dimension_numbers<[1], [0], [0], [1], [0, 0, 1, 1], [], []>} : vector<16x32xbf16>, vector<32x96xbf16>, vector<16x96xf32> -> vector<16x96xf32>
    %c0_15 = arith.constant 0 : index
    %c0_16 = arith.constant 0 : index
    %16 = vector.load %arg7[%c0_15, %c0_16] : memref<1x96xf32, #tpu.memory_space<vmem>>, vector<1x96xf32>
    %17 = vector.broadcast %16 : vector<1x96xf32> to vector<16x96xf32>
    %18 = arith.addf %15, %17 : vector<16x96xf32>
    %19 = arith.truncf %18 : vector<16x96xf32> to vector<16x96xbf16>
    %c0_17 = arith.constant 0 : index
    %c0_18 = arith.constant 0 : index
    %20 = vector.load %arg9[%c0_17, %c0_18] : memref<16x96xbf16, #tpu.memory_space<vmem>>, vector<16x96xbf16>
    tpu.vector_store %arg9[%c0_17, %c0_18], %19 {strides = array<i32>} : memref<16x96xbf16, #tpu.memory_space<vmem>>, vector<16x96xbf16>,
    return
  }
  func.func @transform_0(%arg0: i32) -> (i32, i32) {
    %c0_i32 = arith.constant 0 : i32
    %c0_i32_0 = arith.constant 0 : i32
    return %arg0, %c0_i32 : i32, i32
  }
  func.func @transform_1(%arg0: i32) -> (i32, i32) {
    %c0_i32 = arith.constant 0 : i32
    %c0_i32_0 = arith.constant 0 : i32
    %c0_i32_1 = arith.constant 0 : i32
    return %c0_i32, %c0_i32_0 : i32, i32
  }
  func.func @transform_2(%arg0: i32) -> (i32, i32) {
    %c0_i32 = arith.constant 0 : i32
    %c0_i32_0 = arith.constant 0 : i32
    %c0_i32_1 = arith.constant 0 : i32
    return %c0_i32, %c0_i32_0 : i32, i32
  }
  func.func @transform_3(%arg0: i32) -> (i32, i32) {
    %c0_i32 = arith.constant 0 : i32
    %c0_i32_0 = arith.constant 0 : i32
    %c0_i32_1 = arith.constant 0 : i32
    return %c0_i32, %c0_i32_0 : i32, i32
  }
  func.func @transform_4(%arg0: i32) -> (i32, i32) {
    %c0_i32 = arith.constant 0 : i32
    %c0_i32_0 = arith.constant 0 : i32
    %c0_i32_1 = arith.constant 0 : i32
    return %c0_i32, %c0_i32_0 : i32, i32
  }
  func.func @transform_5(%arg0: i32) -> (i32, i32) {
    %c0_i32 = arith.constant 0 : i32
    %c0_i32_0 = arith.constant 0 : i32
    %c0_i32_1 = arith.constant 0 : i32
    return %c0_i32, %c0_i32_0 : i32, i32
  }
  func.func @transform_6(%arg0: i32) -> (i32, i32) {
    %c0_i32 = arith.constant 0 : i32
    %c0_i32_0 = arith.constant 0 : i32
    %c0_i32_1 = arith.constant 0 : i32
    return %c0_i32, %c0_i32_0 : i32, i32
  }
  func.func @transform_7(%arg0: i32) -> (i32, i32) {
    %c0_i32 = arith.constant 0 : i32
    %c0_i32_0 = arith.constant 0 : i32
    return %arg0, %c0_i32 : i32, i32
  }
  func.func @transform_8(%arg0: i32) -> (i32, i32) {
    %c0_i32 = arith.constant 0 : i32
    %c0_i32_0 = arith.constant 0 : i32
    return %arg0, %c0_i32 : i32, i32
  }
}

module attributes {stable_mosaic.version = 11 : i64} {
  func.func @_head_kernel(%arg0: i32, %arg1: memref<2x64xf32, #tpu.memory_space<vmem>>, %arg2: memref<64x32xf32, #tpu.memory_space<vmem>>, %arg3: memref<1x32xf32, #tpu.memory_space<vmem>>, %arg4: memref<1x32xf32, #tpu.memory_space<vmem>>, %arg5: memref<1x32xf32, #tpu.memory_space<vmem>>, %arg6: memref<32x16xf32, #tpu.memory_space<vmem>>, %arg7: memref<1x16xf32, #tpu.memory_space<vmem>>, %arg8: memref<2x16xf32, #tpu.memory_space<vmem>>) attributes {dimension_semantics = [#tpu.dimension_semantics<parallel>], iteration_bounds = array<i64: 1>, scalar_prefetch = 0 : i64, scratch_operands = 0 : i64, tpu.core_type = #tpu.core_type<tc>, window_params = [{transform_indices = @transform_0, window_bounds = array<i64: 2, 64>}, {pipeline_mode = #tpu.pipeline_mode<synchronous>, transform_indices = @transform_1, window_bounds = array<i64: 64, 32>}, {pipeline_mode = #tpu.pipeline_mode<synchronous>, transform_indices = @transform_2, window_bounds = array<i64: 1, 32>}, {pipeline_mode = #tpu.pipeline_mode<synchronous>, transform_indices = @transform_3, window_bounds = array<i64: 1, 32>}, {pipeline_mode = #tpu.pipeline_mode<synchronous>, transform_indices = @transform_4, window_bounds = array<i64: 1, 32>}, {pipeline_mode = #tpu.pipeline_mode<synchronous>, transform_indices = @transform_5, window_bounds = array<i64: 32, 16>}, {pipeline_mode = #tpu.pipeline_mode<synchronous>, transform_indices = @transform_6, window_bounds = array<i64: 1, 16>}, {transform_indices = @transform_7, window_bounds = array<i64: 2, 16>}]} {
    %c0 = arith.constant 0 : index
    %c0_0 = arith.constant 0 : index
    %0 = vector.load %arg1[%c0, %c0_0] : memref<2x64xf32, #tpu.memory_space<vmem>>, vector<2x64xf32>
    %c0_1 = arith.constant 0 : index
    %c0_2 = arith.constant 0 : index
    %1 = vector.load %arg2[%c0_1, %c0_2] : memref<64x32xf32, #tpu.memory_space<vmem>>, vector<64x32xf32>
    %cst = arith.constant dense<0.000000e+00> : vector<2x32xf32>
    %2 = tpu.matmul %0, %1, %cst {dimension_numbers = #tpu.dot_dimension_numbers<[1], [0], [0], [1], [0, 0, 1, 1], [], []>} : vector<2x64xf32>, vector<64x32xf32>, vector<2x32xf32> -> vector<2x32xf32>
    %c0_3 = arith.constant 0 : index
    %c0_4 = arith.constant 0 : index
    %3 = vector.load %arg3[%c0_3, %c0_4] : memref<1x32xf32, #tpu.memory_space<vmem>>, vector<1x32xf32>
    %4 = vector.broadcast %3 : vector<1x32xf32> to vector<2x32xf32>
    %5 = arith.addf %2, %4 : vector<2x32xf32>
    %cst_5 = arith.constant dense<0.000000e+00> : vector<2xf32>
    %6 = vector.multi_reduction <add>, %5, %cst_5 [1] : vector<2x32xf32> to vector<2xf32>
    %7 = vector.shape_cast %6 : vector<2xf32> to vector<2x1xf32>
    %cst_6 = arith.constant 3.200000e+01 : f32
    %8 = vector.broadcast %cst_6 : f32 to vector<2x1xf32>
    %9 = arith.divf %7, %8 : vector<2x1xf32>
    %10 = vector.broadcast %9 : vector<2x1xf32> to vector<2x32xf32>
    %11 = arith.subf %5, %10 : vector<2x32xf32>
    %12 = arith.mulf %11, %11 : vector<2x32xf32>
    %cst_7 = arith.constant dense<0.000000e+00> : vector<2xf32>
    %13 = vector.multi_reduction <add>, %12, %cst_7 [1] : vector<2x32xf32> to vector<2xf32>
    %14 = vector.shape_cast %13 : vector<2xf32> to vector<2x1xf32>
    %cst_8 = arith.constant 3.200000e+01 : f32
    %15 = vector.broadcast %cst_8 : f32 to vector<2x1xf32>
    %16 = arith.divf %14, %15 : vector<2x1xf32>
    %17 = vector.broadcast %9 : vector<2x1xf32> to vector<2x32xf32>
    %18 = arith.subf %5, %17 : vector<2x32xf32>
    %cst_9 = arith.constant 9.99999974E-6 : f32
    %19 = vector.broadcast %cst_9 : f32 to vector<2x1xf32>
    %20 = arith.addf %16, %19 : vector<2x1xf32>
    %21 = math.rsqrt %20 : vector<2x1xf32>
    %22 = vector.broadcast %21 : vector<2x1xf32> to vector<2x32xf32>
    %23 = arith.mulf %18, %22 : vector<2x32xf32>
    %c0_10 = arith.constant 0 : index
    %c0_11 = arith.constant 0 : index
    %24 = vector.load %arg4[%c0_10, %c0_11] : memref<1x32xf32, #tpu.memory_space<vmem>>, vector<1x32xf32>
    %25 = vector.broadcast %24 : vector<1x32xf32> to vector<2x32xf32>
    %26 = arith.mulf %23, %25 : vector<2x32xf32>
    %c0_12 = arith.constant 0 : index
    %c0_13 = arith.constant 0 : index
    %27 = vector.load %arg5[%c0_12, %c0_13] : memref<1x32xf32, #tpu.memory_space<vmem>>, vector<1x32xf32>
    %28 = vector.broadcast %27 : vector<1x32xf32> to vector<2x32xf32>
    %29 = arith.addf %26, %28 : vector<2x32xf32>
    %cst_14 = arith.constant 0.000000e+00 : f32
    %30 = vector.broadcast %cst_14 : f32 to vector<2x32xf32>
    %31 = arith.cmpf ogt, %29, %30 : vector<2x32xf32>
    %cst_15 = arith.constant 2.000000e-01 : f32
    %32 = vector.broadcast %cst_15 : f32 to vector<2x32xf32>
    %33 = arith.mulf %32, %29 : vector<2x32xf32>
    %34 = arith.select %31, %29, %33 : vector<2x32xi1>, vector<2x32xf32>
    %c0_16 = arith.constant 0 : index
    %c0_17 = arith.constant 0 : index
    %35 = vector.load %arg6[%c0_16, %c0_17] : memref<32x16xf32, #tpu.memory_space<vmem>>, vector<32x16xf32>
    %cst_18 = arith.constant dense<0.000000e+00> : vector<2x16xf32>
    %36 = tpu.matmul %34, %35, %cst_18 {dimension_numbers = #tpu.dot_dimension_numbers<[1], [0], [0], [1], [0, 0, 1, 1], [], []>} : vector<2x32xf32>, vector<32x16xf32>, vector<2x16xf32> -> vector<2x16xf32>
    %c0_19 = arith.constant 0 : index
    %c0_20 = arith.constant 0 : index
    %37 = vector.load %arg7[%c0_19, %c0_20] : memref<1x16xf32, #tpu.memory_space<vmem>>, vector<1x16xf32>
    %38 = vector.broadcast %37 : vector<1x16xf32> to vector<2x16xf32>
    %39 = arith.addf %36, %38 : vector<2x16xf32>
    %c0_21 = arith.constant 0 : index
    %c0_22 = arith.constant 0 : index
    %40 = vector.load %arg8[%c0_21, %c0_22] : memref<2x16xf32, #tpu.memory_space<vmem>>, vector<2x16xf32>
    tpu.vector_store %arg8[%c0_21, %c0_22], %39 {strides = array<i32>} : memref<2x16xf32, #tpu.memory_space<vmem>>, vector<2x16xf32>,
    return
  }
  func.func @transform_0(%arg0: i32) -> (i32, i32) {
    %c0_i32 = arith.constant 0 : i32
    %c0_i32_0 = arith.constant 0 : i32
    return %arg0, %c0_i32 : i32, i32
  }
  func.func @transform_1(%arg0: i32) -> (i32, i32) {
    %c0_i32 = arith.constant 0 : i32
    %c0_i32_0 = arith.constant 0 : i32
    %c0_i32_1 = arith.constant 0 : i32
    return %c0_i32, %c0_i32_0 : i32, i32
  }
  func.func @transform_2(%arg0: i32) -> (i32, i32) {
    %c0_i32 = arith.constant 0 : i32
    %c0_i32_0 = arith.constant 0 : i32
    %c0_i32_1 = arith.constant 0 : i32
    return %c0_i32, %c0_i32_0 : i32, i32
  }
  func.func @transform_3(%arg0: i32) -> (i32, i32) {
    %c0_i32 = arith.constant 0 : i32
    %c0_i32_0 = arith.constant 0 : i32
    %c0_i32_1 = arith.constant 0 : i32
    return %c0_i32, %c0_i32_0 : i32, i32
  }
  func.func @transform_4(%arg0: i32) -> (i32, i32) {
    %c0_i32 = arith.constant 0 : i32
    %c0_i32_0 = arith.constant 0 : i32
    %c0_i32_1 = arith.constant 0 : i32
    return %c0_i32, %c0_i32_0 : i32, i32
  }
  func.func @transform_5(%arg0: i32) -> (i32, i32) {
    %c0_i32 = arith.constant 0 : i32
    %c0_i32_0 = arith.constant 0 : i32
    %c0_i32_1 = arith.constant 0 : i32
    return %c0_i32, %c0_i32_0 : i32, i32
  }
  func.func @transform_6(%arg0: i32) -> (i32, i32) {
    %c0_i32 = arith.constant 0 : i32
    %c0_i32_0 = arith.constant 0 : i32
    %c0_i32_1 = arith.constant 0 : i32
    return %c0_i32, %c0_i32_0 : i32, i32
  }
  func.func @transform_7(%arg0: i32) -> (i32, i32) {
    %c0_i32 = arith.constant 0 : i32
    %c0_i32_0 = arith.constant 0 : i32
    return %arg0, %c0_i32 : i32, i32
  }
}

module attributes {stable_mosaic.version = 11 : i64} {
  func.func @_bigru_scan_kernel(%arg0: i32, %arg1: memref<2x1xi32, #tpu.memory_space<vmem>>, %arg2: memref<8x2x96xbf16, #tpu.memory_space<vmem>>, %arg3: memref<8x2x96xbf16, #tpu.memory_space<vmem>>, %arg4: memref<32x96xbf16, #tpu.memory_space<vmem>>, %arg5: memref<32x96xbf16, #tpu.memory_space<vmem>>, %arg6: memref<1x96xf32, #tpu.memory_space<vmem>>, %arg7: memref<1x96xf32, #tpu.memory_space<vmem>>, %arg8: memref<2x1x32xf32, #tpu.memory_space<vmem>>, %arg9: memref<2x32xf32, #tpu.memory_space<vmem>>, %arg10: memref<2x32xf32, #tpu.memory_space<vmem>>) attributes {dimension_semantics = [#tpu.dimension_semantics<arbitrary>], iteration_bounds = array<i64: 1>, scalar_prefetch = 0 : i64, scratch_operands = 0 : i64, tpu.core_type = #tpu.core_type<tc>, window_params = [{pipeline_mode = #tpu.pipeline_mode<synchronous>, transform_indices = @transform_0, window_bounds = array<i64: 2, 1>}, {transform_indices = @transform_1, window_bounds = array<i64: 8, 2, 96>}, {transform_indices = @transform_2, window_bounds = array<i64: 8, 2, 96>}, {pipeline_mode = #tpu.pipeline_mode<synchronous>, transform_indices = @transform_3, window_bounds = array<i64: 32, 96>}, {pipeline_mode = #tpu.pipeline_mode<synchronous>, transform_indices = @transform_4, window_bounds = array<i64: 32, 96>}, {pipeline_mode = #tpu.pipeline_mode<synchronous>, transform_indices = @transform_5, window_bounds = array<i64: 1, 96>}, {pipeline_mode = #tpu.pipeline_mode<synchronous>, transform_indices = @transform_6, window_bounds = array<i64: 1, 96>}, {pipeline_mode = #tpu.pipeline_mode<synchronous>, transform_indices = @transform_7, window_bounds = array<i64: 2, 1, 32>}, {pipeline_mode = #tpu.pipeline_mode<synchronous>, transform_indices = @transform_8, window_bounds = array<i64: 2, 32>}, {pipeline_mode = #tpu.pipeline_mode<synchronous>, transform_indices = @transform_9, window_bounds = array<i64: 2, 32>}]} {
    %c0_i32 = arith.constant 0 : i32
    %0 = arith.cmpi eq, %arg0, %c0_i32 : i32
    %1 = arith.extui %0 : i1 to i32
    %c0_i32_0 = arith.constant 0 : i32
    %2 = arith.cmpi ne, %1, %c0_i32_0 : i32
    scf.if %2 {
      %c0_133 = arith.constant 0 : index
      %c0_134 = arith.constant 0 : index
      %c0_135 = arith.constant 0 : index
      %671 = vector.load %arg8[%c0_133, %c0_134, %c0_135] : memref<2x1x32xf32, #tpu.memory_space<vmem>>, vector<1x1x32xf32>
      %672 = vector.shape_cast %671 : vector<1x1x32xf32> to vector<1x32xf32>
      %673 = vector.shape_cast %672 : vector<1x32xf32> to vector<1x32xf32>
      %674 = vector.broadcast %673 : vector<1x32xf32> to vector<2x32xf32>
      %c0_136 = arith.constant 0 : index
      %c0_137 = arith.constant 0 : index
      %675 = vector.load %arg9[%c0_136, %c0_137] : memref<2x32xf32, #tpu.memory_space<vmem>>, vector<2x32xf32>
      tpu.vector_store %arg9[%c0_136, %c0_137], %674 {strides = array<i32>} : memref<2x32xf32, #tpu.memory_space<vmem>>, vector<2x32xf32>,
      %c1 = arith.constant 1 : index
      %c0_138 = arith.constant 0 : index
      %c0_139 = arith.constant 0 : index
      %676 = vector.load %arg8[%c1, %c0_138, %c0_139] : memref<2x1x32xf32, #tpu.memory_space<vmem>>, vector<1x1x32xf32>
      %677 = vector.shape_cast %676 : vector<1x1x32xf32> to vector<1x32xf32>
      %678 = vector.shape_cast %677 : vector<1x32xf32> to vector<1x32xf32>
      %679 = vector.broadcast %678 : vector<1x32xf32> to vector<2x32xf32>
      %c0_140 = arith.constant 0 : index
      %c0_141 = arith.constant 0 : index
      %680 = vector.load %arg10[%c0_140, %c0_141] : memref<2x32xf32, #tpu.memory_space<vmem>>, vector<2x32xf32>
      tpu.vector_store %arg10[%c0_140, %c0_141], %679 {strides = array<i32>} : memref<2x32xf32, #tpu.memory_space<vmem>>, vector<2x32xf32>,
    } else {
    }
    %c0 = arith.constant 0 : index
    %c0_1 = arith.constant 0 : index
    %3 = vector.load %arg1[%c0, %c0_1] : memref<2x1xi32, #tpu.memory_space<vmem>>, vector<2x1xi32>
    %c0_2 = arith.constant 0 : index
    %c0_3 = arith.constant 0 : index
    %4 = vector.load %arg4[%c0_2, %c0_3] : memref<32x96xbf16, #tpu.memory_space<vmem>>, vector<32x96xbf16>
    %c0_4 = arith.constant 0 : index
    %c0_5 = arith.constant 0 : index
    %5 = vector.load %arg5[%c0_4, %c0_5] : memref<32x96xbf16, #tpu.memory_space<vmem>>, vector<32x96xbf16>
    %c0_6 = arith.constant 0 : index
    %c0_7 = arith.constant 0 : index
    %6 = vector.load %arg6[%c0_6, %c0_7] : memref<1x96xf32, #tpu.memory_space<vmem>>, vector<1x96xf32>
    %c0_8 = arith.constant 0 : index
    %c0_9 = arith.constant 0 : index
    %7 = vector.load %arg7[%c0_8, %c0_9] : memref<1x96xf32, #tpu.memory_space<vmem>>, vector<1x96xf32>
    %c8_i32 = arith.constant 8 : i32
    %8 = arith.muli %arg0, %c8_i32 : i32
    %c0_i32_10 = arith.constant 0 : i32
    %9 = arith.subi %c0_i32_10, %arg0 : i32
    %c8_i32_11 = arith.constant 8 : i32
    %10 = arith.muli %9, %c8_i32_11 : i32
    %c0_12 = arith.constant 0 : index
    %c0_13 = arith.constant 0 : index
    %11 = vector.load %arg9[%c0_12, %c0_13] : memref<2x32xf32, #tpu.memory_space<vmem>>, vector<2x32xf32>
    %c0_14 = arith.constant 0 : index
    %c0_15 = arith.constant 0 : index
    %12 = vector.load %arg10[%c0_14, %c0_15] : memref<2x32xf32, #tpu.memory_space<vmem>>, vector<2x32xf32>
    %c0_i32_16 = arith.constant 0 : i32
    %13 = arith.addi %8, %c0_i32_16 : i32
    %c7_i32 = arith.constant 7 : i32
    %14 = arith.subi %c7_i32, %c0_i32_16 : i32
    %15 = arith.addi %10, %14 : i32
    %16 = arith.index_cast %c0_i32_16 : i32 to index
    %c0_17 = arith.constant 0 : index
    %c0_18 = arith.constant 0 : index
    %17 = vector.load %arg2[%16, %c0_17, %c0_18] : memref<8x2x96xbf16, #tpu.memory_space<vmem>>, vector<1x2x96xbf16>
    %18 = vector.shape_cast %17 : vector<1x2x96xbf16> to vector<2x96xbf16>
    %19 = vector.broadcast %13 : i32 to vector<2x1xi32>
    %20 = arith.cmpi slt, %19, %3 : vector<2x1xi32>
    %21 = arith.truncf %11 : vector<2x32xf32> to vector<2x32xbf16>
    %cst = arith.constant dense<0.000000e+00> : vector<2x96xf32>
    %22 = tpu.matmul %21, %4, %cst {dimension_numbers = #tpu.dot_dimension_numbers<[1], [0], [0], [1], [0, 0, 1, 1], [], []>} : vector<2x32xbf16>, vector<32x96xbf16>, vector<2x96xf32> -> vector<2x96xf32>
    %23 = vector.broadcast %6 : vector<1x96xf32> to vector<2x96xf32>
    %24 = arith.addf %22, %23 : vector<2x96xf32>
    %25 = arith.extf %18 : vector<2x96xbf16> to vector<2x96xf32>
    %26 = vector.extract_strided_slice %25 {offsets = [0, 0], sizes = [2, 32], strides = [1, 1]} : vector<2x96xf32> to vector<2x32xf32>
    %27 = vector.extract_strided_slice %24 {offsets = [0, 0], sizes = [2, 32], strides = [1, 1]} : vector<2x96xf32> to vector<2x32xf32>
    %28 = arith.addf %26, %27 : vector<2x32xf32>
    %29 = arith.negf %28 : vector<2x32xf32>
    %30 = math.exp %29 : vector<2x32xf32>
    %cst_19 = arith.constant 1.000000e+00 : f32
    %31 = vector.broadcast %cst_19 : f32 to vector<2x32xf32>
    %32 = arith.addf %31, %30 : vector<2x32xf32>
    %33 = arith.divf %31, %32 : vector<2x32xf32>
    %34 = vector.extract_strided_slice %25 {offsets = [0, 32], sizes = [2, 32], strides = [1, 1]} : vector<2x96xf32> to vector<2x32xf32>
    %35 = vector.extract_strided_slice %24 {offsets = [0, 32], sizes = [2, 32], strides = [1, 1]} : vector<2x96xf32> to vector<2x32xf32>
    %36 = arith.addf %34, %35 : vector<2x32xf32>
    %37 = arith.negf %36 : vector<2x32xf32>
    %38 = math.exp %37 : vector<2x32xf32>
    %cst_20 = arith.constant 1.000000e+00 : f32
    %39 = vector.broadcast %cst_20 : f32 to vector<2x32xf32>
    %40 = arith.addf %39, %38 : vector<2x32xf32>
    %41 = arith.divf %39, %40 : vector<2x32xf32>
    %42 = vector.extract_strided_slice %25 {offsets = [0, 64], sizes = [2, 32], strides = [1, 1]} : vector<2x96xf32> to vector<2x32xf32>
    %43 = vector.extract_strided_slice %24 {offsets = [0, 64], sizes = [2, 32], strides = [1, 1]} : vector<2x96xf32> to vector<2x32xf32>
    %44 = arith.mulf %33, %43 : vector<2x32xf32>
    %45 = arith.addf %42, %44 : vector<2x32xf32>
    %46 = math.tanh %45 : vector<2x32xf32>
    %cst_21 = arith.constant 1.000000e+00 : f32
    %47 = vector.broadcast %cst_21 : f32 to vector<2x32xf32>
    %48 = arith.subf %47, %41 : vector<2x32xf32>
    %49 = arith.mulf %48, %46 : vector<2x32xf32>
    %50 = arith.mulf %41, %11 : vector<2x32xf32>
    %51 = arith.addf %49, %50 : vector<2x32xf32>
    %52 = vector.shape_cast %20 : vector<2x1xi1> to vector<2x1xi1>
    %53 = vector.broadcast %52 : vector<2x1xi1> to vector<2x32xi1>
    %54 = arith.select %53, %51, %11 : vector<2x32xi1>, vector<2x32xf32>
    %c7_i32_22 = arith.constant 7 : i32
    %55 = arith.subi %c7_i32_22, %c0_i32_16 : i32
    %56 = arith.index_cast %55 : i32 to index
    %c0_23 = arith.constant 0 : index
    %c0_24 = arith.constant 0 : index
    %57 = vector.load %arg3[%56, %c0_23, %c0_24] : memref<8x2x96xbf16, #tpu.memory_space<vmem>>, vector<1x2x96xbf16>
    %58 = vector.shape_cast %57 : vector<1x2x96xbf16> to vector<2x96xbf16>
    %59 = vector.broadcast %15 : i32 to vector<2x1xi32>
    %60 = arith.cmpi slt, %59, %3 : vector<2x1xi32>
    %61 = arith.truncf %12 : vector<2x32xf32> to vector<2x32xbf16>
    %cst_25 = arith.constant dense<0.000000e+00> : vector<2x96xf32>
    %62 = tpu.matmul %61, %5, %cst_25 {dimension_numbers = #tpu.dot_dimension_numbers<[1], [0], [0], [1], [0, 0, 1, 1], [], []>} : vector<2x32xbf16>, vector<32x96xbf16>, vector<2x96xf32> -> vector<2x96xf32>
    %63 = vector.broadcast %7 : vector<1x96xf32> to vector<2x96xf32>
    %64 = arith.addf %62, %63 : vector<2x96xf32>
    %65 = arith.extf %58 : vector<2x96xbf16> to vector<2x96xf32>
    %66 = vector.extract_strided_slice %65 {offsets = [0, 0], sizes = [2, 32], strides = [1, 1]} : vector<2x96xf32> to vector<2x32xf32>
    %67 = vector.extract_strided_slice %64 {offsets = [0, 0], sizes = [2, 32], strides = [1, 1]} : vector<2x96xf32> to vector<2x32xf32>
    %68 = arith.addf %66, %67 : vector<2x32xf32>
    %69 = arith.negf %68 : vector<2x32xf32>
    %70 = math.exp %69 : vector<2x32xf32>
    %cst_26 = arith.constant 1.000000e+00 : f32
    %71 = vector.broadcast %cst_26 : f32 to vector<2x32xf32>
    %72 = arith.addf %71, %70 : vector<2x32xf32>
    %73 = arith.divf %71, %72 : vector<2x32xf32>
    %74 = vector.extract_strided_slice %65 {offsets = [0, 32], sizes = [2, 32], strides = [1, 1]} : vector<2x96xf32> to vector<2x32xf32>
    %75 = vector.extract_strided_slice %64 {offsets = [0, 32], sizes = [2, 32], strides = [1, 1]} : vector<2x96xf32> to vector<2x32xf32>
    %76 = arith.addf %74, %75 : vector<2x32xf32>
    %77 = arith.negf %76 : vector<2x32xf32>
    %78 = math.exp %77 : vector<2x32xf32>
    %cst_27 = arith.constant 1.000000e+00 : f32
    %79 = vector.broadcast %cst_27 : f32 to vector<2x32xf32>
    %80 = arith.addf %79, %78 : vector<2x32xf32>
    %81 = arith.divf %79, %80 : vector<2x32xf32>
    %82 = vector.extract_strided_slice %65 {offsets = [0, 64], sizes = [2, 32], strides = [1, 1]} : vector<2x96xf32> to vector<2x32xf32>
    %83 = vector.extract_strided_slice %64 {offsets = [0, 64], sizes = [2, 32], strides = [1, 1]} : vector<2x96xf32> to vector<2x32xf32>
    %84 = arith.mulf %73, %83 : vector<2x32xf32>
    %85 = arith.addf %82, %84 : vector<2x32xf32>
    %86 = math.tanh %85 : vector<2x32xf32>
    %cst_28 = arith.constant 1.000000e+00 : f32
    %87 = vector.broadcast %cst_28 : f32 to vector<2x32xf32>
    %88 = arith.subf %87, %81 : vector<2x32xf32>
    %89 = arith.mulf %88, %86 : vector<2x32xf32>
    %90 = arith.mulf %81, %12 : vector<2x32xf32>
    %91 = arith.addf %89, %90 : vector<2x32xf32>
    %92 = vector.shape_cast %60 : vector<2x1xi1> to vector<2x1xi1>
    %93 = vector.broadcast %92 : vector<2x1xi1> to vector<2x32xi1>
    %94 = arith.select %93, %91, %12 : vector<2x32xi1>, vector<2x32xf32>
    %c1_i32 = arith.constant 1 : i32
    %95 = arith.addi %8, %c1_i32 : i32
    %c7_i32_29 = arith.constant 7 : i32
    %96 = arith.subi %c7_i32_29, %c1_i32 : i32
    %97 = arith.addi %10, %96 : i32
    %98 = arith.index_cast %c1_i32 : i32 to index
    %c0_30 = arith.constant 0 : index
    %c0_31 = arith.constant 0 : index
    %99 = vector.load %arg2[%98, %c0_30, %c0_31] : memref<8x2x96xbf16, #tpu.memory_space<vmem>>, vector<1x2x96xbf16>
    %100 = vector.shape_cast %99 : vector<1x2x96xbf16> to vector<2x96xbf16>
    %101 = vector.broadcast %95 : i32 to vector<2x1xi32>
    %102 = arith.cmpi slt, %101, %3 : vector<2x1xi32>
    %103 = arith.truncf %54 : vector<2x32xf32> to vector<2x32xbf16>
    %cst_32 = arith.constant dense<0.000000e+00> : vector<2x96xf32>
    %104 = tpu.matmul %103, %4, %cst_32 {dimension_numbers = #tpu.dot_dimension_numbers<[1], [0], [0], [1], [0, 0, 1, 1], [], []>} : vector<2x32xbf16>, vector<32x96xbf16>, vector<2x96xf32> -> vector<2x96xf32>
    %105 = vector.broadcast %6 : vector<1x96xf32> to vector<2x96xf32>
    %106 = arith.addf %104, %105 : vector<2x96xf32>
    %107 = arith.extf %100 : vector<2x96xbf16> to vector<2x96xf32>
    %108 = vector.extract_strided_slice %107 {offsets = [0, 0], sizes = [2, 32], strides = [1, 1]} : vector<2x96xf32> to vector<2x32xf32>
    %109 = vector.extract_strided_slice %106 {offsets = [0, 0], sizes = [2, 32], strides = [1, 1]} : vector<2x96xf32> to vector<2x32xf32>
    %110 = arith.addf %108, %109 : vector<2x32xf32>
    %111 = arith.negf %110 : vector<2x32xf32>
    %112 = math.exp %111 : vector<2x32xf32>
    %cst_33 = arith.constant 1.000000e+00 : f32
    %113 = vector.broadcast %cst_33 : f32 to vector<2x32xf32>
    %114 = arith.addf %113, %112 : vector<2x32xf32>
    %115 = arith.divf %113, %114 : vector<2x32xf32>
    %116 = vector.extract_strided_slice %107 {offsets = [0, 32], sizes = [2, 32], strides = [1, 1]} : vector<2x96xf32> to vector<2x32xf32>
    %117 = vector.extract_strided_slice %106 {offsets = [0, 32], sizes = [2, 32], strides = [1, 1]} : vector<2x96xf32> to vector<2x32xf32>
    %118 = arith.addf %116, %117 : vector<2x32xf32>
    %119 = arith.negf %118 : vector<2x32xf32>
    %120 = math.exp %119 : vector<2x32xf32>
    %cst_34 = arith.constant 1.000000e+00 : f32
    %121 = vector.broadcast %cst_34 : f32 to vector<2x32xf32>
    %122 = arith.addf %121, %120 : vector<2x32xf32>
    %123 = arith.divf %121, %122 : vector<2x32xf32>
    %124 = vector.extract_strided_slice %107 {offsets = [0, 64], sizes = [2, 32], strides = [1, 1]} : vector<2x96xf32> to vector<2x32xf32>
    %125 = vector.extract_strided_slice %106 {offsets = [0, 64], sizes = [2, 32], strides = [1, 1]} : vector<2x96xf32> to vector<2x32xf32>
    %126 = arith.mulf %115, %125 : vector<2x32xf32>
    %127 = arith.addf %124, %126 : vector<2x32xf32>
    %128 = math.tanh %127 : vector<2x32xf32>
    %cst_35 = arith.constant 1.000000e+00 : f32
    %129 = vector.broadcast %cst_35 : f32 to vector<2x32xf32>
    %130 = arith.subf %129, %123 : vector<2x32xf32>
    %131 = arith.mulf %130, %128 : vector<2x32xf32>
    %132 = arith.mulf %123, %54 : vector<2x32xf32>
    %133 = arith.addf %131, %132 : vector<2x32xf32>
    %134 = vector.shape_cast %102 : vector<2x1xi1> to vector<2x1xi1>
    %135 = vector.broadcast %134 : vector<2x1xi1> to vector<2x32xi1>
    %136 = arith.select %135, %133, %54 : vector<2x32xi1>, vector<2x32xf32>
    %c7_i32_36 = arith.constant 7 : i32
    %137 = arith.subi %c7_i32_36, %c1_i32 : i32
    %138 = arith.index_cast %137 : i32 to index
    %c0_37 = arith.constant 0 : index
    %c0_38 = arith.constant 0 : index
    %139 = vector.load %arg3[%138, %c0_37, %c0_38] : memref<8x2x96xbf16, #tpu.memory_space<vmem>>, vector<1x2x96xbf16>
    %140 = vector.shape_cast %139 : vector<1x2x96xbf16> to vector<2x96xbf16>
    %141 = vector.broadcast %97 : i32 to vector<2x1xi32>
    %142 = arith.cmpi slt, %141, %3 : vector<2x1xi32>
    %143 = arith.truncf %94 : vector<2x32xf32> to vector<2x32xbf16>
    %cst_39 = arith.constant dense<0.000000e+00> : vector<2x96xf32>
    %144 = tpu.matmul %143, %5, %cst_39 {dimension_numbers = #tpu.dot_dimension_numbers<[1], [0], [0], [1], [0, 0, 1, 1], [], []>} : vector<2x32xbf16>, vector<32x96xbf16>, vector<2x96xf32> -> vector<2x96xf32>
    %145 = vector.broadcast %7 : vector<1x96xf32> to vector<2x96xf32>
    %146 = arith.addf %144, %145 : vector<2x96xf32>
    %147 = arith.extf %140 : vector<2x96xbf16> to vector<2x96xf32>
    %148 = vector.extract_strided_slice %147 {offsets = [0, 0], sizes = [2, 32], strides = [1, 1]} : vector<2x96xf32> to vector<2x32xf32>
    %149 = vector.extract_strided_slice %146 {offsets = [0, 0], sizes = [2, 32], strides = [1, 1]} : vector<2x96xf32> to vector<2x32xf32>
    %150 = arith.addf %148, %149 : vector<2x32xf32>
    %151 = arith.negf %150 : vector<2x32xf32>
    %152 = math.exp %151 : vector<2x32xf32>
    %cst_40 = arith.constant 1.000000e+00 : f32
    %153 = vector.broadcast %cst_40 : f32 to vector<2x32xf32>
    %154 = arith.addf %153, %152 : vector<2x32xf32>
    %155 = arith.divf %153, %154 : vector<2x32xf32>
    %156 = vector.extract_strided_slice %147 {offsets = [0, 32], sizes = [2, 32], strides = [1, 1]} : vector<2x96xf32> to vector<2x32xf32>
    %157 = vector.extract_strided_slice %146 {offsets = [0, 32], sizes = [2, 32], strides = [1, 1]} : vector<2x96xf32> to vector<2x32xf32>
    %158 = arith.addf %156, %157 : vector<2x32xf32>
    %159 = arith.negf %158 : vector<2x32xf32>
    %160 = math.exp %159 : vector<2x32xf32>
    %cst_41 = arith.constant 1.000000e+00 : f32
    %161 = vector.broadcast %cst_41 : f32 to vector<2x32xf32>
    %162 = arith.addf %161, %160 : vector<2x32xf32>
    %163 = arith.divf %161, %162 : vector<2x32xf32>
    %164 = vector.extract_strided_slice %147 {offsets = [0, 64], sizes = [2, 32], strides = [1, 1]} : vector<2x96xf32> to vector<2x32xf32>
    %165 = vector.extract_strided_slice %146 {offsets = [0, 64], sizes = [2, 32], strides = [1, 1]} : vector<2x96xf32> to vector<2x32xf32>
    %166 = arith.mulf %155, %165 : vector<2x32xf32>
    %167 = arith.addf %164, %166 : vector<2x32xf32>
    %168 = math.tanh %167 : vector<2x32xf32>
    %cst_42 = arith.constant 1.000000e+00 : f32
    %169 = vector.broadcast %cst_42 : f32 to vector<2x32xf32>
    %170 = arith.subf %169, %163 : vector<2x32xf32>
    %171 = arith.mulf %170, %168 : vector<2x32xf32>
    %172 = arith.mulf %163, %94 : vector<2x32xf32>
    %173 = arith.addf %171, %172 : vector<2x32xf32>
    %174 = vector.shape_cast %142 : vector<2x1xi1> to vector<2x1xi1>
    %175 = vector.broadcast %174 : vector<2x1xi1> to vector<2x32xi1>
    %176 = arith.select %175, %173, %94 : vector<2x32xi1>, vector<2x32xf32>
    %c2_i32 = arith.constant 2 : i32
    %177 = arith.addi %8, %c2_i32 : i32
    %c7_i32_43 = arith.constant 7 : i32
    %178 = arith.subi %c7_i32_43, %c2_i32 : i32
    %179 = arith.addi %10, %178 : i32
    %180 = arith.index_cast %c2_i32 : i32 to index
    %c0_44 = arith.constant 0 : index
    %c0_45 = arith.constant 0 : index
    %181 = vector.load %arg2[%180, %c0_44, %c0_45] : memref<8x2x96xbf16, #tpu.memory_space<vmem>>, vector<1x2x96xbf16>
    %182 = vector.shape_cast %181 : vector<1x2x96xbf16> to vector<2x96xbf16>
    %183 = vector.broadcast %177 : i32 to vector<2x1xi32>
    %184 = arith.cmpi slt, %183, %3 : vector<2x1xi32>
    %185 = arith.truncf %136 : vector<2x32xf32> to vector<2x32xbf16>
    %cst_46 = arith.constant dense<0.000000e+00> : vector<2x96xf32>
    %186 = tpu.matmul %185, %4, %cst_46 {dimension_numbers = #tpu.dot_dimension_numbers<[1], [0], [0], [1], [0, 0, 1, 1], [], []>} : vector<2x32xbf16>, vector<32x96xbf16>, vector<2x96xf32> -> vector<2x96xf32>
    %187 = vector.broadcast %6 : vector<1x96xf32> to vector<2x96xf32>
    %188 = arith.addf %186, %187 : vector<2x96xf32>
    %189 = arith.extf %182 : vector<2x96xbf16> to vector<2x96xf32>
    %190 = vector.extract_strided_slice %189 {offsets = [0, 0], sizes = [2, 32], strides = [1, 1]} : vector<2x96xf32> to vector<2x32xf32>
    %191 = vector.extract_strided_slice %188 {offsets = [0, 0], sizes = [2, 32], strides = [1, 1]} : vector<2x96xf32> to vector<2x32xf32>
    %192 = arith.addf %190, %191 : vector<2x32xf32>
    %193 = arith.negf %192 : vector<2x32xf32>
    %194 = math.exp %193 : vector<2x32xf32>
    %cst_47 = arith.constant 1.000000e+00 : f32
    %195 = vector.broadcast %cst_47 : f32 to vector<2x32xf32>
    %196 = arith.addf %195, %194 : vector<2x32xf32>
    %197 = arith.divf %195, %196 : vector<2x32xf32>
    %198 = vector.extract_strided_slice %189 {offsets = [0, 32], sizes = [2, 32], strides = [1, 1]} : vector<2x96xf32> to vector<2x32xf32>
    %199 = vector.extract_strided_slice %188 {offsets = [0, 32], sizes = [2, 32], strides = [1, 1]} : vector<2x96xf32> to vector<2x32xf32>
    %200 = arith.addf %198, %199 : vector<2x32xf32>
    %201 = arith.negf %200 : vector<2x32xf32>
    %202 = math.exp %201 : vector<2x32xf32>
    %cst_48 = arith.constant 1.000000e+00 : f32
    %203 = vector.broadcast %cst_48 : f32 to vector<2x32xf32>
    %204 = arith.addf %203, %202 : vector<2x32xf32>
    %205 = arith.divf %203, %204 : vector<2x32xf32>
    %206 = vector.extract_strided_slice %189 {offsets = [0, 64], sizes = [2, 32], strides = [1, 1]} : vector<2x96xf32> to vector<2x32xf32>
    %207 = vector.extract_strided_slice %188 {offsets = [0, 64], sizes = [2, 32], strides = [1, 1]} : vector<2x96xf32> to vector<2x32xf32>
    %208 = arith.mulf %197, %207 : vector<2x32xf32>
    %209 = arith.addf %206, %208 : vector<2x32xf32>
    %210 = math.tanh %209 : vector<2x32xf32>
    %cst_49 = arith.constant 1.000000e+00 : f32
    %211 = vector.broadcast %cst_49 : f32 to vector<2x32xf32>
    %212 = arith.subf %211, %205 : vector<2x32xf32>
    %213 = arith.mulf %212, %210 : vector<2x32xf32>
    %214 = arith.mulf %205, %136 : vector<2x32xf32>
    %215 = arith.addf %213, %214 : vector<2x32xf32>
    %216 = vector.shape_cast %184 : vector<2x1xi1> to vector<2x1xi1>
    %217 = vector.broadcast %216 : vector<2x1xi1> to vector<2x32xi1>
    %218 = arith.select %217, %215, %136 : vector<2x32xi1>, vector<2x32xf32>
    %c7_i32_50 = arith.constant 7 : i32
    %219 = arith.subi %c7_i32_50, %c2_i32 : i32
    %220 = arith.index_cast %219 : i32 to index
    %c0_51 = arith.constant 0 : index
    %c0_52 = arith.constant 0 : index
    %221 = vector.load %arg3[%220, %c0_51, %c0_52] : memref<8x2x96xbf16, #tpu.memory_space<vmem>>, vector<1x2x96xbf16>
    %222 = vector.shape_cast %221 : vector<1x2x96xbf16> to vector<2x96xbf16>
    %223 = vector.broadcast %179 : i32 to vector<2x1xi32>
    %224 = arith.cmpi slt, %223, %3 : vector<2x1xi32>
    %225 = arith.truncf %176 : vector<2x32xf32> to vector<2x32xbf16>
    %cst_53 = arith.constant dense<0.000000e+00> : vector<2x96xf32>
    %226 = tpu.matmul %225, %5, %cst_53 {dimension_numbers = #tpu.dot_dimension_numbers<[1], [0], [0], [1], [0, 0, 1, 1], [], []>} : vector<2x32xbf16>, vector<32x96xbf16>, vector<2x96xf32> -> vector<2x96xf32>
    %227 = vector.broadcast %7 : vector<1x96xf32> to vector<2x96xf32>
    %228 = arith.addf %226, %227 : vector<2x96xf32>
    %229 = arith.extf %222 : vector<2x96xbf16> to vector<2x96xf32>
    %230 = vector.extract_strided_slice %229 {offsets = [0, 0], sizes = [2, 32], strides = [1, 1]} : vector<2x96xf32> to vector<2x32xf32>
    %231 = vector.extract_strided_slice %228 {offsets = [0, 0], sizes = [2, 32], strides = [1, 1]} : vector<2x96xf32> to vector<2x32xf32>
    %232 = arith.addf %230, %231 : vector<2x32xf32>
    %233 = arith.negf %232 : vector<2x32xf32>
    %234 = math.exp %233 : vector<2x32xf32>
    %cst_54 = arith.constant 1.000000e+00 : f32
    %235 = vector.broadcast %cst_54 : f32 to vector<2x32xf32>
    %236 = arith.addf %235, %234 : vector<2x32xf32>
    %237 = arith.divf %235, %236 : vector<2x32xf32>
    %238 = vector.extract_strided_slice %229 {offsets = [0, 32], sizes = [2, 32], strides = [1, 1]} : vector<2x96xf32> to vector<2x32xf32>
    %239 = vector.extract_strided_slice %228 {offsets = [0, 32], sizes = [2, 32], strides = [1, 1]} : vector<2x96xf32> to vector<2x32xf32>
    %240 = arith.addf %238, %239 : vector<2x32xf32>
    %241 = arith.negf %240 : vector<2x32xf32>
    %242 = math.exp %241 : vector<2x32xf32>
    %cst_55 = arith.constant 1.000000e+00 : f32
    %243 = vector.broadcast %cst_55 : f32 to vector<2x32xf32>
    %244 = arith.addf %243, %242 : vector<2x32xf32>
    %245 = arith.divf %243, %244 : vector<2x32xf32>
    %246 = vector.extract_strided_slice %229 {offsets = [0, 64], sizes = [2, 32], strides = [1, 1]} : vector<2x96xf32> to vector<2x32xf32>
    %247 = vector.extract_strided_slice %228 {offsets = [0, 64], sizes = [2, 32], strides = [1, 1]} : vector<2x96xf32> to vector<2x32xf32>
    %248 = arith.mulf %237, %247 : vector<2x32xf32>
    %249 = arith.addf %246, %248 : vector<2x32xf32>
    %250 = math.tanh %249 : vector<2x32xf32>
    %cst_56 = arith.constant 1.000000e+00 : f32
    %251 = vector.broadcast %cst_56 : f32 to vector<2x32xf32>
    %252 = arith.subf %251, %245 : vector<2x32xf32>
    %253 = arith.mulf %252, %250 : vector<2x32xf32>
    %254 = arith.mulf %245, %176 : vector<2x32xf32>
    %255 = arith.addf %253, %254 : vector<2x32xf32>
    %256 = vector.shape_cast %224 : vector<2x1xi1> to vector<2x1xi1>
    %257 = vector.broadcast %256 : vector<2x1xi1> to vector<2x32xi1>
    %258 = arith.select %257, %255, %176 : vector<2x32xi1>, vector<2x32xf32>
    %c3_i32 = arith.constant 3 : i32
    %259 = arith.addi %8, %c3_i32 : i32
    %c7_i32_57 = arith.constant 7 : i32
    %260 = arith.subi %c7_i32_57, %c3_i32 : i32
    %261 = arith.addi %10, %260 : i32
    %262 = arith.index_cast %c3_i32 : i32 to index
    %c0_58 = arith.constant 0 : index
    %c0_59 = arith.constant 0 : index
    %263 = vector.load %arg2[%262, %c0_58, %c0_59] : memref<8x2x96xbf16, #tpu.memory_space<vmem>>, vector<1x2x96xbf16>
    %264 = vector.shape_cast %263 : vector<1x2x96xbf16> to vector<2x96xbf16>
    %265 = vector.broadcast %259 : i32 to vector<2x1xi32>
    %266 = arith.cmpi slt, %265, %3 : vector<2x1xi32>
    %267 = arith.truncf %218 : vector<2x32xf32> to vector<2x32xbf16>
    %cst_60 = arith.constant dense<0.000000e+00> : vector<2x96xf32>
    %268 = tpu.matmul %267, %4, %cst_60 {dimension_numbers = #tpu.dot_dimension_numbers<[1], [0], [0], [1], [0, 0, 1, 1], [], []>} : vector<2x32xbf16>, vector<32x96xbf16>, vector<2x96xf32> -> vector<2x96xf32>
    %269 = vector.broadcast %6 : vector<1x96xf32> to vector<2x96xf32>
    %270 = arith.addf %268, %269 : vector<2x96xf32>
    %271 = arith.extf %264 : vector<2x96xbf16> to vector<2x96xf32>
    %272 = vector.extract_strided_slice %271 {offsets = [0, 0], sizes = [2, 32], strides = [1, 1]} : vector<2x96xf32> to vector<2x32xf32>
    %273 = vector.extract_strided_slice %270 {offsets = [0, 0], sizes = [2, 32], strides = [1, 1]} : vector<2x96xf32> to vector<2x32xf32>
    %274 = arith.addf %272, %273 : vector<2x32xf32>
    %275 = arith.negf %274 : vector<2x32xf32>
    %276 = math.exp %275 : vector<2x32xf32>
    %cst_61 = arith.constant 1.000000e+00 : f32
    %277 = vector.broadcast %cst_61 : f32 to vector<2x32xf32>
    %278 = arith.addf %277, %276 : vector<2x32xf32>
    %279 = arith.divf %277, %278 : vector<2x32xf32>
    %280 = vector.extract_strided_slice %271 {offsets = [0, 32], sizes = [2, 32], strides = [1, 1]} : vector<2x96xf32> to vector<2x32xf32>
    %281 = vector.extract_strided_slice %270 {offsets = [0, 32], sizes = [2, 32], strides = [1, 1]} : vector<2x96xf32> to vector<2x32xf32>
    %282 = arith.addf %280, %281 : vector<2x32xf32>
    %283 = arith.negf %282 : vector<2x32xf32>
    %284 = math.exp %283 : vector<2x32xf32>
    %cst_62 = arith.constant 1.000000e+00 : f32
    %285 = vector.broadcast %cst_62 : f32 to vector<2x32xf32>
    %286 = arith.addf %285, %284 : vector<2x32xf32>
    %287 = arith.divf %285, %286 : vector<2x32xf32>
    %288 = vector.extract_strided_slice %271 {offsets = [0, 64], sizes = [2, 32], strides = [1, 1]} : vector<2x96xf32> to vector<2x32xf32>
    %289 = vector.extract_strided_slice %270 {offsets = [0, 64], sizes = [2, 32], strides = [1, 1]} : vector<2x96xf32> to vector<2x32xf32>
    %290 = arith.mulf %279, %289 : vector<2x32xf32>
    %291 = arith.addf %288, %290 : vector<2x32xf32>
    %292 = math.tanh %291 : vector<2x32xf32>
    %cst_63 = arith.constant 1.000000e+00 : f32
    %293 = vector.broadcast %cst_63 : f32 to vector<2x32xf32>
    %294 = arith.subf %293, %287 : vector<2x32xf32>
    %295 = arith.mulf %294, %292 : vector<2x32xf32>
    %296 = arith.mulf %287, %218 : vector<2x32xf32>
    %297 = arith.addf %295, %296 : vector<2x32xf32>
    %298 = vector.shape_cast %266 : vector<2x1xi1> to vector<2x1xi1>
    %299 = vector.broadcast %298 : vector<2x1xi1> to vector<2x32xi1>
    %300 = arith.select %299, %297, %218 : vector<2x32xi1>, vector<2x32xf32>
    %c7_i32_64 = arith.constant 7 : i32
    %301 = arith.subi %c7_i32_64, %c3_i32 : i32
    %302 = arith.index_cast %301 : i32 to index
    %c0_65 = arith.constant 0 : index
    %c0_66 = arith.constant 0 : index
    %303 = vector.load %arg3[%302, %c0_65, %c0_66] : memref<8x2x96xbf16, #tpu.memory_space<vmem>>, vector<1x2x96xbf16>
    %304 = vector.shape_cast %303 : vector<1x2x96xbf16> to vector<2x96xbf16>
    %305 = vector.broadcast %261 : i32 to vector<2x1xi32>
    %306 = arith.cmpi slt, %305, %3 : vector<2x1xi32>
    %307 = arith.truncf %258 : vector<2x32xf32> to vector<2x32xbf16>
    %cst_67 = arith.constant dense<0.000000e+00> : vector<2x96xf32>
    %308 = tpu.matmul %307, %5, %cst_67 {dimension_numbers = #tpu.dot_dimension_numbers<[1], [0], [0], [1], [0, 0, 1, 1], [], []>} : vector<2x32xbf16>, vector<32x96xbf16>, vector<2x96xf32> -> vector<2x96xf32>
    %309 = vector.broadcast %7 : vector<1x96xf32> to vector<2x96xf32>
    %310 = arith.addf %308, %309 : vector<2x96xf32>
    %311 = arith.extf %304 : vector<2x96xbf16> to vector<2x96xf32>
    %312 = vector.extract_strided_slice %311 {offsets = [0, 0], sizes = [2, 32], strides = [1, 1]} : vector<2x96xf32> to vector<2x32xf32>
    %313 = vector.extract_strided_slice %310 {offsets = [0, 0], sizes = [2, 32], strides = [1, 1]} : vector<2x96xf32> to vector<2x32xf32>
    %314 = arith.addf %312, %313 : vector<2x32xf32>
    %315 = arith.negf %314 : vector<2x32xf32>
    %316 = math.exp %315 : vector<2x32xf32>
    %cst_68 = arith.constant 1.000000e+00 : f32
    %317 = vector.broadcast %cst_68 : f32 to vector<2x32xf32>
    %318 = arith.addf %317, %316 : vector<2x32xf32>
    %319 = arith.divf %317, %318 : vector<2x32xf32>
    %320 = vector.extract_strided_slice %311 {offsets = [0, 32], sizes = [2, 32], strides = [1, 1]} : vector<2x96xf32> to vector<2x32xf32>
    %321 = vector.extract_strided_slice %310 {offsets = [0, 32], sizes = [2, 32], strides = [1, 1]} : vector<2x96xf32> to vector<2x32xf32>
    %322 = arith.addf %320, %321 : vector<2x32xf32>
    %323 = arith.negf %322 : vector<2x32xf32>
    %324 = math.exp %323 : vector<2x32xf32>
    %cst_69 = arith.constant 1.000000e+00 : f32
    %325 = vector.broadcast %cst_69 : f32 to vector<2x32xf32>
    %326 = arith.addf %325, %324 : vector<2x32xf32>
    %327 = arith.divf %325, %326 : vector<2x32xf32>
    %328 = vector.extract_strided_slice %311 {offsets = [0, 64], sizes = [2, 32], strides = [1, 1]} : vector<2x96xf32> to vector<2x32xf32>
    %329 = vector.extract_strided_slice %310 {offsets = [0, 64], sizes = [2, 32], strides = [1, 1]} : vector<2x96xf32> to vector<2x32xf32>
    %330 = arith.mulf %319, %329 : vector<2x32xf32>
    %331 = arith.addf %328, %330 : vector<2x32xf32>
    %332 = math.tanh %331 : vector<2x32xf32>
    %cst_70 = arith.constant 1.000000e+00 : f32
    %333 = vector.broadcast %cst_70 : f32 to vector<2x32xf32>
    %334 = arith.subf %333, %327 : vector<2x32xf32>
    %335 = arith.mulf %334, %332 : vector<2x32xf32>
    %336 = arith.mulf %327, %258 : vector<2x32xf32>
    %337 = arith.addf %335, %336 : vector<2x32xf32>
    %338 = vector.shape_cast %306 : vector<2x1xi1> to vector<2x1xi1>
    %339 = vector.broadcast %338 : vector<2x1xi1> to vector<2x32xi1>
    %340 = arith.select %339, %337, %258 : vector<2x32xi1>, vector<2x32xf32>
    %c4_i32 = arith.constant 4 : i32
    %341 = arith.addi %8, %c4_i32 : i32
    %c7_i32_71 = arith.constant 7 : i32
    %342 = arith.subi %c7_i32_71, %c4_i32 : i32
    %343 = arith.addi %10, %342 : i32
    %344 = arith.index_cast %c4_i32 : i32 to index
    %c0_72 = arith.constant 0 : index
    %c0_73 = arith.constant 0 : index
    %345 = vector.load %arg2[%344, %c0_72, %c0_73] : memref<8x2x96xbf16, #tpu.memory_space<vmem>>, vector<1x2x96xbf16>
    %346 = vector.shape_cast %345 : vector<1x2x96xbf16> to vector<2x96xbf16>
    %347 = vector.broadcast %341 : i32 to vector<2x1xi32>
    %348 = arith.cmpi slt, %347, %3 : vector<2x1xi32>
    %349 = arith.truncf %300 : vector<2x32xf32> to vector<2x32xbf16>
    %cst_74 = arith.constant dense<0.000000e+00> : vector<2x96xf32>
    %350 = tpu.matmul %349, %4, %cst_74 {dimension_numbers = #tpu.dot_dimension_numbers<[1], [0], [0], [1], [0, 0, 1, 1], [], []>} : vector<2x32xbf16>, vector<32x96xbf16>, vector<2x96xf32> -> vector<2x96xf32>
    %351 = vector.broadcast %6 : vector<1x96xf32> to vector<2x96xf32>
    %352 = arith.addf %350, %351 : vector<2x96xf32>
    %353 = arith.extf %346 : vector<2x96xbf16> to vector<2x96xf32>
    %354 = vector.extract_strided_slice %353 {offsets = [0, 0], sizes = [2, 32], strides = [1, 1]} : vector<2x96xf32> to vector<2x32xf32>
    %355 = vector.extract_strided_slice %352 {offsets = [0, 0], sizes = [2, 32], strides = [1, 1]} : vector<2x96xf32> to vector<2x32xf32>
    %356 = arith.addf %354, %355 : vector<2x32xf32>
    %357 = arith.negf %356 : vector<2x32xf32>
    %358 = math.exp %357 : vector<2x32xf32>
    %cst_75 = arith.constant 1.000000e+00 : f32
    %359 = vector.broadcast %cst_75 : f32 to vector<2x32xf32>
    %360 = arith.addf %359, %358 : vector<2x32xf32>
    %361 = arith.divf %359, %360 : vector<2x32xf32>
    %362 = vector.extract_strided_slice %353 {offsets = [0, 32], sizes = [2, 32], strides = [1, 1]} : vector<2x96xf32> to vector<2x32xf32>
    %363 = vector.extract_strided_slice %352 {offsets = [0, 32], sizes = [2, 32], strides = [1, 1]} : vector<2x96xf32> to vector<2x32xf32>
    %364 = arith.addf %362, %363 : vector<2x32xf32>
    %365 = arith.negf %364 : vector<2x32xf32>
    %366 = math.exp %365 : vector<2x32xf32>
    %cst_76 = arith.constant 1.000000e+00 : f32
    %367 = vector.broadcast %cst_76 : f32 to vector<2x32xf32>
    %368 = arith.addf %367, %366 : vector<2x32xf32>
    %369 = arith.divf %367, %368 : vector<2x32xf32>
    %370 = vector.extract_strided_slice %353 {offsets = [0, 64], sizes = [2, 32], strides = [1, 1]} : vector<2x96xf32> to vector<2x32xf32>
    %371 = vector.extract_strided_slice %352 {offsets = [0, 64], sizes = [2, 32], strides = [1, 1]} : vector<2x96xf32> to vector<2x32xf32>
    %372 = arith.mulf %361, %371 : vector<2x32xf32>
    %373 = arith.addf %370, %372 : vector<2x32xf32>
    %374 = math.tanh %373 : vector<2x32xf32>
    %cst_77 = arith.constant 1.000000e+00 : f32
    %375 = vector.broadcast %cst_77 : f32 to vector<2x32xf32>
    %376 = arith.subf %375, %369 : vector<2x32xf32>
    %377 = arith.mulf %376, %374 : vector<2x32xf32>
    %378 = arith.mulf %369, %300 : vector<2x32xf32>
    %379 = arith.addf %377, %378 : vector<2x32xf32>
    %380 = vector.shape_cast %348 : vector<2x1xi1> to vector<2x1xi1>
    %381 = vector.broadcast %380 : vector<2x1xi1> to vector<2x32xi1>
    %382 = arith.select %381, %379, %300 : vector<2x32xi1>, vector<2x32xf32>
    %c7_i32_78 = arith.constant 7 : i32
    %383 = arith.subi %c7_i32_78, %c4_i32 : i32
    %384 = arith.index_cast %383 : i32 to index
    %c0_79 = arith.constant 0 : index
    %c0_80 = arith.constant 0 : index
    %385 = vector.load %arg3[%384, %c0_79, %c0_80] : memref<8x2x96xbf16, #tpu.memory_space<vmem>>, vector<1x2x96xbf16>
    %386 = vector.shape_cast %385 : vector<1x2x96xbf16> to vector<2x96xbf16>
    %387 = vector.broadcast %343 : i32 to vector<2x1xi32>
    %388 = arith.cmpi slt, %387, %3 : vector<2x1xi32>
    %389 = arith.truncf %340 : vector<2x32xf32> to vector<2x32xbf16>
    %cst_81 = arith.constant dense<0.000000e+00> : vector<2x96xf32>
    %390 = tpu.matmul %389, %5, %cst_81 {dimension_numbers = #tpu.dot_dimension_numbers<[1], [0], [0], [1], [0, 0, 1, 1], [], []>} : vector<2x32xbf16>, vector<32x96xbf16>, vector<2x96xf32> -> vector<2x96xf32>
    %391 = vector.broadcast %7 : vector<1x96xf32> to vector<2x96xf32>
    %392 = arith.addf %390, %391 : vector<2x96xf32>
    %393 = arith.extf %386 : vector<2x96xbf16> to vector<2x96xf32>
    %394 = vector.extract_strided_slice %393 {offsets = [0, 0], sizes = [2, 32], strides = [1, 1]} : vector<2x96xf32> to vector<2x32xf32>
    %395 = vector.extract_strided_slice %392 {offsets = [0, 0], sizes = [2, 32], strides = [1, 1]} : vector<2x96xf32> to vector<2x32xf32>
    %396 = arith.addf %394, %395 : vector<2x32xf32>
    %397 = arith.negf %396 : vector<2x32xf32>
    %398 = math.exp %397 : vector<2x32xf32>
    %cst_82 = arith.constant 1.000000e+00 : f32
    %399 = vector.broadcast %cst_82 : f32 to vector<2x32xf32>
    %400 = arith.addf %399, %398 : vector<2x32xf32>
    %401 = arith.divf %399, %400 : vector<2x32xf32>
    %402 = vector.extract_strided_slice %393 {offsets = [0, 32], sizes = [2, 32], strides = [1, 1]} : vector<2x96xf32> to vector<2x32xf32>
    %403 = vector.extract_strided_slice %392 {offsets = [0, 32], sizes = [2, 32], strides = [1, 1]} : vector<2x96xf32> to vector<2x32xf32>
    %404 = arith.addf %402, %403 : vector<2x32xf32>
    %405 = arith.negf %404 : vector<2x32xf32>
    %406 = math.exp %405 : vector<2x32xf32>
    %cst_83 = arith.constant 1.000000e+00 : f32
    %407 = vector.broadcast %cst_83 : f32 to vector<2x32xf32>
    %408 = arith.addf %407, %406 : vector<2x32xf32>
    %409 = arith.divf %407, %408 : vector<2x32xf32>
    %410 = vector.extract_strided_slice %393 {offsets = [0, 64], sizes = [2, 32], strides = [1, 1]} : vector<2x96xf32> to vector<2x32xf32>
    %411 = vector.extract_strided_slice %392 {offsets = [0, 64], sizes = [2, 32], strides = [1, 1]} : vector<2x96xf32> to vector<2x32xf32>
    %412 = arith.mulf %401, %411 : vector<2x32xf32>
    %413 = arith.addf %410, %412 : vector<2x32xf32>
    %414 = math.tanh %413 : vector<2x32xf32>
    %cst_84 = arith.constant 1.000000e+00 : f32
    %415 = vector.broadcast %cst_84 : f32 to vector<2x32xf32>
    %416 = arith.subf %415, %409 : vector<2x32xf32>
    %417 = arith.mulf %416, %414 : vector<2x32xf32>
    %418 = arith.mulf %409, %340 : vector<2x32xf32>
    %419 = arith.addf %417, %418 : vector<2x32xf32>
    %420 = vector.shape_cast %388 : vector<2x1xi1> to vector<2x1xi1>
    %421 = vector.broadcast %420 : vector<2x1xi1> to vector<2x32xi1>
    %422 = arith.select %421, %419, %340 : vector<2x32xi1>, vector<2x32xf32>
    %c5_i32 = arith.constant 5 : i32
    %423 = arith.addi %8, %c5_i32 : i32
    %c7_i32_85 = arith.constant 7 : i32
    %424 = arith.subi %c7_i32_85, %c5_i32 : i32
    %425 = arith.addi %10, %424 : i32
    %426 = arith.index_cast %c5_i32 : i32 to index
    %c0_86 = arith.constant 0 : index
    %c0_87 = arith.constant 0 : index
    %427 = vector.load %arg2[%426, %c0_86, %c0_87] : memref<8x2x96xbf16, #tpu.memory_space<vmem>>, vector<1x2x96xbf16>
    %428 = vector.shape_cast %427 : vector<1x2x96xbf16> to vector<2x96xbf16>
    %429 = vector.broadcast %423 : i32 to vector<2x1xi32>
    %430 = arith.cmpi slt, %429, %3 : vector<2x1xi32>
    %431 = arith.truncf %382 : vector<2x32xf32> to vector<2x32xbf16>
    %cst_88 = arith.constant dense<0.000000e+00> : vector<2x96xf32>
    %432 = tpu.matmul %431, %4, %cst_88 {dimension_numbers = #tpu.dot_dimension_numbers<[1], [0], [0], [1], [0, 0, 1, 1], [], []>} : vector<2x32xbf16>, vector<32x96xbf16>, vector<2x96xf32> -> vector<2x96xf32>
    %433 = vector.broadcast %6 : vector<1x96xf32> to vector<2x96xf32>
    %434 = arith.addf %432, %433 : vector<2x96xf32>
    %435 = arith.extf %428 : vector<2x96xbf16> to vector<2x96xf32>
    %436 = vector.extract_strided_slice %435 {offsets = [0, 0], sizes = [2, 32], strides = [1, 1]} : vector<2x96xf32> to vector<2x32xf32>
    %437 = vector.extract_strided_slice %434 {offsets = [0, 0], sizes = [2, 32], strides = [1, 1]} : vector<2x96xf32> to vector<2x32xf32>
    %438 = arith.addf %436, %437 : vector<2x32xf32>
    %439 = arith.negf %438 : vector<2x32xf32>
    %440 = math.exp %439 : vector<2x32xf32>
    %cst_89 = arith.constant 1.000000e+00 : f32
    %441 = vector.broadcast %cst_89 : f32 to vector<2x32xf32>
    %442 = arith.addf %441, %440 : vector<2x32xf32>
    %443 = arith.divf %441, %442 : vector<2x32xf32>
    %444 = vector.extract_strided_slice %435 {offsets = [0, 32], sizes = [2, 32], strides = [1, 1]} : vector<2x96xf32> to vector<2x32xf32>
    %445 = vector.extract_strided_slice %434 {offsets = [0, 32], sizes = [2, 32], strides = [1, 1]} : vector<2x96xf32> to vector<2x32xf32>
    %446 = arith.addf %444, %445 : vector<2x32xf32>
    %447 = arith.negf %446 : vector<2x32xf32>
    %448 = math.exp %447 : vector<2x32xf32>
    %cst_90 = arith.constant 1.000000e+00 : f32
    %449 = vector.broadcast %cst_90 : f32 to vector<2x32xf32>
    %450 = arith.addf %449, %448 : vector<2x32xf32>
    %451 = arith.divf %449, %450 : vector<2x32xf32>
    %452 = vector.extract_strided_slice %435 {offsets = [0, 64], sizes = [2, 32], strides = [1, 1]} : vector<2x96xf32> to vector<2x32xf32>
    %453 = vector.extract_strided_slice %434 {offsets = [0, 64], sizes = [2, 32], strides = [1, 1]} : vector<2x96xf32> to vector<2x32xf32>
    %454 = arith.mulf %443, %453 : vector<2x32xf32>
    %455 = arith.addf %452, %454 : vector<2x32xf32>
    %456 = math.tanh %455 : vector<2x32xf32>
    %cst_91 = arith.constant 1.000000e+00 : f32
    %457 = vector.broadcast %cst_91 : f32 to vector<2x32xf32>
    %458 = arith.subf %457, %451 : vector<2x32xf32>
    %459 = arith.mulf %458, %456 : vector<2x32xf32>
    %460 = arith.mulf %451, %382 : vector<2x32xf32>
    %461 = arith.addf %459, %460 : vector<2x32xf32>
    %462 = vector.shape_cast %430 : vector<2x1xi1> to vector<2x1xi1>
    %463 = vector.broadcast %462 : vector<2x1xi1> to vector<2x32xi1>
    %464 = arith.select %463, %461, %382 : vector<2x32xi1>, vector<2x32xf32>
    %c7_i32_92 = arith.constant 7 : i32
    %465 = arith.subi %c7_i32_92, %c5_i32 : i32
    %466 = arith.index_cast %465 : i32 to index
    %c0_93 = arith.constant 0 : index
    %c0_94 = arith.constant 0 : index
    %467 = vector.load %arg3[%466, %c0_93, %c0_94] : memref<8x2x96xbf16, #tpu.memory_space<vmem>>, vector<1x2x96xbf16>
    %468 = vector.shape_cast %467 : vector<1x2x96xbf16> to vector<2x96xbf16>
    %469 = vector.broadcast %425 : i32 to vector<2x1xi32>
    %470 = arith.cmpi slt, %469, %3 : vector<2x1xi32>
    %471 = arith.truncf %422 : vector<2x32xf32> to vector<2x32xbf16>
    %cst_95 = arith.constant dense<0.000000e+00> : vector<2x96xf32>
    %472 = tpu.matmul %471, %5, %cst_95 {dimension_numbers = #tpu.dot_dimension_numbers<[1], [0], [0], [1], [0, 0, 1, 1], [], []>} : vector<2x32xbf16>, vector<32x96xbf16>, vector<2x96xf32> -> vector<2x96xf32>
    %473 = vector.broadcast %7 : vector<1x96xf32> to vector<2x96xf32>
    %474 = arith.addf %472, %473 : vector<2x96xf32>
    %475 = arith.extf %468 : vector<2x96xbf16> to vector<2x96xf32>
    %476 = vector.extract_strided_slice %475 {offsets = [0, 0], sizes = [2, 32], strides = [1, 1]} : vector<2x96xf32> to vector<2x32xf32>
    %477 = vector.extract_strided_slice %474 {offsets = [0, 0], sizes = [2, 32], strides = [1, 1]} : vector<2x96xf32> to vector<2x32xf32>
    %478 = arith.addf %476, %477 : vector<2x32xf32>
    %479 = arith.negf %478 : vector<2x32xf32>
    %480 = math.exp %479 : vector<2x32xf32>
    %cst_96 = arith.constant 1.000000e+00 : f32
    %481 = vector.broadcast %cst_96 : f32 to vector<2x32xf32>
    %482 = arith.addf %481, %480 : vector<2x32xf32>
    %483 = arith.divf %481, %482 : vector<2x32xf32>
    %484 = vector.extract_strided_slice %475 {offsets = [0, 32], sizes = [2, 32], strides = [1, 1]} : vector<2x96xf32> to vector<2x32xf32>
    %485 = vector.extract_strided_slice %474 {offsets = [0, 32], sizes = [2, 32], strides = [1, 1]} : vector<2x96xf32> to vector<2x32xf32>
    %486 = arith.addf %484, %485 : vector<2x32xf32>
    %487 = arith.negf %486 : vector<2x32xf32>
    %488 = math.exp %487 : vector<2x32xf32>
    %cst_97 = arith.constant 1.000000e+00 : f32
    %489 = vector.broadcast %cst_97 : f32 to vector<2x32xf32>
    %490 = arith.addf %489, %488 : vector<2x32xf32>
    %491 = arith.divf %489, %490 : vector<2x32xf32>
    %492 = vector.extract_strided_slice %475 {offsets = [0, 64], sizes = [2, 32], strides = [1, 1]} : vector<2x96xf32> to vector<2x32xf32>
    %493 = vector.extract_strided_slice %474 {offsets = [0, 64], sizes = [2, 32], strides = [1, 1]} : vector<2x96xf32> to vector<2x32xf32>
    %494 = arith.mulf %483, %493 : vector<2x32xf32>
    %495 = arith.addf %492, %494 : vector<2x32xf32>
    %496 = math.tanh %495 : vector<2x32xf32>
    %cst_98 = arith.constant 1.000000e+00 : f32
    %497 = vector.broadcast %cst_98 : f32 to vector<2x32xf32>
    %498 = arith.subf %497, %491 : vector<2x32xf32>
    %499 = arith.mulf %498, %496 : vector<2x32xf32>
    %500 = arith.mulf %491, %422 : vector<2x32xf32>
    %501 = arith.addf %499, %500 : vector<2x32xf32>
    %502 = vector.shape_cast %470 : vector<2x1xi1> to vector<2x1xi1>
    %503 = vector.broadcast %502 : vector<2x1xi1> to vector<2x32xi1>
    %504 = arith.select %503, %501, %422 : vector<2x32xi1>, vector<2x32xf32>
    %c6_i32 = arith.constant 6 : i32
    %505 = arith.addi %8, %c6_i32 : i32
    %c7_i32_99 = arith.constant 7 : i32
    %506 = arith.subi %c7_i32_99, %c6_i32 : i32
    %507 = arith.addi %10, %506 : i32
    %508 = arith.index_cast %c6_i32 : i32 to index
    %c0_100 = arith.constant 0 : index
    %c0_101 = arith.constant 0 : index
    %509 = vector.load %arg2[%508, %c0_100, %c0_101] : memref<8x2x96xbf16, #tpu.memory_space<vmem>>, vector<1x2x96xbf16>
    %510 = vector.shape_cast %509 : vector<1x2x96xbf16> to vector<2x96xbf16>
    %511 = vector.broadcast %505 : i32 to vector<2x1xi32>
    %512 = arith.cmpi slt, %511, %3 : vector<2x1xi32>
    %513 = arith.truncf %464 : vector<2x32xf32> to vector<2x32xbf16>
    %cst_102 = arith.constant dense<0.000000e+00> : vector<2x96xf32>
    %514 = tpu.matmul %513, %4, %cst_102 {dimension_numbers = #tpu.dot_dimension_numbers<[1], [0], [0], [1], [0, 0, 1, 1], [], []>} : vector<2x32xbf16>, vector<32x96xbf16>, vector<2x96xf32> -> vector<2x96xf32>
    %515 = vector.broadcast %6 : vector<1x96xf32> to vector<2x96xf32>
    %516 = arith.addf %514, %515 : vector<2x96xf32>
    %517 = arith.extf %510 : vector<2x96xbf16> to vector<2x96xf32>
    %518 = vector.extract_strided_slice %517 {offsets = [0, 0], sizes = [2, 32], strides = [1, 1]} : vector<2x96xf32> to vector<2x32xf32>
    %519 = vector.extract_strided_slice %516 {offsets = [0, 0], sizes = [2, 32], strides = [1, 1]} : vector<2x96xf32> to vector<2x32xf32>
    %520 = arith.addf %518, %519 : vector<2x32xf32>
    %521 = arith.negf %520 : vector<2x32xf32>
    %522 = math.exp %521 : vector<2x32xf32>
    %cst_103 = arith.constant 1.000000e+00 : f32
    %523 = vector.broadcast %cst_103 : f32 to vector<2x32xf32>
    %524 = arith.addf %523, %522 : vector<2x32xf32>
    %525 = arith.divf %523, %524 : vector<2x32xf32>
    %526 = vector.extract_strided_slice %517 {offsets = [0, 32], sizes = [2, 32], strides = [1, 1]} : vector<2x96xf32> to vector<2x32xf32>
    %527 = vector.extract_strided_slice %516 {offsets = [0, 32], sizes = [2, 32], strides = [1, 1]} : vector<2x96xf32> to vector<2x32xf32>
    %528 = arith.addf %526, %527 : vector<2x32xf32>
    %529 = arith.negf %528 : vector<2x32xf32>
    %530 = math.exp %529 : vector<2x32xf32>
    %cst_104 = arith.constant 1.000000e+00 : f32
    %531 = vector.broadcast %cst_104 : f32 to vector<2x32xf32>
    %532 = arith.addf %531, %530 : vector<2x32xf32>
    %533 = arith.divf %531, %532 : vector<2x32xf32>
    %534 = vector.extract_strided_slice %517 {offsets = [0, 64], sizes = [2, 32], strides = [1, 1]} : vector<2x96xf32> to vector<2x32xf32>
    %535 = vector.extract_strided_slice %516 {offsets = [0, 64], sizes = [2, 32], strides = [1, 1]} : vector<2x96xf32> to vector<2x32xf32>
    %536 = arith.mulf %525, %535 : vector<2x32xf32>
    %537 = arith.addf %534, %536 : vector<2x32xf32>
    %538 = math.tanh %537 : vector<2x32xf32>
    %cst_105 = arith.constant 1.000000e+00 : f32
    %539 = vector.broadcast %cst_105 : f32 to vector<2x32xf32>
    %540 = arith.subf %539, %533 : vector<2x32xf32>
    %541 = arith.mulf %540, %538 : vector<2x32xf32>
    %542 = arith.mulf %533, %464 : vector<2x32xf32>
    %543 = arith.addf %541, %542 : vector<2x32xf32>
    %544 = vector.shape_cast %512 : vector<2x1xi1> to vector<2x1xi1>
    %545 = vector.broadcast %544 : vector<2x1xi1> to vector<2x32xi1>
    %546 = arith.select %545, %543, %464 : vector<2x32xi1>, vector<2x32xf32>
    %c7_i32_106 = arith.constant 7 : i32
    %547 = arith.subi %c7_i32_106, %c6_i32 : i32
    %548 = arith.index_cast %547 : i32 to index
    %c0_107 = arith.constant 0 : index
    %c0_108 = arith.constant 0 : index
    %549 = vector.load %arg3[%548, %c0_107, %c0_108] : memref<8x2x96xbf16, #tpu.memory_space<vmem>>, vector<1x2x96xbf16>
    %550 = vector.shape_cast %549 : vector<1x2x96xbf16> to vector<2x96xbf16>
    %551 = vector.broadcast %507 : i32 to vector<2x1xi32>
    %552 = arith.cmpi slt, %551, %3 : vector<2x1xi32>
    %553 = arith.truncf %504 : vector<2x32xf32> to vector<2x32xbf16>
    %cst_109 = arith.constant dense<0.000000e+00> : vector<2x96xf32>
    %554 = tpu.matmul %553, %5, %cst_109 {dimension_numbers = #tpu.dot_dimension_numbers<[1], [0], [0], [1], [0, 0, 1, 1], [], []>} : vector<2x32xbf16>, vector<32x96xbf16>, vector<2x96xf32> -> vector<2x96xf32>
    %555 = vector.broadcast %7 : vector<1x96xf32> to vector<2x96xf32>
    %556 = arith.addf %554, %555 : vector<2x96xf32>
    %557 = arith.extf %550 : vector<2x96xbf16> to vector<2x96xf32>
    %558 = vector.extract_strided_slice %557 {offsets = [0, 0], sizes = [2, 32], strides = [1, 1]} : vector<2x96xf32> to vector<2x32xf32>
    %559 = vector.extract_strided_slice %556 {offsets = [0, 0], sizes = [2, 32], strides = [1, 1]} : vector<2x96xf32> to vector<2x32xf32>
    %560 = arith.addf %558, %559 : vector<2x32xf32>
    %561 = arith.negf %560 : vector<2x32xf32>
    %562 = math.exp %561 : vector<2x32xf32>
    %cst_110 = arith.constant 1.000000e+00 : f32
    %563 = vector.broadcast %cst_110 : f32 to vector<2x32xf32>
    %564 = arith.addf %563, %562 : vector<2x32xf32>
    %565 = arith.divf %563, %564 : vector<2x32xf32>
    %566 = vector.extract_strided_slice %557 {offsets = [0, 32], sizes = [2, 32], strides = [1, 1]} : vector<2x96xf32> to vector<2x32xf32>
    %567 = vector.extract_strided_slice %556 {offsets = [0, 32], sizes = [2, 32], strides = [1, 1]} : vector<2x96xf32> to vector<2x32xf32>
    %568 = arith.addf %566, %567 : vector<2x32xf32>
    %569 = arith.negf %568 : vector<2x32xf32>
    %570 = math.exp %569 : vector<2x32xf32>
    %cst_111 = arith.constant 1.000000e+00 : f32
    %571 = vector.broadcast %cst_111 : f32 to vector<2x32xf32>
    %572 = arith.addf %571, %570 : vector<2x32xf32>
    %573 = arith.divf %571, %572 : vector<2x32xf32>
    %574 = vector.extract_strided_slice %557 {offsets = [0, 64], sizes = [2, 32], strides = [1, 1]} : vector<2x96xf32> to vector<2x32xf32>
    %575 = vector.extract_strided_slice %556 {offsets = [0, 64], sizes = [2, 32], strides = [1, 1]} : vector<2x96xf32> to vector<2x32xf32>
    %576 = arith.mulf %565, %575 : vector<2x32xf32>
    %577 = arith.addf %574, %576 : vector<2x32xf32>
    %578 = math.tanh %577 : vector<2x32xf32>
    %cst_112 = arith.constant 1.000000e+00 : f32
    %579 = vector.broadcast %cst_112 : f32 to vector<2x32xf32>
    %580 = arith.subf %579, %573 : vector<2x32xf32>
    %581 = arith.mulf %580, %578 : vector<2x32xf32>
    %582 = arith.mulf %573, %504 : vector<2x32xf32>
    %583 = arith.addf %581, %582 : vector<2x32xf32>
    %584 = vector.shape_cast %552 : vector<2x1xi1> to vector<2x1xi1>
    %585 = vector.broadcast %584 : vector<2x1xi1> to vector<2x32xi1>
    %586 = arith.select %585, %583, %504 : vector<2x32xi1>, vector<2x32xf32>
    %c7_i32_113 = arith.constant 7 : i32
    %587 = arith.addi %8, %c7_i32_113 : i32
    %c7_i32_114 = arith.constant 7 : i32
    %588 = arith.subi %c7_i32_114, %c7_i32_113 : i32
    %589 = arith.addi %10, %588 : i32
    %590 = arith.index_cast %c7_i32_113 : i32 to index
    %c0_115 = arith.constant 0 : index
    %c0_116 = arith.constant 0 : index
    %591 = vector.load %arg2[%590, %c0_115, %c0_116] : memref<8x2x96xbf16, #tpu.memory_space<vmem>>, vector<1x2x96xbf16>
    %592 = vector.shape_cast %591 : vector<1x2x96xbf16> to vector<2x96xbf16>
    %593 = vector.broadcast %587 : i32 to vector<2x1xi32>
    %594 = arith.cmpi slt, %593, %3 : vector<2x1xi32>
    %595 = arith.truncf %546 : vector<2x32xf32> to vector<2x32xbf16>
    %cst_117 = arith.constant dense<0.000000e+00> : vector<2x96xf32>
    %596 = tpu.matmul %595, %4, %cst_117 {dimension_numbers = #tpu.dot_dimension_numbers<[1], [0], [0], [1], [0, 0, 1, 1], [], []>} : vector<2x32xbf16>, vector<32x96xbf16>, vector<2x96xf32> -> vector<2x96xf32>
    %597 = vector.broadcast %6 : vector<1x96xf32> to vector<2x96xf32>
    %598 = arith.addf %596, %597 : vector<2x96xf32>
    %599 = arith.extf %592 : vector<2x96xbf16> to vector<2x96xf32>
    %600 = vector.extract_strided_slice %599 {offsets = [0, 0], sizes = [2, 32], strides = [1, 1]} : vector<2x96xf32> to vector<2x32xf32>
    %601 = vector.extract_strided_slice %598 {offsets = [0, 0], sizes = [2, 32], strides = [1, 1]} : vector<2x96xf32> to vector<2x32xf32>
    %602 = arith.addf %600, %601 : vector<2x32xf32>
    %603 = arith.negf %602 : vector<2x32xf32>
    %604 = math.exp %603 : vector<2x32xf32>
    %cst_118 = arith.constant 1.000000e+00 : f32
    %605 = vector.broadcast %cst_118 : f32 to vector<2x32xf32>
    %606 = arith.addf %605, %604 : vector<2x32xf32>
    %607 = arith.divf %605, %606 : vector<2x32xf32>
    %608 = vector.extract_strided_slice %599 {offsets = [0, 32], sizes = [2, 32], strides = [1, 1]} : vector<2x96xf32> to vector<2x32xf32>
    %609 = vector.extract_strided_slice %598 {offsets = [0, 32], sizes = [2, 32], strides = [1, 1]} : vector<2x96xf32> to vector<2x32xf32>
    %610 = arith.addf %608, %609 : vector<2x32xf32>
    %611 = arith.negf %610 : vector<2x32xf32>
    %612 = math.exp %611 : vector<2x32xf32>
    %cst_119 = arith.constant 1.000000e+00 : f32
    %613 = vector.broadcast %cst_119 : f32 to vector<2x32xf32>
    %614 = arith.addf %613, %612 : vector<2x32xf32>
    %615 = arith.divf %613, %614 : vector<2x32xf32>
    %616 = vector.extract_strided_slice %599 {offsets = [0, 64], sizes = [2, 32], strides = [1, 1]} : vector<2x96xf32> to vector<2x32xf32>
    %617 = vector.extract_strided_slice %598 {offsets = [0, 64], sizes = [2, 32], strides = [1, 1]} : vector<2x96xf32> to vector<2x32xf32>
    %618 = arith.mulf %607, %617 : vector<2x32xf32>
    %619 = arith.addf %616, %618 : vector<2x32xf32>
    %620 = math.tanh %619 : vector<2x32xf32>
    %cst_120 = arith.constant 1.000000e+00 : f32
    %621 = vector.broadcast %cst_120 : f32 to vector<2x32xf32>
    %622 = arith.subf %621, %615 : vector<2x32xf32>
    %623 = arith.mulf %622, %620 : vector<2x32xf32>
    %624 = arith.mulf %615, %546 : vector<2x32xf32>
    %625 = arith.addf %623, %624 : vector<2x32xf32>
    %626 = vector.shape_cast %594 : vector<2x1xi1> to vector<2x1xi1>
    %627 = vector.broadcast %626 : vector<2x1xi1> to vector<2x32xi1>
    %628 = arith.select %627, %625, %546 : vector<2x32xi1>, vector<2x32xf32>
    %c7_i32_121 = arith.constant 7 : i32
    %629 = arith.subi %c7_i32_121, %c7_i32_113 : i32
    %630 = arith.index_cast %629 : i32 to index
    %c0_122 = arith.constant 0 : index
    %c0_123 = arith.constant 0 : index
    %631 = vector.load %arg3[%630, %c0_122, %c0_123] : memref<8x2x96xbf16, #tpu.memory_space<vmem>>, vector<1x2x96xbf16>
    %632 = vector.shape_cast %631 : vector<1x2x96xbf16> to vector<2x96xbf16>
    %633 = vector.broadcast %589 : i32 to vector<2x1xi32>
    %634 = arith.cmpi slt, %633, %3 : vector<2x1xi32>
    %635 = arith.truncf %586 : vector<2x32xf32> to vector<2x32xbf16>
    %cst_124 = arith.constant dense<0.000000e+00> : vector<2x96xf32>
    %636 = tpu.matmul %635, %5, %cst_124 {dimension_numbers = #tpu.dot_dimension_numbers<[1], [0], [0], [1], [0, 0, 1, 1], [], []>} : vector<2x32xbf16>, vector<32x96xbf16>, vector<2x96xf32> -> vector<2x96xf32>
    %637 = vector.broadcast %7 : vector<1x96xf32> to vector<2x96xf32>
    %638 = arith.addf %636, %637 : vector<2x96xf32>
    %639 = arith.extf %632 : vector<2x96xbf16> to vector<2x96xf32>
    %640 = vector.extract_strided_slice %639 {offsets = [0, 0], sizes = [2, 32], strides = [1, 1]} : vector<2x96xf32> to vector<2x32xf32>
    %641 = vector.extract_strided_slice %638 {offsets = [0, 0], sizes = [2, 32], strides = [1, 1]} : vector<2x96xf32> to vector<2x32xf32>
    %642 = arith.addf %640, %641 : vector<2x32xf32>
    %643 = arith.negf %642 : vector<2x32xf32>
    %644 = math.exp %643 : vector<2x32xf32>
    %cst_125 = arith.constant 1.000000e+00 : f32
    %645 = vector.broadcast %cst_125 : f32 to vector<2x32xf32>
    %646 = arith.addf %645, %644 : vector<2x32xf32>
    %647 = arith.divf %645, %646 : vector<2x32xf32>
    %648 = vector.extract_strided_slice %639 {offsets = [0, 32], sizes = [2, 32], strides = [1, 1]} : vector<2x96xf32> to vector<2x32xf32>
    %649 = vector.extract_strided_slice %638 {offsets = [0, 32], sizes = [2, 32], strides = [1, 1]} : vector<2x96xf32> to vector<2x32xf32>
    %650 = arith.addf %648, %649 : vector<2x32xf32>
    %651 = arith.negf %650 : vector<2x32xf32>
    %652 = math.exp %651 : vector<2x32xf32>
    %cst_126 = arith.constant 1.000000e+00 : f32
    %653 = vector.broadcast %cst_126 : f32 to vector<2x32xf32>
    %654 = arith.addf %653, %652 : vector<2x32xf32>
    %655 = arith.divf %653, %654 : vector<2x32xf32>
    %656 = vector.extract_strided_slice %639 {offsets = [0, 64], sizes = [2, 32], strides = [1, 1]} : vector<2x96xf32> to vector<2x32xf32>
    %657 = vector.extract_strided_slice %638 {offsets = [0, 64], sizes = [2, 32], strides = [1, 1]} : vector<2x96xf32> to vector<2x32xf32>
    %658 = arith.mulf %647, %657 : vector<2x32xf32>
    %659 = arith.addf %656, %658 : vector<2x32xf32>
    %660 = math.tanh %659 : vector<2x32xf32>
    %cst_127 = arith.constant 1.000000e+00 : f32
    %661 = vector.broadcast %cst_127 : f32 to vector<2x32xf32>
    %662 = arith.subf %661, %655 : vector<2x32xf32>
    %663 = arith.mulf %662, %660 : vector<2x32xf32>
    %664 = arith.mulf %655, %586 : vector<2x32xf32>
    %665 = arith.addf %663, %664 : vector<2x32xf32>
    %666 = vector.shape_cast %634 : vector<2x1xi1> to vector<2x1xi1>
    %667 = vector.broadcast %666 : vector<2x1xi1> to vector<2x32xi1>
    %668 = arith.select %667, %665, %586 : vector<2x32xi1>, vector<2x32xf32>
    %c8_i32_128 = arith.constant 8 : i32
    %c0_129 = arith.constant 0 : index
    %c0_130 = arith.constant 0 : index
    %669 = vector.load %arg9[%c0_129, %c0_130] : memref<2x32xf32, #tpu.memory_space<vmem>>, vector<2x32xf32>
    tpu.vector_store %arg9[%c0_129, %c0_130], %628 {strides = array<i32>} : memref<2x32xf32, #tpu.memory_space<vmem>>, vector<2x32xf32>,
    %c0_131 = arith.constant 0 : index
    %c0_132 = arith.constant 0 : index
    %670 = vector.load %arg10[%c0_131, %c0_132] : memref<2x32xf32, #tpu.memory_space<vmem>>, vector<2x32xf32>
    tpu.vector_store %arg10[%c0_131, %c0_132], %668 {strides = array<i32>} : memref<2x32xf32, #tpu.memory_space<vmem>>, vector<2x32xf32>,
    return
  }
  func.func @transform_0(%arg0: i32) -> (i32, i32) {
    %c0_i32 = arith.constant 0 : i32
    %c0_i32_0 = arith.constant 0 : i32
    %c0_i32_1 = arith.constant 0 : i32
    return %c0_i32, %c0_i32_0 : i32, i32
  }
  func.func @transform_1(%arg0: i32) -> (i32, i32, i32) {
    %c0_i32 = arith.constant 0 : i32
    %c0_i32_0 = arith.constant 0 : i32
    %c0_i32_1 = arith.constant 0 : i32
    return %arg0, %c0_i32, %c0_i32_0 : i32, i32, i32
  }
  func.func @transform_2(%arg0: i32) -> (i32, i32, i32) {
    %c0_i32 = arith.constant 0 : i32
    %0 = arith.subi %c0_i32, %arg0 : i32
    %c0_i32_0 = arith.constant 0 : i32
    %c0_i32_1 = arith.constant 0 : i32
    %c0_i32_2 = arith.constant 0 : i32
    return %0, %c0_i32_0, %c0_i32_1 : i32, i32, i32
  }
  func.func @transform_3(%arg0: i32) -> (i32, i32) {
    %c0_i32 = arith.constant 0 : i32
    %c0_i32_0 = arith.constant 0 : i32
    %c0_i32_1 = arith.constant 0 : i32
    return %c0_i32, %c0_i32_0 : i32, i32
  }
  func.func @transform_4(%arg0: i32) -> (i32, i32) {
    %c0_i32 = arith.constant 0 : i32
    %c0_i32_0 = arith.constant 0 : i32
    %c0_i32_1 = arith.constant 0 : i32
    return %c0_i32, %c0_i32_0 : i32, i32
  }
  func.func @transform_5(%arg0: i32) -> (i32, i32) {
    %c0_i32 = arith.constant 0 : i32
    %c0_i32_0 = arith.constant 0 : i32
    %c0_i32_1 = arith.constant 0 : i32
    return %c0_i32, %c0_i32_0 : i32, i32
  }
  func.func @transform_6(%arg0: i32) -> (i32, i32) {
    %c0_i32 = arith.constant 0 : i32
    %c0_i32_0 = arith.constant 0 : i32
    %c0_i32_1 = arith.constant 0 : i32
    return %c0_i32, %c0_i32_0 : i32, i32
  }
  func.func @transform_7(%arg0: i32) -> (i32, i32, i32) {
    %c0_i32 = arith.constant 0 : i32
    %c0_i32_0 = arith.constant 0 : i32
    %c0_i32_1 = arith.constant 0 : i32
    %c0_i32_2 = arith.constant 0 : i32
    return %c0_i32, %c0_i32_0, %c0_i32_1 : i32, i32, i32
  }
  func.func @transform_8(%arg0: i32) -> (i32, i32) {
    %c0_i32 = arith.constant 0 : i32
    %c0_i32_0 = arith.constant 0 : i32
    %c0_i32_1 = arith.constant 0 : i32
    return %c0_i32, %c0_i32_0 : i32, i32
  }
  func.func @transform_9(%arg0: i32) -> (i32, i32) {
    %c0_i32 = arith.constant 0 : i32
    %c0_i32_0 = arith.constant 0 : i32
    %c0_i32_1 = arith.constant 0 : i32
    return %c0_i32, %c0_i32_0 : i32, i32
  }
}

</mosaic_0001>

<llo_original>
// kernel: motion_encoder_bigru_co.5
$region0: #{motion_encoder_bigru_co.5}
  #allocation0 [shape = 'u32[]', space=smem, size = 0x4, offset = 0x4, fixed_abs, tag = 'smem constant byte address 0x4 - core index']
  #allocation1 [shape = 'u32[72,128]{1,0:T(1,128)}', space=vmem, size = 0x9000, scoped, tag = 'internal scratch']
  %s0 = inlined_call_operand.vmem [shape: f32[2,64], index: 0, kind: input, shape index: {}]
  %s1 = inlined_call_operand.vmem [shape: f32[64,32], index: 1, kind: input, shape index: {}]
  %s2 = inlined_call_operand.vmem [shape: f32[1,32], index: 2, kind: input, shape index: {}]
  %s3 = inlined_call_operand.vmem [shape: f32[1,32], index: 3, kind: input, shape index: {}]
  %s4 = inlined_call_operand.vmem [shape: f32[1,32], index: 4, kind: input, shape index: {}]
  %s5 = inlined_call_operand.vmem [shape: f32[32,16], index: 5, kind: input, shape index: {}]
  %s6 = inlined_call_operand.vmem [shape: f32[1,16], index: 6, kind: input, shape index: {}]
  %s7 = inlined_call_operand.hbm [shape: f32[2,16], index: 7, kind: output, shape index: {}]
  %s8 = sld [smem:[#allocation0]]
  $region38: #{motion_encoder_bigru_co.5} parent=0
    _
  %s10 = ssub.s32 1, %s8
  %s11 = scalar_select 0, %s10, %s8
  $region1: #{motion_encoder_bigru_co.5} parent=0
    #allocation2 [shape = 'u8[1024]{0}', space=vmem, size = 0x400, scoped, tag = 'output window, operand 0, single buffered']
    #allocation3 [shape = 's32[1]{0}', space=sflag, size = 0x4, scoped, tag = 'scoped memory for motion_encoder_bigru_co.5']
    %12 = vsyncpa [#allocation3], 0
    // Predicated region
    $region2: #{motion_encoder_bigru_co.5} parent=1 // pred_check
      _
    $region3: #{motion_encoder_bigru_co.5} parent=1 // pred_check_branch
      %14 = sbr.rel (0) target = $region5
    $region4: #{motion_encoder_bigru_co.5} parent=1 // pred_region
      _
    $region5: #{motion_encoder_bigru_co.5} parent=1 // pred_fallthru
      _
    // Predicated region
    $region6: #{motion_encoder_bigru_co.5} parent=1 // pred_check
      _
    $region7: #{motion_encoder_bigru_co.5} parent=1 // pred_check_branch
      %16 = sbr.rel (0) target = $region9
    $region8: #{motion_encoder_bigru_co.5} parent=1 // pred_region
      _
    $region9: #{motion_encoder_bigru_co.5} parent=1 // pred_fallthru
      _
    // Predicated region
    $region10: #{motion_encoder_bigru_co.5} parent=1 // pred_check
      _
    $region11: #{motion_encoder_bigru_co.5} parent=1 // pred_check_branch
      %18 = sbr.rel (0) target = $region13
    $region12: #{motion_encoder_bigru_co.5} parent=1 // pred_region
      _
    $region13: #{motion_encoder_bigru_co.5} parent=1 // pred_fallthru
      _
    // Predicated region
    $region14: #{motion_encoder_bigru_co.5} parent=1 // pred_check
      _
    $region15: #{motion_encoder_bigru_co.5} parent=1 // pred_check_branch
      %20 = sbr.rel (0) target = $region17
    $region16: #{motion_encoder_bigru_co.5} parent=1 // pred_region
      _
    $region17: #{motion_encoder_bigru_co.5} parent=1 // pred_fallthru
      _
    // Predicated region
    $region18: #{motion_encoder_bigru_co.5} parent=1 // pred_check
      _
    $region19: #{motion_encoder_bigru_co.5} parent=1 // pred_check_branch
      %22 = sbr.rel (0) target = $region21
    $region20: #{motion_encoder_bigru_co.5} parent=1 // pred_region
      _
    $region21: #{motion_encoder_bigru_co.5} parent=1 // pred_fallthru
      _
    // Predicated region
    $region22: #{motion_encoder_bigru_co.5} parent=1 // pred_check
      _
    $region23: #{motion_encoder_bigru_co.5} parent=1 // pred_check_branch
      %24 = sbr.rel (0) target = $region25
    $region24: #{motion_encoder_bigru_co.5} parent=1 // pred_region
      _
    $region25: #{motion_encoder_bigru_co.5} parent=1 // pred_fallthru
      _
    // Predicated region
    $region26: #{motion_encoder_bigru_co.5} parent=1 // pred_check
      _
    $region27: #{motion_encoder_bigru_co.5} parent=1 // pred_check_branch
      %26 = sbr.rel (0) target = $region29
    $region28: #{motion_encoder_bigru_co.5} parent=1 // pred_region
      _
    $region29: #{motion_encoder_bigru_co.5} parent=1 // pred_fallthru
      _
    %v27 = vld [vmem:[%s0] sm:$0x3]
    %v28 = vld [vmem:[%s1] sm:$0xff]
    %v29 = vld [vmem:[%s1 + $0x8] sm:$0xff]
    %v30 = vld [vmem:[%s1 + $0x10] sm:$0xff]
    %v31 = vld [vmem:[%s1 + $0x18] sm:$0xff]
    %v32 = vld [vmem:[%s1 + $0x20] sm:$0xff]
    %v33 = vld [vmem:[%s1 + $0x28] sm:$0xff]
    %v34 = vld [vmem:[%s1 + $0x30] sm:$0xff]
    %v35 = vld [vmem:[%s1 + $0x38] sm:$0xff]
    %v36 = vld [vmem:[%s2] sm:$0x1]
    %v38 = vperm.slane %v36, 0
    %vm40 = vcmask 523264
    %v42 = vsel %vm40, %v27, 0
    %44 = vmatpush.msra.mxu0 0.0
    %45 = vmatpush.msra.mxu0 0.0
    %46 = vmatpush.msra.mxu0 0.0
    %47 = vmatpush.msra.mxu0 0.0
    %48 = vmatpush.msra.mxu0 0.0
    %49 = vmatpush.msra.mxu0 0.0
    %50 = vmatpush.msra.mxu0 0.0
    %51 = vmatpush.msra.mxu0 0.0
    %52 = vmatpush.msra.mxu0 %v35
    %53 = vmatpush.msra.mxu0 %v34
    %54 = vmatpush.msra.mxu0 %v33
    %55 = vmatpush.msra.mxu0 %v32
    %56 = vmatpush.msra.mxu0 %v31
    %57 = vmatpush.msra.mxu0 %v30
    %58 = vmatpush.msra.mxu0 %v29
    %59 = vmatpush.msra.mxu0 %v28
    %60 = vmatmul.f32.gmra.mxu0 %v42
    %v61 = vpop.f32.mrf.mxu0
    %v62 = vadd.f32 %v38, %v61
    %63 = vdwg.mxu0
    %vm64 = vcmask 254976
    %v65 = vsel %vm64, %v62, 0.0
    %66 = vadd.xlane.f32.xlu0 %v65
    %v67 = vpop.xlane.xlu0 %66
    %v68 = vrcp.pop 32.0
    %v69 = vmul.f32 32.0, %v68
    %v70 = vsub.f32 1.0, %v69
    %v71 = vmul.f32 %v68, %v70
    %v72 = vadd.f32 %v68, %v71
    %vm73 = vweird.f32 %v68
    %v74 = vsel %vm73, %v68, %v72
    %v75 = vmul.f32 %v67, %v74
    %v76 = vsub.f32 %v62, %v75
    %v77 = vmul.f32 %v76, %v76
    %v78 = vsel %vm64, %v77, 0.0
    %79 = vadd.xlane.f32.xlu0 %v78
    %v80 = vpop.xlane.xlu0 %79
    %v81 = vmul.f32 %v80, %v74
    %v82 = vadd.f32 %v81, 1e-05
    %v83 = vrsqrt.pop %v82
    %v84 = vmul.f32 %v83, %v82
    %v85 = vmul.f32 %v84, %v83
    %v86 = vmul.f32 0.5, %v85
    %v87 = vsub.f32 1.5, %v86
    %v88 = vmul.f32 %v83, %v87
    %vm89 = vweird.f32 %v82
    %vm90 = vweird.f32 %v83
    %vm91 = vmor %vm89, %vm90
    %v92 = vsel %vm91, %v83, %v88
    %v93 = vmul.f32 %v76, %v92
    %v94 = vld [vmem:[%s3] sm:$0x1]
    %v96 = vperm.slane %v94, 0
    %v98 = vmul.f32 %v93, %v96
    %v99 = vld [vmem:[%s4] sm:$0x1]
    %v101 = vperm.slane %v99, 0
    %v103 = vadd.f32 %v98, %v101
    %vm104 = vcmp.gt.f32.partialorder %v103, 0.0
    %v105 = vmul.f32 %v103, 0.2
    %v106 = vsel %vm104, %v103, %v105
    %v107 = vld [vmem:[%s5] sm:$0xff]
    %v108 = vld [vmem:[%s5 + $0x8] sm:$0xff]
    %v109 = vld [vmem:[%s5 + $0x10] sm:$0xff]
    %v110 = vld [vmem:[%s5 + $0x18] sm:$0xff]
    %v111 = vld [vmem:[%s6] sm:$0x1]
    %v113 = vperm.slane %v111, 0
    %vm115 = vcmask 261120
    %v117 = vsel %vm115, %v106, 0
    %119 = vmatpush.msra.mxu0 0.0
    %120 = vmatpush.msra.mxu0 0.0
    %121 = vmatpush.msra.mxu0 0.0
    %122 = vmatpush.msra.mxu0 0.0
    %123 = vmatpush.msra.mxu0 0.0
    %124 = vmatpush.msra.mxu0 0.0
    %125 = vmatpush.msra.mxu0 0.0
    %126 = vmatpush.msra.mxu0 0.0
    %127 = vmatpush.msra.mxu0 0.0
    %128 = vmatpush.msra.mxu0 0.0
    %129 = vmatpush.msra.mxu0 0.0
    %130 = vmatpush.msra.mxu0 0.0
    %131 = vmatpush.msra.mxu0 %v110
    %132 = vmatpush.msra.mxu0 %v109
    %133 = vmatpush.msra.mxu0 %v108
    %134 = vmatpush.msra.mxu0 %v107
    %135 = vmatmul.f32.gmra.mxu0 %v117
    %v136 = vpop.f32.mrf.mxu0
    %v137 = vadd.f32 %v113, %v136
    %138 = vdwg.mxu0
    %vm139 = vcmask 123904
    %140 = vst.msk [vmem:[#allocation2] sm:$0x3] %vm139, %v137
    // Predicated region
    $region30: #{motion_encoder_bigru_co.5} parent=1 // pred_check
      _
    $region31: #{motion_encoder_bigru_co.5} parent=1 // pred_check_branch
      %142 = sbr.rel (0) target = $region33
    $region32: #{motion_encoder_bigru_co.5} parent=1 // pred_region
      %144 = vsyncadd [#allocation3], 0
      %s146 = sshll.u32 [#allocation2], 4
      %s147 = int_to_ptr.vmem [resolvable:$true] %s146
      %s148 = sshll.u32 %s7, 4
      %s149 = int_to_ptr.hbm [resolvable:$true] %s148
      %151 = dma.vmem_to_hbm [thread:$0]  %s147, 32, %s149, [#allocation3]
    $region33: #{motion_encoder_bigru_co.5} parent=1 // pred_fallthru
      _
    // Predicated region
    $region34: #{motion_encoder_bigru_co.5} parent=1 // pred_check
      _
    $region35: #{motion_encoder_bigru_co.5} parent=1 // pred_check_branch
      %153 = sbr.rel (0) target = $region37
    $region36: #{motion_encoder_bigru_co.5} parent=1 // pred_region
      %155 = dma.done [#allocation3], 32
    $region37: #{motion_encoder_bigru_co.5} parent=1 // pred_fallthru
      _
    %156 = vsyncpa [#allocation3], 1

// kernel: motion_encoder_bigru_co.3
$region0: #{motion_encoder_bigru_co.3}
  #allocation0 [shape = 'u32[]', space=smem, size = 0x4, offset = 0x4, fixed_abs, tag = 'smem constant byte address 0x4 - core index']
  #allocation1 [shape = 'u32[72,128]{1,0:T(1,128)}', space=vmem, size = 0x9000, scoped, tag = 'internal scratch']
  %s0 = inlined_call_operand.vmem [shape: bf16[16,16], index: 0, kind: input, shape index: {}]
  %s1 = inlined_call_operand.vmem [shape: bf16[16,32], index: 1, kind: input, shape index: {}]
  %s2 = inlined_call_operand.vmem [shape: f32[1,32], index: 2, kind: input, shape index: {}]
  %s3 = inlined_call_operand.vmem [shape: bf16[32,96], index: 3, kind: input, shape index: {}]
  %s4 = inlined_call_operand.hbm [shape: f32[1,96], index: 4, kind: input, shape index: {}]
  %s5 = inlined_call_operand.vmem [shape: bf16[32,96], index: 5, kind: input, shape index: {}]
  %s6 = inlined_call_operand.hbm [shape: f32[1,96], index: 6, kind: input, shape index: {}]
  %s7 = inlined_call_operand.vmem [shape: bf16[16,96], index: 7, kind: output, shape index: {0}]
  %s8 = inlined_call_operand.vmem [shape: bf16[16,96], index: 8, kind: output, shape index: {1}]
  %9 = xla_tuple %s7, %s8
  %s10 = sld [smem:[#allocation0]]
  $region54: #{motion_encoder_bigru_co.3} parent=0
    _
  %s12 = ssub.s32 1, %s10
  %s13 = scalar_select 0, %s12, %s10
  $region1: #{motion_encoder_bigru_co.3} parent=0
    #allocation2 [shape = 'u8[512]{0}', space=vmem, size = 0x400, scoped, tag = 'input window, operand 4, single buffered']
    #allocation3 [shape = 's32[1]{0}', space=sflag, size = 0x4, scoped, tag = 'scoped memory for motion_encoder_bigru_co.3']
    #allocation4 [shape = 'u8[512]{0}', space=vmem, size = 0x400, scoped, tag = 'input window, operand 6, single buffered']
    #allocation5 [shape = 's32[1]{0}', space=sflag, size = 0x4, scoped, tag = 'scoped memory for motion_encoder_bigru_co.3']
    %14 = vsyncpa [#allocation3], 0
    %15 = vsyncpa [#allocation5], 0
    // Predicated region
    $region2: #{motion_encoder_bigru_co.3} parent=1 // pred_check
      _
    $region3: #{motion_encoder_bigru_co.3} parent=1 // pred_check_branch
      %17 = sbr.rel (0) target = $region5
    $region4: #{motion_encoder_bigru_co.3} parent=1 // pred_region
      _
    $region5: #{motion_encoder_bigru_co.3} parent=1 // pred_fallthru
      _
    // Predicated region
    $region6: #{motion_encoder_bigru_co.3} parent=1 // pred_check
      _
    $region7: #{motion_encoder_bigru_co.3} parent=1 // pred_check_branch
      %19 = sbr.rel (0) target = $region9
    $region8: #{motion_encoder_bigru_co.3} parent=1 // pred_region
      _
    $region9: #{motion_encoder_bigru_co.3} parent=1 // pred_fallthru
      _
    // Predicated region
    $region10: #{motion_encoder_bigru_co.3} parent=1 // pred_check
      _
    $region11: #{motion_encoder_bigru_co.3} parent=1 // pred_check_branch
      %21 = sbr.rel (0) target = $region13
    $region12: #{motion_encoder_bigru_co.3} parent=1 // pred_region
      _
    $region13: #{motion_encoder_bigru_co.3} parent=1 // pred_fallthru
      _
    // Predicated region
    $region14: #{motion_encoder_bigru_co.3} parent=1 // pred_check
      _
    $region15: #{motion_encoder_bigru_co.3} parent=1 // pred_check_branch
      %23 = sbr.rel (0) target = $region17
    $region16: #{motion_encoder_bigru_co.3} parent=1 // pred_region
      _
    $region17: #{motion_encoder_bigru_co.3} parent=1 // pred_fallthru
      _
    // Predicated region
    $region18: #{motion_encoder_bigru_co.3} parent=1 // pred_check
      _
    $region19: #{motion_encoder_bigru_co.3} parent=1 // pred_check_branch
      %25 = sbr.rel (0) target = $region21
    $region20: #{motion_encoder_bigru_co.3} parent=1 // pred_region
      %27 = vsyncadd [#allocation3], 0
      %s29 = sshll.u32 %s4, 4
      %s30 = int_to_ptr.hbm [resolvable:$true] %s29
      %s31 = sshll.u32 [#allocation2], 4
      %s32 = int_to_ptr.vmem [resolvable:$true] %s31
      %34 = dma.hbm_to_vmem [thread:$0]  %s30, 16, %s32, [#allocation3]
    $region21: #{motion_encoder_bigru_co.3} parent=1 // pred_fallthru
      _
    // Predicated region
    $region22: #{motion_encoder_bigru_co.3} parent=1 // pred_check
      _
    $region23: #{motion_encoder_bigru_co.3} parent=1 // pred_check_branch
      %36 = sbr.rel (0) target = $region25
    $region24: #{motion_encoder_bigru_co.3} parent=1 // pred_region
      _
    $region25: #{motion_encoder_bigru_co.3} parent=1 // pred_fallthru
      _
    // Predicated region
    $region26: #{motion_encoder_bigru_co.3} parent=1 // pred_check
      _
    $region27: #{motion_encoder_bigru_co.3} parent=1 // pred_check_branch
      %38 = sbr.rel (0) target = $region29
    $region28: #{motion_encoder_bigru_co.3} parent=1 // pred_region
      %40 = vsyncadd [#allocation5], 0
      %s42 = sshll.u32 %s6, 4
      %s43 = int_to_ptr.hbm [resolvable:$true] %s42
      %s44 = sshll.u32 [#allocation4], 4
      %s45 = int_to_ptr.vmem [resolvable:$true] %s44
      %47 = dma.hbm_to_vmem [thread:$0]  %s43, 16, %s45, [#allocation5]
    $region29: #{motion_encoder_bigru_co.3} parent=1 // pred_fallthru
      _
    // Predicated region
    $region30: #{motion_encoder_bigru_co.3} parent=1 // pred_check
      _
    $region31: #{motion_encoder_bigru_co.3} parent=1 // pred_check_branch
      %49 = sbr.rel (0) target = $region33
    $region32: #{motion_encoder_bigru_co.3} parent=1 // pred_region
      %51 = dma.done [#allocation3], 16
    $region33: #{motion_encoder_bigru_co.3} parent=1 // pred_fallthru
      _
    // Predicated region
    $region34: #{motion_encoder_bigru_co.3} parent=1 // pred_check
      _
    $region35: #{motion_encoder_bigru_co.3} parent=1 // pred_check_branch
      %53 = sbr.rel (0) target = $region37
    $region36: #{motion_encoder_bigru_co.3} parent=1 // pred_region
      %55 = dma.done [#allocation5], 16
    $region37: #{motion_encoder_bigru_co.3} parent=1 // pred_fallthru
      _
    %v57 = vld [vmem:[%s0] sm:$0xf]
    %v58 = vld [vmem:[%s0 + $0x4] sm:$0xf]
    %v59 = vld [vmem:[%s1] sm:$0xf]
    %v60 = vld [vmem:[%s1 + $0x4] sm:$0xf]
    %v61 = vld [vmem:[%s2] sm:$0x1]
    %v63 = vperm.slane %v61, 0
    %v67 = vunpack.c.l.b16 %v57
    %v68 = vunpack.c.l.b16 %v58
    %v69 = vpack.c.b16 %v68, %v67
    %v72 = vunpack.c.l.b16 %v59
    %v73 = vunpack.c.l.b16 %v60
    %v74 = vpack.c.b16 %v73, %v72
    %vm76 = vcmask 130048
    %v78 = vsel %vm76, %v69, 0
    %80 = vmatpush.bf16.msra.mxu0 0
    %81 = vmatpush.bf16.msra.mxu0 0
    %82 = vmatpush.bf16.msra.mxu0 0
    %83 = vmatpush.bf16.msra.mxu0 0
    %84 = vmatpush.bf16.msra.mxu0 0
    %85 = vmatpush.bf16.msra.mxu0 0
    %86 = vmatpush.bf16.msra.mxu0 0
    %87 = vmatpush.bf16.msra.mxu0 %v74
    %88 = vmatmul.bf16.gmra.mxu0 %v78
    %v89 = vpop.f32.mrf.mxu0
    %v90 = vadd.f32 %v63, %v89
    %v91 = vpop.f32.mrf.mxu0
    %v92 = vadd.f32 %v63, %v91
    %93 = vdwg.mxu0
    %v94 = vpack.c.bf16 %v92, %v90
    %v95 = vld [vmem:[%s3] sm:$0xf]
    %v96 = vld [vmem:[%s3 + $0x4] sm:$0xf]
    %v97 = vld [vmem:[%s3 + $0x8] sm:$0xf]
    %v98 = vld [vmem:[%s3 + $0xc] sm:$0xf]
    %v99 = vld [vmem:[#allocation2] sm:$0x1]
    %v101 = vperm.slane %v99, 0
    %v107 = vunpack.c.l.b16 %v95
    %v108 = vunpack.c.l.b16 %v96
    %v109 = vunpack.c.l.b16 %v97
    %v110 = vunpack.c.l.b16 %v98
    %v111 = vpack.c.b16 %v108, %v107
    %v112 = vpack.c.b16 %v110, %v109
    %vm115 = vcmask 261120
    %v117 = vsel %vm115, %v94, 0
    %119 = vmatpush.bf16.msra.mxu0 0
    %120 = vmatpush.bf16.msra.mxu0 0
    %121 = vmatpush.bf16.msra.mxu0 0
    %122 = vmatpush.bf16.msra.mxu0 0
    %123 = vmatpush.bf16.msra.mxu0 0
    %124 = vmatpush.bf16.msra.mxu0 0
    %125 = vmatpush.bf16.msra.mxu0 %v112
    %126 = vmatpush.bf16.msra.mxu0 %v111
    %127 = vmatmul.bf16.gmra.mxu0 %v117
    %v128 = vpop.f32.mrf.mxu0
    %v129 = vadd.f32 %v101, %v128
    %v130 = vpop.f32.mrf.mxu0
    %v131 = vadd.f32 %v101, %v130
    %132 = vdwg.mxu0
    %v133 = vpack.c.bf16 %v129, %v129
    %v134 = vpack.c.bf16 %v131, %v131
    %vm135 = vcmask 781312
    %136 = vst.msk [vmem:[%s7] sm:$0xf] %vm135, %v133
    %137 = vst.msk [vmem:[%s7 + $0x4] sm:$0xf] %vm135, %v134
    %v138 = vld [vmem:[%s5] sm:$0xf]
    %v139 = vld [vmem:[%s5 + $0x4] sm:$0xf]
    %v140 = vld [vmem:[%s5 + $0x8] sm:$0xf]
    %v141 = vld [vmem:[%s5 + $0xc] sm:$0xf]
    %v142 = vld [vmem:[#allocation4] sm:$0x1]
    %v144 = vperm.slane %v142, 0
    %v150 = vunpack.c.l.b16 %v138
    %v151 = vunpack.c.l.b16 %v139
    %v152 = vunpack.c.l.b16 %v140
    %v153 = vunpack.c.l.b16 %v141
    %v154 = vpack.c.b16 %v151, %v150
    %v155 = vpack.c.b16 %v153, %v152
    %158 = vmatpush.bf16.msra.mxu0 0
    %159 = vmatpush.bf16.msra.mxu0 0
    %160 = vmatpush.bf16.msra.mxu0 0
    %161 = vmatpush.bf16.msra.mxu0 0
    %162 = vmatpush.bf16.msra.mxu0 0
    %163 = vmatpush.bf16.msra.mxu0 0
    %164 = vmatpush.bf16.msra.mxu0 %v155
    %165 = vmatpush.bf16.msra.mxu0 %v154
    %166 = vmatmul.bf16.gmra.mxu0 %v117
    %v167 = vpop.f32.mrf.mxu0
    %v168 = vadd.f32 %v144, %v167
    %v169 = vpop.f32.mrf.mxu0
    %v170 = vadd.f32 %v144, %v169
    %171 = vdwg.mxu0
    %v172 = vpack.c.bf16 %v168, %v168
    %v173 = vpack.c.bf16 %v170, %v170
    %174 = vst.msk [vmem:[%s8] sm:$0xf] %vm135, %v172
    %175 = vst.msk [vmem:[%s8 + $0x4] sm:$0xf] %vm135, %v173
    // Predicated region
    $region38: #{motion_encoder_bigru_co.3} parent=1 // pred_check
      _
    $region39: #{motion_encoder_bigru_co.3} parent=1 // pred_check_branch
      %177 = sbr.rel (0) target = $region41
    $region40: #{motion_encoder_bigru_co.3} parent=1 // pred_region
      _
    $region41: #{motion_encoder_bigru_co.3} parent=1 // pred_fallthru
      _
    // Predicated region
    $region42: #{motion_encoder_bigru_co.3} parent=1 // pred_check
      _
    $region43: #{motion_encoder_bigru_co.3} parent=1 // pred_check_branch
      %179 = sbr.rel (0) target = $region45
    $region44: #{motion_encoder_bigru_co.3} parent=1 // pred_region
      _
    $region45: #{motion_encoder_bigru_co.3} parent=1 // pred_fallthru
      _
    // Predicated region
    $region46: #{motion_encoder_bigru_co.3} parent=1 // pred_check
      _
    $region47: #{motion_encoder_bigru_co.3} parent=1 // pred_check_branch
      %181 = sbr.rel (0) target = $region49
    $region48: #{motion_encoder_bigru_co.3} parent=1 // pred_region
      _
    $region49: #{motion_encoder_bigru_co.3} parent=1 // pred_fallthru
      _
    // Predicated region
    $region50: #{motion_encoder_bigru_co.3} parent=1 // pred_check
      _
    $region51: #{motion_encoder_bigru_co.3} parent=1 // pred_check_branch
      %183 = sbr.rel (0) target = $region53
    $region52: #{motion_encoder_bigru_co.3} parent=1 // pred_region
      _
    $region53: #{motion_encoder_bigru_co.3} parent=1 // pred_fallthru
      _
    %184 = vsyncpa [#allocation3], 1
    %185 = vsyncpa [#allocation5], 1

// kernel: motion_encoder_bigru_co.4
$region0: #{motion_encoder_bigru_co.4}
  #allocation0 [shape = 'u32[]', space=smem, size = 0x4, offset = 0x4, fixed_abs, tag = 'smem constant byte address 0x4 - core index']
  #allocation1 [shape = 'u32[72,128]{1,0:T(1,128)}', space=vmem, size = 0x9000, scoped, tag = 'internal scratch']
  %s0 = inlined_call_operand.vmem [shape: s32[2,1], index: 0, kind: input, shape index: {}]
  %s1 = inlined_call_operand.vmem [shape: bf16[8,2,96], index: 1, kind: input, shape index: {}]
  %s2 = inlined_call_operand.vmem [shape: bf16[8,2,96], index: 2, kind: input, shape index: {}]
  %s3 = inlined_call_operand.vmem [shape: bf16[32,96], index: 3, kind: input, shape index: {}]
  %s4 = inlined_call_operand.hbm [shape: bf16[32,96], index: 4, kind: input, shape index: {}]
  %s5 = inlined_call_operand.hbm [shape: f32[1,96], index: 5, kind: input, shape index: {}]
  %s6 = inlined_call_operand.hbm [shape: f32[1,96], index: 6, kind: input, shape index: {}]
  %s7 = inlined_call_operand.hbm [shape: f32[2,1,32], index: 7, kind: input, shape index: {}]
  %s8 = inlined_call_operand.vmem [shape: f32[2,32], index: 8, kind: output, shape index: {0}]
  %s9 = inlined_call_operand.vmem [shape: f32[2,32], index: 9, kind: output, shape index: {1}]
  %10 = xla_tuple %s8, %s9
  %s11 = sld [smem:[#allocation0]]
  $region70: #{motion_encoder_bigru_co.4} parent=0
    _
  %s13 = ssub.s32 1, %s11
  %s14 = scalar_select 0, %s13, %s11
  $region1: #{motion_encoder_bigru_co.4} parent=0
    #allocation2 [shape = 'u8[8192]{0}', space=vmem, size = 0x2000, scoped, tag = 'input window, operand 4, single buffered']
    #allocation3 [shape = 's32[1]{0}', space=sflag, size = 0x4, scoped, tag = 'scoped memory for motion_encoder_bigru_co.4']
    #allocation4 [shape = 'u8[512]{0}', space=vmem, size = 0x400, scoped, tag = 'input window, operand 5, single buffered']
    #allocation5 [shape = 's32[1]{0}', space=sflag, size = 0x4, scoped, tag = 'scoped memory for motion_encoder_bigru_co.4']
    #allocation6 [shape = 'u8[512]{0}', space=vmem, size = 0x400, scoped, tag = 'input window, operand 6, single buffered']
    #allocation7 [shape = 'u8[1024]{0}', space=vmem, size = 0x400, scoped, tag = 'input window, operand 7, single buffered']
    #allocation8 [shape = 's32[1]{0}', space=sflag, size = 0x4, scoped, tag = 'scoped memory for motion_encoder_bigru_co.4']
    %15 = vsyncpa [#allocation3], 0
    %16 = vsyncpa [#allocation5], 0
    %17 = vsyncpa [#allocation8], 0
    // Predicated region
    $region2: #{motion_encoder_bigru_co.4} parent=1 // pred_check
      _
    $region3: #{motion_encoder_bigru_co.4} parent=1 // pred_check_branch
      %19 = sbr.rel (0) target = $region5
    $region4: #{motion_encoder_bigru_co.4} parent=1 // pred_region
      _
    $region5: #{motion_encoder_bigru_co.4} parent=1 // pred_fallthru
      _
    // Predicated region
    $region6: #{motion_encoder_bigru_co.4} parent=1 // pred_check
      _
    $region7: #{motion_encoder_bigru_co.4} parent=1 // pred_check_branch
      %21 = sbr.rel (0) target = $region9
    $region8: #{motion_encoder_bigru_co.4} parent=1 // pred_region
      _
    $region9: #{motion_encoder_bigru_co.4} parent=1 // pred_fallthru
      _
    // Predicated region
    $region10: #{motion_encoder_bigru_co.4} parent=1 // pred_check
      _
    $region11: #{motion_encoder_bigru_co.4} parent=1 // pred_check_branch
      %23 = sbr.rel (0) target = $region13
    $region12: #{motion_encoder_bigru_co.4} parent=1 // pred_region
      %s24 = ssub.s32 0, 0
      %s25 = smul.u32 8, %s24
      %p26 = scmp.lt.s32.totalorder %s25, 7
      %s27 = scalar_select %p26, %s25, 7
      %s28 = scalar_lea.vmem %s2, %s27
      %s29 = ssub.s32 0, 0
      %s30 = smul.u32 8, %s29
    $region13: #{motion_encoder_bigru_co.4} parent=1 // pred_fallthru
      _
    // Predicated region
    $region14: #{motion_encoder_bigru_co.4} parent=1 // pred_check
      _
    $region15: #{motion_encoder_bigru_co.4} parent=1 // pred_check_branch
      %32 = sbr.rel (0) target = $region17
    $region16: #{motion_encoder_bigru_co.4} parent=1 // pred_region
      _
    $region17: #{motion_encoder_bigru_co.4} parent=1 // pred_fallthru
      _
    // Predicated region
    $region18: #{motion_encoder_bigru_co.4} parent=1 // pred_check
      _
    $region19: #{motion_encoder_bigru_co.4} parent=1 // pred_check_branch
      %34 = sbr.rel (0) target = $region21
    $region20: #{motion_encoder_bigru_co.4} parent=1 // pred_region
      %36 = vsyncadd [#allocation3], 0
      %s37 = sshll.u32 %s4, 4
      %s38 = int_to_ptr.hbm [resolvable:$true] %s37
      %s39 = sshll.u32 [#allocation2], 4
      %s40 = int_to_ptr.vmem [resolvable:$true] %s39
      %45 = dma.hbm_to_vmem [thread:$0]  %s38, 256, %s40, [#allocation3], 64, 64, 4
    $region21: #{motion_encoder_bigru_co.4} parent=1 // pred_fallthru
      _
    // Predicated region
    $region22: #{motion_encoder_bigru_co.4} parent=1 // pred_check
      _
    $region23: #{motion_encoder_bigru_co.4} parent=1 // pred_check_branch
      %47 = sbr.rel (0) target = $region25
    $region24: #{motion_encoder_bigru_co.4} parent=1 // pred_region
      %49 = vsyncadd [#allocation5], 0
      %s51 = sshll.u32 %s5, 4
      %s52 = int_to_ptr.hbm [resolvable:$true] %s51
      %s53 = sshll.u32 [#allocation4], 4
      %s54 = int_to_ptr.vmem [resolvable:$true] %s53
      %56 = dma.hbm_to_vmem [thread:$0]  %s52, 16, %s54, [#allocation5]
    $region25: #{motion_encoder_bigru_co.4} parent=1 // pred_fallthru
      _
    // Predicated region
    $region26: #{motion_encoder_bigru_co.4} parent=1 // pred_check
      _
    $region27: #{motion_encoder_bigru_co.4} parent=1 // pred_check_branch
      %58 = sbr.rel (0) target = $region29
    $region28: #{motion_encoder_bigru_co.4} parent=1 // pred_region
      %60 = vsyncadd [#allocation5], 0
      %s62 = sshll.u32 %s6, 4
      %s63 = int_to_ptr.hbm [resolvable:$true] %s62
      %s64 = sshll.u32 [#allocation6], 4
      %s65 = int_to_ptr.vmem [resolvable:$true] %s64
      %67 = dma.hbm_to_vmem [thread:$0]  %s63, 16, %s65, [#allocation5]
    $region29: #{motion_encoder_bigru_co.4} parent=1 // pred_fallthru
      _
    // Predicated region
    $region30: #{motion_encoder_bigru_co.4} parent=1 // pred_check
      _
    $region31: #{motion_encoder_bigru_co.4} parent=1 // pred_check_branch
      %69 = sbr.rel (0) target = $region33
    $region32: #{motion_encoder_bigru_co.4} parent=1 // pred_region
      %71 = vsyncadd [#allocation8], 0
      %s72 = sshll.u32 %s7, 4
      %s73 = int_to_ptr.hbm [resolvable:$true] %s72
      %s74 = sshll.u32 [#allocation7], 4
      %s75 = int_to_ptr.vmem [resolvable:$true] %s74
      %80 = dma.hbm_to_vmem [thread:$0]  %s73, 32, %s75, [#allocation8], 16, 16, 1
    $region33: #{motion_encoder_bigru_co.4} parent=1 // pred_fallthru
      _
    // Predicated region
    $region34: #{motion_encoder_bigru_co.4} parent=1 // pred_check
      _
    $region35: #{motion_encoder_bigru_co.4} parent=1 // pred_check_branch
      %82 = sbr.rel (0) target = $region37
    $region36: #{motion_encoder_bigru_co.4} parent=1 // pred_region
      %84 = dma.done [#allocation3], 256
    $region37: #{motion_encoder_bigru_co.4} parent=1 // pred_fallthru
      _
    // Predicated region
    $region38: #{motion_encoder_bigru_co.4} parent=1 // pred_check
      _
    $region39: #{motion_encoder_bigru_co.4} parent=1 // pred_check_branch
      %86 = sbr.rel (0) target = $region41
    $region40: #{motion_encoder_bigru_co.4} parent=1 // pred_region
      %88 = dma.done [#allocation5], 16
    $region41: #{motion_encoder_bigru_co.4} parent=1 // pred_fallthru
      _
    // Predicated region
    $region42: #{motion_encoder_bigru_co.4} parent=1 // pred_check
      _
    $region43: #{motion_encoder_bigru_co.4} parent=1 // pred_check_branch
      %90 = sbr.rel (0) target = $region45
    $region44: #{motion_encoder_bigru_co.4} parent=1 // pred_region
      %92 = dma.done [#allocation5], 16
    $region45: #{motion_encoder_bigru_co.4} parent=1 // pred_fallthru
      _
    // Predicated region
    $region46: #{motion_encoder_bigru_co.4} parent=1 // pred_check
      _
    $region47: #{motion_encoder_bigru_co.4} parent=1 // pred_check_branch
      %94 = sbr.rel (0) target = $region49
    $region48: #{motion_encoder_bigru_co.4} parent=1 // pred_region
      %96 = dma.done [#allocation8], 32
    $region49: #{motion_encoder_bigru_co.4} parent=1 // pred_fallthru
      _
    %s97 = ssub.s32 0, 0
    %s98 = smul.u32 8, %s97
    %p99 = scmp.lt.s32.totalorder %s98, 7
    %s100 = scalar_select %p99, %s98, 7
    %s101 = scalar_lea.vmem %s2, %s100
    %s102 = ssub.s32 0, 0
    %s103 = smul.u32 8, %s102
    %p104 = scmp.lt.s32.totalorder %s103, 7
    %s105 = scalar_select %p104, %s103, 7
    %s106 = scalar_lea.vmem %s2, %s105
    %s107 = ssub.s32 0, 0
    %s108 = smul.u32 8, %s107
    %p110 = scmp.eq.s32.totalorder 0, 0
    // Predicated region
    $region50: #{motion_encoder_bigru_co.4} parent=1 // pred_check
      %p111 = pneg %p110
    $region51: #{motion_encoder_bigru_co.4} parent=1 // pred_check_branch
      %113 = sbr.rel (%p111) target = $region53
    $region52: #{motion_encoder_bigru_co.4} parent=1 // pred_region
      %v114 = vld [vmem:[#allocation7] sm:$0x1]
      %v116 = vperm.slane %v114, 0
      %vm118 = vcmask 254976
      %119 = vst.msk [vmem:[%s8] sm:$0x3] %vm118, %v116
      %s120 = scalar_lea.vmem [#allocation7], 1
      %v121 = vld [vmem:[%s120] sm:$0x1]
      %v123 = vperm.slane %v121, 0
      %125 = vst.msk [vmem:[%s9] sm:$0x3] %vm118, %v123
    $region53: #{motion_encoder_bigru_co.4} parent=1 // pred_fallthru
      _
    %v126 = vld [vmem:[%s0] sm:$0x3]
    %v127 = vld [vmem:[%s3] sm:$0xf]
    %v128 = vld [vmem:[%s3 + $0x4] sm:$0xf]
    %v129 = vld [vmem:[%s3 + $0x8] sm:$0xf]
    %v130 = vld [vmem:[%s3 + $0xc] sm:$0xf]
    %v131 = vld [vmem:[#allocation2] sm:$0xf]
    %v132 = vld [vmem:[#allocation2 + $0x4] sm:$0xf]
    %v133 = vld [vmem:[#allocation2 + $0x8] sm:$0xf]
    %v134 = vld [vmem:[#allocation2 + $0xc] sm:$0xf]
    %v135 = vld [vmem:[#allocation4] sm:$0x1]
    %v136 = vld [vmem:[#allocation6] sm:$0x1]
    %s137 = smul.u32 0, 8
    %s138 = ssub.s32 0, 0
    %s139 = smul.u32 %s138, 8
    %v140 = vld [vmem:[%s8] sm:$0x3]
    %v141 = vld [vmem:[%s9] sm:$0x3]
    %s142 = sadd.s32 %s139, 7
    %v143 = vld [vmem:[%s1] sm:$0x1]
    %v144 = vstv %s137
    %vm145 = vcmp.lt.s32.totalorder %v144, %v126
    %v146 = vpack.c.bf16 %v140, %v140
    %v148 = vperm.slane %v135, 0
    %v154 = vunpack.c.l.b16 %v127
    %v155 = vunpack.c.l.b16 %v128
    %v156 = vunpack.c.l.b16 %v129
    %v157 = vunpack.c.l.b16 %v130
    %v158 = vpack.c.b16 %v155, %v154
    %v159 = vpack.c.b16 %v157, %v156
    %vm162 = vcmask 261120
    %v164 = vsel %vm162, %v146, 0
    %166 = vmatpush.bf16.msra.mxu0 0
    %167 = vmatpush.bf16.msra.mxu0 0
    %168 = vmatpush.bf16.msra.mxu0 0
    %169 = vmatpush.bf16.msra.mxu0 0
    %170 = vmatpush.bf16.msra.mxu0 0
    %171 = vmatpush.bf16.msra.mxu0 0
    %172 = vmatpush.bf16.msra.mxu0 %v159
    %173 = vmatpush.bf16.msra.mxu0 %v158
    %174 = vmatmul.bf16.gmra.mxu0 %v164
    %v175 = vpop.f32.mrf.mxu0
    %v176 = vadd.f32 %v148, %v175
    %v177 = vpop.f32.mrf.mxu0
    %178 = vdwg.mxu0
    %v179 = vunpack.c.l.bf16 %v143
    %v180 = vadd.f32 %v179, %v176
    %v181 = vxor.u32 %v180, 2147483648
    %v182 = vmul.f32 %v181, 1.442695
    %v183 = vpow.pop %v182
    %v184 = vadd.f32 %v183, 1.0
    %v185 = vrcp.pop %v184
    %v186 = vmul.f32 %v184, %v185
    %v187 = vsub.f32 1.0, %v186
    %v188 = vmul.f32 %v185, %v187
    %v189 = vadd.f32 %v185, %v188
    %vm190 = vweird.f32 %v184
    %vm191 = vweird.f32 %v185
    %vm192 = vmor %vm190, %vm191
    %v193 = vsel %vm192, %v185, %v189
    %v194 = vand.u32 2147483647, %v184
    %vm195 = vcmp.eq.f32.partialorder %v194, 8.507059e+37
    %v196 = vand.u32 %v184, 2147483648
    %v197 = vor.u32 1.1754944e-38, %v196
    %v198 = vsel %vm195, %v197, %v193
    %v199 = vmul.f32 1.0, %v198
    %201 = vrot.lane.b32.xlu0 %v176, 64
    %v202 = vpop.permute.xlu0 %201
    %v204 = vmul.f32 %v199, %v202
    %206 = vrot.lane.b32.xlu0 %v204, 64
    %v207 = vpop.permute.xlu0 %206
    %v209 = vadd.f32 %v179, %v207
    %v210 = vtanh.pop %v209
    %v211 = vsub.f32 1.0, %v199
    %213 = vrot.lane.b32.xlu0 %v210, 96
    %v214 = vpop.permute.xlu0 %213
    %v216 = vmul.f32 %v211, %v214
    %218 = vrot.lane.b32.xlu0 %v140, 32
    %v219 = vpop.permute.xlu0 %218
    %v221 = vmul.f32 %v199, %v219
    %v222 = vadd.f32 %v216, %v221
    %v223 = vsel %vm145, 1, 0
    %224 = vset.pattern.permute.xlu0 0
    %225 = vperm.xlu0 %224, %v223
    %v226 = vpop.permute.xlu0 %225
    %vm227 = vcmp.eq.s32.totalorder %v226, 1
    %229 = vst [vmem:[#allocation1] ss:$4 sm:$0xff] %v222
    %v230 = vld.sshfl [vmem:[#allocation1] sm:$0xff pattern:$0x73625140]
    %231 = vrot.lane.b32.xlu0 %v230, 96
    %v232 = vpop.permute.xlu0 %231
    %v234 = vsel %vm227, %v232, %v140
    %s235 = scalar_lea.vmem %s106, 7
    %v236 = vld [vmem:[%s235] sm:$0x1]
    %v237 = vstv %s142
    %vm238 = vcmp.lt.s32.totalorder %v237, %v126
    %v239 = vpack.c.bf16 %v141, %v141
    %v241 = vperm.slane %v136, 0
    %v247 = vunpack.c.l.b16 %v131
    %v248 = vunpack.c.l.b16 %v132
    %v249 = vunpack.c.l.b16 %v133
    %v250 = vunpack.c.l.b16 %v134
    %v251 = vpack.c.b16 %v248, %v247
    %v252 = vpack.c.b16 %v250, %v249
    %v256 = vsel %vm162, %v239, 0
    %258 = vmatpush.bf16.msra.mxu0 0
    %259 = vmatpush.bf16.msra.mxu0 0
    %260 = vmatpush.bf16.msra.mxu0 0
    %261 = vmatpush.bf16.msra.mxu0 0
    %262 = vmatpush.bf16.msra.mxu0 0
    %263 = vmatpush.bf16.msra.mxu0 0
    %264 = vmatpush.bf16.msra.mxu0 %v252
    %265 = vmatpush.bf16.msra.mxu0 %v251
    %266 = vmatmul.bf16.gmra.mxu0 %v256
    %v267 = vpop.f32.mrf.mxu0
    %v268 = vadd.f32 %v241, %v267
    %v269 = vpop.f32.mrf.mxu0
    %270 = vdwg.mxu0
    %v271 = vunpack.c.l.bf16 %v236
    %v272 = vadd.f32 %v271, %v268
    %v273 = vxor.u32 %v272, 2147483648
    %v274 = vmul.f32 %v273, 1.442695
    %v275 = vpow.pop %v274
    %v276 = vadd.f32 %v275, 1.0
    %v277 = vrcp.pop %v276
    %v278 = vmul.f32 %v276, %v277
    %v279 = vsub.f32 1.0, %v278
    %v280 = vmul.f32 %v277, %v279
    %v281 = vadd.f32 %v277, %v280
    %vm282 = vweird.f32 %v276
    %vm283 = vweird.f32 %v277
    %vm284 = vmor %vm282, %vm283
    %v285 = vsel %vm284, %v277, %v281
    %v286 = vand.u32 2147483647, %v276
    %vm287 = vcmp.eq.f32.partialorder %v286, 8.507059e+37
    %v288 = vand.u32 %v276, 2147483648
    %v289 = vor.u32 1.1754944e-38, %v288
    %v290 = vsel %vm287, %v289, %v285
    %v291 = vmul.f32 1.0, %v290
    %293 = vrot.lane.b32.xlu0 %v268, 64
    %v294 = vpop.permute.xlu0 %293
    %v296 = vmul.f32 %v291, %v294
    %298 = vrot.lane.b32.xlu0 %v296, 64
    %v299 = vpop.permute.xlu0 %298
    %v301 = vadd.f32 %v271, %v299
    %v302 = vtanh.pop %v301
    %v303 = vsub.f32 1.0, %v291
    %305 = vrot.lane.b32.xlu0 %v302, 96
    %v306 = vpop.permute.xlu0 %305
    %v308 = vmul.f32 %v303, %v306
    %310 = vrot.lane.b32.xlu0 %v141, 32
    %v311 = vpop.permute.xlu0 %310
    %v313 = vmul.f32 %v291, %v311
    %v314 = vadd.f32 %v308, %v313
    %v315 = vsel %vm238, 1, 0
    %316 = vset.pattern.permute.xlu0 0
    %317 = vperm.xlu0 %316, %v315
    %v318 = vpop.permute.xlu0 %317
    %vm319 = vcmp.eq.s32.totalorder %v318, 1
    %321 = vst [vmem:[#allocation1] ss:$4 sm:$0xff] %v314
    %v322 = vld.sshfl [vmem:[#allocation1] sm:$0xff pattern:$0x73625140]
    %323 = vrot.lane.b32.xlu0 %v322, 96
    %v324 = vpop.permute.xlu0 %323
    %v326 = vsel %vm319, %v324, %v141
    %s327 = sadd.s32 %s137, 1
    %s328 = sadd.s32 %s139, 6
    %s329 = scalar_lea.vmem %s1, 1
    %v330 = vld [vmem:[%s329] sm:$0x1]
    %v331 = vstv %s327
    %vm332 = vcmp.lt.s32.totalorder %v331, %v126
    %v333 = vpack.c.bf16 %v234, %v234
    %v335 = vsel %vm162, %v333, 0
    %337 = vmatpush.bf16.msra.mxu0 0
    %338 = vmatpush.bf16.msra.mxu0 0
    %339 = vmatpush.bf16.msra.mxu0 0
    %340 = vmatpush.bf16.msra.mxu0 0
    %341 = vmatpush.bf16.msra.mxu0 0
    %342 = vmatpush.bf16.msra.mxu0 0
    %343 = vmatpush.bf16.msra.mxu0 %v159
    %344 = vmatpush.bf16.msra.mxu0 %v158
    %345 = vmatmul.bf16.gmra.mxu0 %v335
    %v346 = vpop.f32.mrf.mxu0
    %v347 = vadd.f32 %v148, %v346
    %v348 = vpop.f32.mrf.mxu0
    %349 = vdwg.mxu0
    %v350 = vunpack.c.l.bf16 %v330
    %v351 = vadd.f32 %v350, %v347
    %v352 = vxor.u32 %v351, 2147483648
    %v353 = vmul.f32 %v352, 1.442695
    %v354 = vpow.pop %v353
    %v355 = vadd.f32 %v354, 1.0
    %v356 = vrcp.pop %v355
    %v357 = vmul.f32 %v355, %v356
    %v358 = vsub.f32 1.0, %v357
    %v359 = vmul.f32 %v356, %v358
    %v360 = vadd.f32 %v356, %v359
    %vm361 = vweird.f32 %v355
    %vm362 = vweird.f32 %v356
    %vm363 = vmor %vm361, %vm362
    %v364 = vsel %vm363, %v356, %v360
    %v365 = vand.u32 2147483647, %v355
    %vm366 = vcmp.eq.f32.partialorder %v365, 8.507059e+37
    %v367 = vand.u32 %v355, 2147483648
    %v368 = vor.u32 1.1754944e-38, %v367
    %v369 = vsel %vm366, %v368, %v364
    %v370 = vmul.f32 1.0, %v369
    %372 = vrot.lane.b32.xlu0 %v347, 64
    %v373 = vpop.permute.xlu0 %372
    %v375 = vmul.f32 %v370, %v373
    %377 = vrot.lane.b32.xlu0 %v375, 64
    %v378 = vpop.permute.xlu0 %377
    %v380 = vadd.f32 %v350, %v378
    %v381 = vtanh.pop %v380
    %v382 = vsub.f32 1.0, %v370
    %384 = vrot.lane.b32.xlu0 %v381, 96
    %v385 = vpop.permute.xlu0 %384
    %v387 = vmul.f32 %v382, %v385
    %389 = vrot.lane.b32.xlu0 %v234, 32
    %v390 = vpop.permute.xlu0 %389
    %v392 = vmul.f32 %v370, %v390
    %v393 = vadd.f32 %v387, %v392
    %v394 = vsel %vm332, 1, 0
    %395 = vset.pattern.permute.xlu0 0
    %396 = vperm.xlu0 %395, %v394
    %v397 = vpop.permute.xlu0 %396
    %vm398 = vcmp.eq.s32.totalorder %v397, 1
    %400 = vst [vmem:[#allocation1] ss:$4 sm:$0xff] %v393
    %v401 = vld.sshfl [vmem:[#allocation1] sm:$0xff pattern:$0x73625140]
    %402 = vrot.lane.b32.xlu0 %v401, 96
    %v403 = vpop.permute.xlu0 %402
    %v405 = vsel %vm398, %v403, %v234
    %s406 = scalar_lea.vmem %s106, 6
    %v407 = vld [vmem:[%s406] sm:$0x1]
    %v408 = vstv %s328
    %vm409 = vcmp.lt.s32.totalorder %v408, %v126
    %v410 = vpack.c.bf16 %v326, %v326
    %v412 = vsel %vm162, %v410, 0
    %414 = vmatpush.bf16.msra.mxu0 0
    %415 = vmatpush.bf16.msra.mxu0 0
    %416 = vmatpush.bf16.msra.mxu0 0
    %417 = vmatpush.bf16.msra.mxu0 0
    %418 = vmatpush.bf16.msra.mxu0 0
    %419 = vmatpush.bf16.msra.mxu0 0
    %420 = vmatpush.bf16.msra.mxu0 %v252
    %421 = vmatpush.bf16.msra.mxu0 %v251
    %422 = vmatmul.bf16.gmra.mxu0 %v412
    %v423 = vpop.f32.mrf.mxu0
    %v424 = vadd.f32 %v241, %v423
    %v425 = vpop.f32.mrf.mxu0
    %426 = vdwg.mxu0
    %v427 = vunpack.c.l.bf16 %v407
    %v428 = vadd.f32 %v427, %v424
    %v429 = vxor.u32 %v428, 2147483648
    %v430 = vmul.f32 %v429, 1.442695
    %v431 = vpow.pop %v430
    %v432 = vadd.f32 %v431, 1.0
    %v433 = vrcp.pop %v432
    %v434 = vmul.f32 %v432, %v433
    %v435 = vsub.f32 1.0, %v434
    %v436 = vmul.f32 %v433, %v435
    %v437 = vadd.f32 %v433, %v436
    %vm438 = vweird.f32 %v432
    %vm439 = vweird.f32 %v433
    %vm440 = vmor %vm438, %vm439
    %v441 = vsel %vm440, %v433, %v437
    %v442 = vand.u32 2147483647, %v432
    %vm443 = vcmp.eq.f32.partialorder %v442, 8.507059e+37
    %v444 = vand.u32 %v432, 2147483648
    %v445 = vor.u32 1.1754944e-38, %v444
    %v446 = vsel %vm443, %v445, %v441
    %v447 = vmul.f32 1.0, %v446
    %449 = vrot.lane.b32.xlu0 %v424, 64
    %v450 = vpop.permute.xlu0 %449
    %v452 = vmul.f32 %v447, %v450
    %454 = vrot.lane.b32.xlu0 %v452, 64
    %v455 = vpop.permute.xlu0 %454
    %v457 = vadd.f32 %v427, %v455
    %v458 = vtanh.pop %v457
    %v459 = vsub.f32 1.0, %v447
    %461 = vrot.lane.b32.xlu0 %v458, 96
    %v462 = vpop.permute.xlu0 %461
    %v464 = vmul.f32 %v459, %v462
    %466 = vrot.lane.b32.xlu0 %v326, 32
    %v467 = vpop.permute.xlu0 %466
    %v469 = vmul.f32 %v447, %v467
    %v470 = vadd.f32 %v464, %v469
    %v471 = vsel %vm409, 1, 0
    %472 = vset.pattern.permute.xlu0 0
    %473 = vperm.xlu0 %472, %v471
    %v474 = vpop.permute.xlu0 %473
    %vm475 = vcmp.eq.s32.totalorder %v474, 1
    %477 = vst [vmem:[#allocation1] ss:$4 sm:$0xff] %v470
    %v478 = vld.sshfl [vmem:[#allocation1] sm:$0xff pattern:$0x73625140]
    %479 = vrot.lane.b32.xlu0 %v478, 96
    %v480 = vpop.permute.xlu0 %479
    %v482 = vsel %vm475, %v480, %v326
    %s483 = sadd.s32 %s137, 2
    %s484 = sadd.s32 %s139, 5
    %s485 = scalar_lea.vmem %s1, 2
    %v486 = vld [vmem:[%s485] sm:$0x1]
    %v487 = vstv %s483
    %vm488 = vcmp.lt.s32.totalorder %v487, %v126
    %v489 = vpack.c.bf16 %v405, %v405
    %v491 = vsel %vm162, %v489, 0
    %493 = vmatpush.bf16.msra.mxu0 0
    %494 = vmatpush.bf16.msra.mxu0 0
    %495 = vmatpush.bf16.msra.mxu0 0
    %496 = vmatpush.bf16.msra.mxu0 0
    %497 = vmatpush.bf16.msra.mxu0 0
    %498 = vmatpush.bf16.msra.mxu0 0
    %499 = vmatpush.bf16.msra.mxu0 %v159
    %500 = vmatpush.bf16.msra.mxu0 %v158
    %501 = vmatmul.bf16.gmra.mxu0 %v491
    %v502 = vpop.f32.mrf.mxu0
    %v503 = vadd.f32 %v148, %v502
    %v504 = vpop.f32.mrf.mxu0
    %505 = vdwg.mxu0
    %v506 = vunpack.c.l.bf16 %v486
    %v507 = vadd.f32 %v506, %v503
    %v508 = vxor.u32 %v507, 2147483648
    %v509 = vmul.f32 %v508, 1.442695
    %v510 = vpow.pop %v509
    %v511 = vadd.f32 %v510, 1.0
    %v512 = vrcp.pop %v511
    %v513 = vmul.f32 %v511, %v512
    %v514 = vsub.f32 1.0, %v513
    %v515 = vmul.f32 %v512, %v514
    %v516 = vadd.f32 %v512, %v515
    %vm517 = vweird.f32 %v511
    %vm518 = vweird.f32 %v512
    %vm519 = vmor %vm517, %vm518
    %v520 = vsel %vm519, %v512, %v516
    %v521 = vand.u32 2147483647, %v511
    %vm522 = vcmp.eq.f32.partialorder %v521, 8.507059e+37
    %v523 = vand.u32 %v511, 2147483648
    %v524 = vor.u32 1.1754944e-38, %v523
    %v525 = vsel %vm522, %v524, %v520
    %v526 = vmul.f32 1.0, %v525
    %528 = vrot.lane.b32.xlu0 %v503, 64
    %v529 = vpop.permute.xlu0 %528
    %v531 = vmul.f32 %v526, %v529
    %533 = vrot.lane.b32.xlu0 %v531, 64
    %v534 = vpop.permute.xlu0 %533
    %v536 = vadd.f32 %v506, %v534
    %v537 = vtanh.pop %v536
    %v538 = vsub.f32 1.0, %v526
    %540 = vrot.lane.b32.xlu0 %v537, 96
    %v541 = vpop.permute.xlu0 %540
    %v543 = vmul.f32 %v538, %v541
    %545 = vrot.lane.b32.xlu0 %v405, 32
    %v546 = vpop.permute.xlu0 %545
    %v548 = vmul.f32 %v526, %v546
    %v549 = vadd.f32 %v543, %v548
    %v550 = vsel %vm488, 1, 0
    %551 = vset.pattern.permute.xlu0 0
    %552 = vperm.xlu0 %551, %v550
    %v553 = vpop.permute.xlu0 %552
    %vm554 = vcmp.eq.s32.totalorder %v553, 1
    %556 = vst [vmem:[#allocation1] ss:$4 sm:$0xff] %v549
    %v557 = vld.sshfl [vmem:[#allocation1] sm:$0xff pattern:$0x73625140]
    %558 = vrot.lane.b32.xlu0 %v557, 96
    %v559 = vpop.permute.xlu0 %558
    %v561 = vsel %vm554, %v559, %v405
    %s562 = scalar_lea.vmem %s106, 5
    %v563 = vld [vmem:[%s562] sm:$0x1]
    %v564 = vstv %s484
    %vm565 = vcmp.lt.s32.totalorder %v564, %v126
    %v566 = vpack.c.bf16 %v482, %v482
    %v568 = vsel %vm162, %v566, 0
    %570 = vmatpush.bf16.msra.mxu0 0
    %571 = vmatpush.bf16.msra.mxu0 0
    %572 = vmatpush.bf16.msra.mxu0 0
    %573 = vmatpush.bf16.msra.mxu0 0
    %574 = vmatpush.bf16.msra.mxu0 0
    %575 = vmatpush.bf16.msra.mxu0 0
    %576 = vmatpush.bf16.msra.mxu0 %v252
    %577 = vmatpush.bf16.msra.mxu0 %v251
    %578 = vmatmul.bf16.gmra.mxu0 %v568
    %v579 = vpop.f32.mrf.mxu0
    %v580 = vadd.f32 %v241, %v579
    %v581 = vpop.f32.mrf.mxu0
    %582 = vdwg.mxu0
    %v583 = vunpack.c.l.bf16 %v563
    %v584 = vadd.f32 %v583, %v580
    %v585 = vxor.u32 %v584, 2147483648
    %v586 = vmul.f32 %v585, 1.442695
    %v587 = vpow.pop %v586
    %v588 = vadd.f32 %v587, 1.0
    %v589 = vrcp.pop %v588
    %v590 = vmul.f32 %v588, %v589
    %v591 = vsub.f32 1.0, %v590
    %v592 = vmul.f32 %v589, %v591
    %v593 = vadd.f32 %v589, %v592
    %vm594 = vweird.f32 %v588
    %vm595 = vweird.f32 %v589
    %vm596 = vmor %vm594, %vm595
    %v597 = vsel %vm596, %v589, %v593
    %v598 = vand.u32 2147483647, %v588
    %vm599 = vcmp.eq.f32.partialorder %v598, 8.507059e+37
    %v600 = vand.u32 %v588, 2147483648
    %v601 = vor.u32 1.1754944e-38, %v600
    %v602 = vsel %vm599, %v601, %v597
    %v603 = vmul.f32 1.0, %v602
    %605 = vrot.lane.b32.xlu0 %v580, 64
    %v606 = vpop.permute.xlu0 %605
    %v608 = vmul.f32 %v603, %v606
    %610 = vrot.lane.b32.xlu0 %v608, 64
    %v611 = vpop.permute.xlu0 %610
    %v613 = vadd.f32 %v583, %v611
    %v614 = vtanh.pop %v613
    %v615 = vsub.f32 1.0, %v603
    %617 = vrot.lane.b32.xlu0 %v614, 96
    %v618 = vpop.permute.xlu0 %617
    %v620 = vmul.f32 %v615, %v618
    %622 = vrot.lane.b32.xlu0 %v482, 32
    %v623 = vpop.permute.xlu0 %622
    %v625 = vmul.f32 %v603, %v623
    %v626 = vadd.f32 %v620, %v625
    %v627 = vsel %vm565, 1, 0
    %628 = vset.pattern.permute.xlu0 0
    %629 = vperm.xlu0 %628, %v627
    %v630 = vpop.permute.xlu0 %629
    %vm631 = vcmp.eq.s32.totalorder %v630, 1
    %633 = vst [vmem:[#allocation1] ss:$4 sm:$0xff] %v626
    %v634 = vld.sshfl [vmem:[#allocation1] sm:$0xff pattern:$0x73625140]
    %635 = vrot.lane.b32.xlu0 %v634, 96
    %v636 = vpop.permute.xlu0 %635
    %v638 = vsel %vm631, %v636, %v482
    %s639 = sadd.s32 %s137, 3
    %s640 = sadd.s32 %s139, 4
    %s641 = scalar_lea.vmem %s1, 3
    %v642 = vld [vmem:[%s641] sm:$0x1]
    %v643 = vstv %s639
    %vm644 = vcmp.lt.s32.totalorder %v643, %v126
    %v645 = vpack.c.bf16 %v561, %v561
    %v647 = vsel %vm162, %v645, 0
    %649 = vmatpush.bf16.msra.mxu0 0
    %650 = vmatpush.bf16.msra.mxu0 0
    %651 = vmatpush.bf16.msra.mxu0 0
    %652 = vmatpush.bf16.msra.mxu0 0
    %653 = vmatpush.bf16.msra.mxu0 0
    %654 = vmatpush.bf16.msra.mxu0 0
    %655 = vmatpush.bf16.msra.mxu0 %v159
    %656 = vmatpush.bf16.msra.mxu0 %v158
    %657 = vmatmul.bf16.gmra.mxu0 %v647
    %v658 = vpop.f32.mrf.mxu0
    %v659 = vadd.f32 %v148, %v658
    %v660 = vpop.f32.mrf.mxu0
    %661 = vdwg.mxu0
    %v662 = vunpack.c.l.bf16 %v642
    %v663 = vadd.f32 %v662, %v659
    %v664 = vxor.u32 %v663, 2147483648
    %v665 = vmul.f32 %v664, 1.442695
    %v666 = vpow.pop %v665
    %v667 = vadd.f32 %v666, 1.0
    %v668 = vrcp.pop %v667
    %v669 = vmul.f32 %v667, %v668
    %v670 = vsub.f32 1.0, %v669
    %v671 = vmul.f32 %v668, %v670
    %v672 = vadd.f32 %v668, %v671
    %vm673 = vweird.f32 %v667
    %vm674 = vweird.f32 %v668
    %vm675 = vmor %vm673, %vm674
    %v676 = vsel %vm675, %v668, %v672
    %v677 = vand.u32 2147483647, %v667
    %vm678 = vcmp.eq.f32.partialorder %v677, 8.507059e+37
    %v679 = vand.u32 %v667, 2147483648
    %v680 = vor.u32 1.1754944e-38, %v679
    %v681 = vsel %vm678, %v680, %v676
    %v682 = vmul.f32 1.0, %v681
    %684 = vrot.lane.b32.xlu0 %v659, 64
    %v685 = vpop.permute.xlu0 %684
    %v687 = vmul.f32 %v682, %v685
    %689 = vrot.lane.b32.xlu0 %v687, 64
    %v690 = vpop.permute.xlu0 %689
    %v692 = vadd.f32 %v662, %v690
    %v693 = vtanh.pop %v692
    %v694 = vsub.f32 1.0, %v682
    %696 = vrot.lane.b32.xlu0 %v693, 96
    %v697 = vpop.permute.xlu0 %696
    %v699 = vmul.f32 %v694, %v697
    %701 = vrot.lane.b32.xlu0 %v561, 32
    %v702 = vpop.permute.xlu0 %701
    %v704 = vmul.f32 %v682, %v702
    %v705 = vadd.f32 %v699, %v704
    %v706 = vsel %vm644, 1, 0
    %707 = vset.pattern.permute.xlu0 0
    %708 = vperm.xlu0 %707, %v706
    %v709 = vpop.permute.xlu0 %708
    %vm710 = vcmp.eq.s32.totalorder %v709, 1
    %712 = vst [vmem:[#allocation1] ss:$4 sm:$0xff] %v705
    %v713 = vld.sshfl [vmem:[#allocation1] sm:$0xff pattern:$0x73625140]
    %714 = vrot.lane.b32.xlu0 %v713, 96
    %v715 = vpop.permute.xlu0 %714
    %v717 = vsel %vm710, %v715, %v561
    %s718 = scalar_lea.vmem %s106, 4
    %v719 = vld [vmem:[%s718] sm:$0x1]
    %v720 = vstv %s640
    %vm721 = vcmp.lt.s32.totalorder %v720, %v126
    %v722 = vpack.c.bf16 %v638, %v638
    %v724 = vsel %vm162, %v722, 0
    %726 = vmatpush.bf16.msra.mxu0 0
    %727 = vmatpush.bf16.msra.mxu0 0
    %728 = vmatpush.bf16.msra.mxu0 0
    %729 = vmatpush.bf16.msra.mxu0 0
    %730 = vmatpush.bf16.msra.mxu0 0
    %731 = vmatpush.bf16.msra.mxu0 0
    %732 = vmatpush.bf16.msra.mxu0 %v252
    %733 = vmatpush.bf16.msra.mxu0 %v251
    %734 = vmatmul.bf16.gmra.mxu0 %v724
    %v735 = vpop.f32.mrf.mxu0
    %v736 = vadd.f32 %v241, %v735
    %v737 = vpop.f32.mrf.mxu0
    %738 = vdwg.mxu0
    %v739 = vunpack.c.l.bf16 %v719
    %v740 = vadd.f32 %v739, %v736
    %v741 = vxor.u32 %v740, 2147483648
    %v742 = vmul.f32 %v741, 1.442695
    %v743 = vpow.pop %v742
    %v744 = vadd.f32 %v743, 1.0
    %v745 = vrcp.pop %v744
    %v746 = vmul.f32 %v744, %v745
    %v747 = vsub.f32 1.0, %v746
    %v748 = vmul.f32 %v745, %v747
    %v749 = vadd.f32 %v745, %v748
    %vm750 = vweird.f32 %v744
    %vm751 = vweird.f32 %v745
    %vm752 = vmor %vm750, %vm751
    %v753 = vsel %vm752, %v745, %v749
    %v754 = vand.u32 2147483647, %v744
    %vm755 = vcmp.eq.f32.partialorder %v754, 8.507059e+37
    %v756 = vand.u32 %v744, 2147483648
    %v757 = vor.u32 1.1754944e-38, %v756
    %v758 = vsel %vm755, %v757, %v753
    %v759 = vmul.f32 1.0, %v758
    %761 = vrot.lane.b32.xlu0 %v736, 64
    %v762 = vpop.permute.xlu0 %761
    %v764 = vmul.f32 %v759, %v762
    %766 = vrot.lane.b32.xlu0 %v764, 64
    %v767 = vpop.permute.xlu0 %766
    %v769 = vadd.f32 %v739, %v767
    %v770 = vtanh.pop %v769
    %v771 = vsub.f32 1.0, %v759
    %773 = vrot.lane.b32.xlu0 %v770, 96
    %v774 = vpop.permute.xlu0 %773
    %v776 = vmul.f32 %v771, %v774
    %778 = vrot.lane.b32.xlu0 %v638, 32
    %v779 = vpop.permute.xlu0 %778
    %v781 = vmul.f32 %v759, %v779
    %v782 = vadd.f32 %v776, %v781
    %v783 = vsel %vm721, 1, 0
    %784 = vset.pattern.permute.xlu0 0
    %785 = vperm.xlu0 %784, %v783
    %v786 = vpop.permute.xlu0 %785
    %vm787 = vcmp.eq.s32.totalorder %v786, 1
    %789 = vst [vmem:[#allocation1] ss:$4 sm:$0xff] %v782
    %v790 = vld.sshfl [vmem:[#allocation1] sm:$0xff pattern:$0x73625140]
    %791 = vrot.lane.b32.xlu0 %v790, 96
    %v792 = vpop.permute.xlu0 %791
    %v794 = vsel %vm787, %v792, %v638
    %s795 = sadd.s32 %s137, 4
    %s796 = sadd.s32 %s139, 3
    %s797 = scalar_lea.vmem %s1, 4
    %v798 = vld [vmem:[%s797] sm:$0x1]
    %v799 = vstv %s795
    %vm800 = vcmp.lt.s32.totalorder %v799, %v126
    %v801 = vpack.c.bf16 %v717, %v717
    %v803 = vsel %vm162, %v801, 0
    %805 = vmatpush.bf16.msra.mxu0 0
    %806 = vmatpush.bf16.msra.mxu0 0
    %807 = vmatpush.bf16.msra.mxu0 0
    %808 = vmatpush.bf16.msra.mxu0 0
    %809 = vmatpush.bf16.msra.mxu0 0
    %810 = vmatpush.bf16.msra.mxu0 0
    %811 = vmatpush.bf16.msra.mxu0 %v159
    %812 = vmatpush.bf16.msra.mxu0 %v158
    %813 = vmatmul.bf16.gmra.mxu0 %v803
    %v814 = vpop.f32.mrf.mxu0
    %v815 = vadd.f32 %v148, %v814
    %v816 = vpop.f32.mrf.mxu0
    %817 = vdwg.mxu0
    %v818 = vunpack.c.l.bf16 %v798
    %v819 = vadd.f32 %v818, %v815
    %v820 = vxor.u32 %v819, 2147483648
    %v821 = vmul.f32 %v820, 1.442695
    %v822 = vpow.pop %v821
    %v823 = vadd.f32 %v822, 1.0
    %v824 = vrcp.pop %v823
    %v825 = vmul.f32 %v823, %v824
    %v826 = vsub.f32 1.0, %v825
    %v827 = vmul.f32 %v824, %v826
    %v828 = vadd.f32 %v824, %v827
    %vm829 = vweird.f32 %v823
    %vm830 = vweird.f32 %v824
    %vm831 = vmor %vm829, %vm830
    %v832 = vsel %vm831, %v824, %v828
    %v833 = vand.u32 2147483647, %v823
    %vm834 = vcmp.eq.f32.partialorder %v833, 8.507059e+37
    %v835 = vand.u32 %v823, 2147483648
    %v836 = vor.u32 1.1754944e-38, %v835
    %v837 = vsel %vm834, %v836, %v832
    %v838 = vmul.f32 1.0, %v837
    %840 = vrot.lane.b32.xlu0 %v815, 64
    %v841 = vpop.permute.xlu0 %840
    %v843 = vmul.f32 %v838, %v841
    %845 = vrot.lane.b32.xlu0 %v843, 64
    %v846 = vpop.permute.xlu0 %845
    %v848 = vadd.f32 %v818, %v846
    %v849 = vtanh.pop %v848
    %v850 = vsub.f32 1.0, %v838
    %852 = vrot.lane.b32.xlu0 %v849, 96
    %v853 = vpop.permute.xlu0 %852
    %v855 = vmul.f32 %v850, %v853
    %857 = vrot.lane.b32.xlu0 %v717, 32
    %v858 = vpop.permute.xlu0 %857
    %v860 = vmul.f32 %v838, %v858
    %v861 = vadd.f32 %v855, %v860
    %v862 = vsel %vm800, 1, 0
    %863 = vset.pattern.permute.xlu0 0
    %864 = vperm.xlu0 %863, %v862
    %v865 = vpop.permute.xlu0 %864
    %vm866 = vcmp.eq.s32.totalorder %v865, 1
    %868 = vst [vmem:[#allocation1] ss:$4 sm:$0xff] %v861
    %v869 = vld.sshfl [vmem:[#allocation1] sm:$0xff pattern:$0x73625140]
    %870 = vrot.lane.b32.xlu0 %v869, 96
    %v871 = vpop.permute.xlu0 %870
    %v873 = vsel %vm866, %v871, %v717
    %s874 = scalar_lea.vmem %s106, 3
    %v875 = vld [vmem:[%s874] sm:$0x1]
    %v876 = vstv %s796
    %vm877 = vcmp.lt.s32.totalorder %v876, %v126
    %v878 = vpack.c.bf16 %v794, %v794
    %v880 = vsel %vm162, %v878, 0
    %882 = vmatpush.bf16.msra.mxu0 0
    %883 = vmatpush.bf16.msra.mxu0 0
    %884 = vmatpush.bf16.msra.mxu0 0
    %885 = vmatpush.bf16.msra.mxu0 0
    %886 = vmatpush.bf16.msra.mxu0 0
    %887 = vmatpush.bf16.msra.mxu0 0
    %888 = vmatpush.bf16.msra.mxu0 %v252
    %889 = vmatpush.bf16.msra.mxu0 %v251
    %890 = vmatmul.bf16.gmra.mxu0 %v880
    %v891 = vpop.f32.mrf.mxu0
    %v892 = vadd.f32 %v241, %v891
    %v893 = vpop.f32.mrf.mxu0
    %894 = vdwg.mxu0
    %v895 = vunpack.c.l.bf16 %v875
    %v896 = vadd.f32 %v895, %v892
    %v897 = vxor.u32 %v896, 2147483648
    %v898 = vmul.f32 %v897, 1.442695
    %v899 = vpow.pop %v898
    %v900 = vadd.f32 %v899, 1.0
    %v901 = vrcp.pop %v900
    %v902 = vmul.f32 %v900, %v901
    %v903 = vsub.f32 1.0, %v902
    %v904 = vmul.f32 %v901, %v903
    %v905 = vadd.f32 %v901, %v904
    %vm906 = vweird.f32 %v900
    %vm907 = vweird.f32 %v901
    %vm908 = vmor %vm906, %vm907
    %v909 = vsel %vm908, %v901, %v905
    %v910 = vand.u32 2147483647, %v900
    %vm911 = vcmp.eq.f32.partialorder %v910, 8.507059e+37
    %v912 = vand.u32 %v900, 2147483648
    %v913 = vor.u32 1.1754944e-38, %v912
    %v914 = vsel %vm911, %v913, %v909
    %v915 = vmul.f32 1.0, %v914
    %917 = vrot.lane.b32.xlu0 %v892, 64
    %v918 = vpop.permute.xlu0 %917
    %v920 = vmul.f32 %v915, %v918
    %922 = vrot.lane.b32.xlu0 %v920, 64
    %v923 = vpop.permute.xlu0 %922
    %v925 = vadd.f32 %v895, %v923
    %v926 = vtanh.pop %v925
    %v927 = vsub.f32 1.0, %v915
    %929 = vrot.lane.b32.xlu0 %v926, 96
    %v930 = vpop.permute.xlu0 %929
    %v932 = vmul.f32 %v927, %v930
    %934 = vrot.lane.b32.xlu0 %v794, 32
    %v935 = vpop.permute.xlu0 %934
    %v937 = vmul.f32 %v915, %v935
    %v938 = vadd.f32 %v932, %v937
    %v939 = vsel %vm877, 1, 0
    %940 = vset.pattern.permute.xlu0 0
    %941 = vperm.xlu0 %940, %v939
    %v942 = vpop.permute.xlu0 %941
    %vm943 = vcmp.eq.s32.totalorder %v942, 1
    %945 = vst [vmem:[#allocation1] ss:$4 sm:$0xff] %v938
    %v946 = vld.sshfl [vmem:[#allocation1] sm:$0xff pattern:$0x73625140]
    %947 = vrot.lane.b32.xlu0 %v946, 96
    %v948 = vpop.permute.xlu0 %947
    %v950 = vsel %vm943, %v948, %v794
    %s951 = sadd.s32 %s137, 5
    %s952 = sadd.s32 %s139, 2
    %s953 = scalar_lea.vmem %s1, 5
    %v954 = vld [vmem:[%s953] sm:$0x1]
    %v955 = vstv %s951
    %vm956 = vcmp.lt.s32.totalorder %v955, %v126
    %v957 = vpack.c.bf16 %v873, %v873
    %v959 = vsel %vm162, %v957, 0
    %961 = vmatpush.bf16.msra.mxu0 0
    %962 = vmatpush.bf16.msra.mxu0 0
    %963 = vmatpush.bf16.msra.mxu0 0
    %964 = vmatpush.bf16.msra.mxu0 0
    %965 = vmatpush.bf16.msra.mxu0 0
    %966 = vmatpush.bf16.msra.mxu0 0
    %967 = vmatpush.bf16.msra.mxu0 %v159
    %968 = vmatpush.bf16.msra.mxu0 %v158
    %969 = vmatmul.bf16.gmra.mxu0 %v959
    %v970 = vpop.f32.mrf.mxu0
    %v971 = vadd.f32 %v148, %v970
    %v972 = vpop.f32.mrf.mxu0
    %973 = vdwg.mxu0
    %v974 = vunpack.c.l.bf16 %v954
    %v975 = vadd.f32 %v974, %v971
    %v976 = vxor.u32 %v975, 2147483648
    %v977 = vmul.f32 %v976, 1.442695
    %v978 = vpow.pop %v977
    %v979 = vadd.f32 %v978, 1.0
    %v980 = vrcp.pop %v979
    %v981 = vmul.f32 %v979, %v980
    %v982 = vsub.f32 1.0, %v981
    %v983 = vmul.f32 %v980, %v982
    %v984 = vadd.f32 %v980, %v983
    %vm985 = vweird.f32 %v979
    %vm986 = vweird.f32 %v980
    %vm987 = vmor %vm985, %vm986
    %v988 = vsel %vm987, %v980, %v984
    %v989 = vand.u32 2147483647, %v979
    %vm990 = vcmp.eq.f32.partialorder %v989, 8.507059e+37
    %v991 = vand.u32 %v979, 2147483648
    %v992 = vor.u32 1.1754944e-38, %v991
    %v993 = vsel %vm990, %v992, %v988
    %v994 = vmul.f32 1.0, %v993
    %996 = vrot.lane.b32.xlu0 %v971, 64
    %v997 = vpop.permute.xlu0 %996
    %v999 = vmul.f32 %v994, %v997
    %1001 = vrot.lane.b32.xlu0 %v999, 64
    %v1002 = vpop.permute.xlu0 %1001
    %v1004 = vadd.f32 %v974, %v1002
    %v1005 = vtanh.pop %v1004
    %v1006 = vsub.f32 1.0, %v994
    %1008 = vrot.lane.b32.xlu0 %v1005, 96
    %v1009 = vpop.permute.xlu0 %1008
    %v1011 = vmul.f32 %v1006, %v1009
    %1013 = vrot.lane.b32.xlu0 %v873, 32
    %v1014 = vpop.permute.xlu0 %1013
    %v1016 = vmul.f32 %v994, %v1014
    %v1017 = vadd.f32 %v1011, %v1016
    %v1018 = vsel %vm956, 1, 0
    %1019 = vset.pattern.permute.xlu0 0
    %1020 = vperm.xlu0 %1019, %v1018
    %v1021 = vpop.permute.xlu0 %1020
    %vm1022 = vcmp.eq.s32.totalorder %v1021, 1
    %1024 = vst [vmem:[#allocation1] ss:$4 sm:$0xff] %v1017
    %v1025 = vld.sshfl [vmem:[#allocation1] sm:$0xff pattern:$0x73625140]
    %1026 = vrot.lane.b32.xlu0 %v1025, 96
    %v1027 = vpop.permute.xlu0 %1026
    %v1029 = vsel %vm1022, %v1027, %v873
    %s1030 = scalar_lea.vmem %s106, 2
    %v1031 = vld [vmem:[%s1030] sm:$0x1]
    %v1032 = vstv %s952
    %vm1033 = vcmp.lt.s32.totalorder %v1032, %v126
    %v1034 = vpack.c.bf16 %v950, %v950
    %v1036 = vsel %vm162, %v1034, 0
    %1038 = vmatpush.bf16.msra.mxu0 0
    %1039 = vmatpush.bf16.msra.mxu0 0
    %1040 = vmatpush.bf16.msra.mxu0 0
    %1041 = vmatpush.bf16.msra.mxu0 0
    %1042 = vmatpush.bf16.msra.mxu0 0
    %1043 = vmatpush.bf16.msra.mxu0 0
    %1044 = vmatpush.bf16.msra.mxu0 %v252
    %1045 = vmatpush.bf16.msra.mxu0 %v251
    %1046 = vmatmul.bf16.gmra.mxu0 %v1036
    %v1047 = vpop.f32.mrf.mxu0
    %v1048 = vadd.f32 %v241, %v1047
    %v1049 = vpop.f32.mrf.mxu0
    %1050 = vdwg.mxu0
    %v1051 = vunpack.c.l.bf16 %v1031
    %v1052 = vadd.f32 %v1051, %v1048
    %v1053 = vxor.u32 %v1052, 2147483648
    %v1054 = vmul.f32 %v1053, 1.442695
    %v1055 = vpow.pop %v1054
    %v1056 = vadd.f32 %v1055, 1.0
    %v1057 = vrcp.pop %v1056
    %v1058 = vmul.f32 %v1056, %v1057
    %v1059 = vsub.f32 1.0, %v1058
    %v1060 = vmul.f32 %v1057, %v1059
    %v1061 = vadd.f32 %v1057, %v1060
    %vm1062 = vweird.f32 %v1056
    %vm1063 = vweird.f32 %v1057
    %vm1064 = vmor %vm1062, %vm1063
    %v1065 = vsel %vm1064, %v1057, %v1061
    %v1066 = vand.u32 2147483647, %v1056
    %vm1067 = vcmp.eq.f32.partialorder %v1066, 8.507059e+37
    %v1068 = vand.u32 %v1056, 2147483648
    %v1069 = vor.u32 1.1754944e-38, %v1068
    %v1070 = vsel %vm1067, %v1069, %v1065
    %v1071 = vmul.f32 1.0, %v1070
    %1073 = vrot.lane.b32.xlu0 %v1048, 64
    %v1074 = vpop.permute.xlu0 %1073
    %v1076 = vmul.f32 %v1071, %v1074
    %1078 = vrot.lane.b32.xlu0 %v1076, 64
    %v1079 = vpop.permute.xlu0 %1078
    %v1081 = vadd.f32 %v1051, %v1079
    %v1082 = vtanh.pop %v1081
    %v1083 = vsub.f32 1.0, %v1071
    %1085 = vrot.lane.b32.xlu0 %v1082, 96
    %v1086 = vpop.permute.xlu0 %1085
    %v1088 = vmul.f32 %v1083, %v1086
    %1090 = vrot.lane.b32.xlu0 %v950, 32
    %v1091 = vpop.permute.xlu0 %1090
    %v1093 = vmul.f32 %v1071, %v1091
    %v1094 = vadd.f32 %v1088, %v1093
    %v1095 = vsel %vm1033, 1, 0
    %1096 = vset.pattern.permute.xlu0 0
    %1097 = vperm.xlu0 %1096, %v1095
    %v1098 = vpop.permute.xlu0 %1097
    %vm1099 = vcmp.eq.s32.totalorder %v1098, 1
    %1101 = vst [vmem:[#allocation1] ss:$4 sm:$0xff] %v1094
    %v1102 = vld.sshfl [vmem:[#allocation1] sm:$0xff pattern:$0x73625140]
    %1103 = vrot.lane.b32.xlu0 %v1102, 96
    %v1104 = vpop.permute.xlu0 %1103
    %v1106 = vsel %vm1099, %v1104, %v950
    %s1107 = sadd.s32 %s137, 6
    %s1108 = sadd.s32 %s139, 1
    %s1109 = scalar_lea.vmem %s1, 6
    %v1110 = vld [vmem:[%s1109] sm:$0x1]
    %v1111 = vstv %s1107
    %vm1112 = vcmp.lt.s32.totalorder %v1111, %v126
    %v1113 = vpack.c.bf16 %v1029, %v1029
    %v1115 = vsel %vm162, %v1113, 0
    %1117 = vmatpush.bf16.msra.mxu0 0
    %1118 = vmatpush.bf16.msra.mxu0 0
    %1119 = vmatpush.bf16.msra.mxu0 0
    %1120 = vmatpush.bf16.msra.mxu0 0
    %1121 = vmatpush.bf16.msra.mxu0 0
    %1122 = vmatpush.bf16.msra.mxu0 0
    %1123 = vmatpush.bf16.msra.mxu0 %v159
    %1124 = vmatpush.bf16.msra.mxu0 %v158
    %1125 = vmatmul.bf16.gmra.mxu0 %v1115
    %v1126 = vpop.f32.mrf.mxu0
    %v1127 = vadd.f32 %v148, %v1126
    %v1128 = vpop.f32.mrf.mxu0
    %1129 = vdwg.mxu0
    %v1130 = vunpack.c.l.bf16 %v1110
    %v1131 = vadd.f32 %v1130, %v1127
    %v1132 = vxor.u32 %v1131, 2147483648
    %v1133 = vmul.f32 %v1132, 1.442695
    %v1134 = vpow.pop %v1133
    %v1135 = vadd.f32 %v1134, 1.0
    %v1136 = vrcp.pop %v1135
    %v1137 = vmul.f32 %v1135, %v1136
    %v1138 = vsub.f32 1.0, %v1137
    %v1139 = vmul.f32 %v1136, %v1138
    %v1140 = vadd.f32 %v1136, %v1139
    %vm1141 = vweird.f32 %v1135
    %vm1142 = vweird.f32 %v1136
    %vm1143 = vmor %vm1141, %vm1142
    %v1144 = vsel %vm1143, %v1136, %v1140
    %v1145 = vand.u32 2147483647, %v1135
    %vm1146 = vcmp.eq.f32.partialorder %v1145, 8.507059e+37
    %v1147 = vand.u32 %v1135, 2147483648
    %v1148 = vor.u32 1.1754944e-38, %v1147
    %v1149 = vsel %vm1146, %v1148, %v1144
    %v1150 = vmul.f32 1.0, %v1149
    %1152 = vrot.lane.b32.xlu0 %v1127, 64
    %v1153 = vpop.permute.xlu0 %1152
    %v1155 = vmul.f32 %v1150, %v1153
    %1157 = vrot.lane.b32.xlu0 %v1155, 64
    %v1158 = vpop.permute.xlu0 %1157
    %v1160 = vadd.f32 %v1130, %v1158
    %v1161 = vtanh.pop %v1160
    %v1162 = vsub.f32 1.0, %v1150
    %1164 = vrot.lane.b32.xlu0 %v1161, 96
    %v1165 = vpop.permute.xlu0 %1164
    %v1167 = vmul.f32 %v1162, %v1165
    %1169 = vrot.lane.b32.xlu0 %v1029, 32
    %v1170 = vpop.permute.xlu0 %1169
    %v1172 = vmul.f32 %v1150, %v1170
    %v1173 = vadd.f32 %v1167, %v1172
    %v1174 = vsel %vm1112, 1, 0
    %1175 = vset.pattern.permute.xlu0 0
    %1176 = vperm.xlu0 %1175, %v1174
    %v1177 = vpop.permute.xlu0 %1176
    %vm1178 = vcmp.eq.s32.totalorder %v1177, 1
    %1180 = vst [vmem:[#allocation1] ss:$4 sm:$0xff] %v1173
    %v1181 = vld.sshfl [vmem:[#allocation1] sm:$0xff pattern:$0x73625140]
    %1182 = vrot.lane.b32.xlu0 %v1181, 96
    %v1183 = vpop.permute.xlu0 %1182
    %v1185 = vsel %vm1178, %v1183, %v1029
    %s1186 = scalar_lea.vmem %s106, 1
    %v1187 = vld [vmem:[%s1186] sm:$0x1]
    %v1188 = vstv %s1108
    %vm1189 = vcmp.lt.s32.totalorder %v1188, %v126
    %v1190 = vpack.c.bf16 %v1106, %v1106
    %v1192 = vsel %vm162, %v1190, 0
    %1194 = vmatpush.bf16.msra.mxu0 0
    %1195 = vmatpush.bf16.msra.mxu0 0
    %1196 = vmatpush.bf16.msra.mxu0 0
    %1197 = vmatpush.bf16.msra.mxu0 0
    %1198 = vmatpush.bf16.msra.mxu0 0
    %1199 = vmatpush.bf16.msra.mxu0 0
    %1200 = vmatpush.bf16.msra.mxu0 %v252
    %1201 = vmatpush.bf16.msra.mxu0 %v251
    %1202 = vmatmul.bf16.gmra.mxu0 %v1192
    %v1203 = vpop.f32.mrf.mxu0
    %v1204 = vadd.f32 %v241, %v1203
    %v1205 = vpop.f32.mrf.mxu0
    %1206 = vdwg.mxu0
    %v1207 = vunpack.c.l.bf16 %v1187
    %v1208 = vadd.f32 %v1207, %v1204
    %v1209 = vxor.u32 %v1208, 2147483648
    %v1210 = vmul.f32 %v1209, 1.442695
    %v1211 = vpow.pop %v1210
    %v1212 = vadd.f32 %v1211, 1.0
    %v1213 = vrcp.pop %v1212
    %v1214 = vmul.f32 %v1212, %v1213
    %v1215 = vsub.f32 1.0, %v1214
    %v1216 = vmul.f32 %v1213, %v1215
    %v1217 = vadd.f32 %v1213, %v1216
    %vm1218 = vweird.f32 %v1212
    %vm1219 = vweird.f32 %v1213
    %vm1220 = vmor %vm1218, %vm1219
    %v1221 = vsel %vm1220, %v1213, %v1217
    %v1222 = vand.u32 2147483647, %v1212
    %vm1223 = vcmp.eq.f32.partialorder %v1222, 8.507059e+37
    %v1224 = vand.u32 %v1212, 2147483648
    %v1225 = vor.u32 1.1754944e-38, %v1224
    %v1226 = vsel %vm1223, %v1225, %v1221
    %v1227 = vmul.f32 1.0, %v1226
    %1229 = vrot.lane.b32.xlu0 %v1204, 64
    %v1230 = vpop.permute.xlu0 %1229
    %v1232 = vmul.f32 %v1227, %v1230
    %1234 = vrot.lane.b32.xlu0 %v1232, 64
    %v1235 = vpop.permute.xlu0 %1234
    %v1237 = vadd.f32 %v1207, %v1235
    %v1238 = vtanh.pop %v1237
    %v1239 = vsub.f32 1.0, %v1227
    %1241 = vrot.lane.b32.xlu0 %v1238, 96
    %v1242 = vpop.permute.xlu0 %1241
    %v1244 = vmul.f32 %v1239, %v1242
    %1246 = vrot.lane.b32.xlu0 %v1106, 32
    %v1247 = vpop.permute.xlu0 %1246
    %v1249 = vmul.f32 %v1227, %v1247
    %v1250 = vadd.f32 %v1244, %v1249
    %v1251 = vsel %vm1189, 1, 0
    %1252 = vset.pattern.permute.xlu0 0
    %1253 = vperm.xlu0 %1252, %v1251
    %v1254 = vpop.permute.xlu0 %1253
    %vm1255 = vcmp.eq.s32.totalorder %v1254, 1
    %1257 = vst [vmem:[#allocation1] ss:$4 sm:$0xff] %v1250
    %v1258 = vld.sshfl [vmem:[#allocation1] sm:$0xff pattern:$0x73625140]
    %1259 = vrot.lane.b32.xlu0 %v1258, 96
    %v1260 = vpop.permute.xlu0 %1259
    %v1262 = vsel %vm1255, %v1260, %v1106
    %s1263 = sadd.s32 %s137, 7
    %s1264 = scalar_lea.vmem %s1, 7
    %v1265 = vld [vmem:[%s1264] sm:$0x1]
    %v1266 = vstv %s1263
    %vm1267 = vcmp.lt.s32.totalorder %v1266, %v126
    %v1268 = vpack.c.bf16 %v1185, %v1185
    %v1270 = vsel %vm162, %v1268, 0
    %1272 = vmatpush.bf16.msra.mxu0 0
    %1273 = vmatpush.bf16.msra.mxu0 0
    %1274 = vmatpush.bf16.msra.mxu0 0
    %1275 = vmatpush.bf16.msra.mxu0 0
    %1276 = vmatpush.bf16.msra.mxu0 0
    %1277 = vmatpush.bf16.msra.mxu0 0
    %1278 = vmatpush.bf16.msra.mxu0 %v159
    %1279 = vmatpush.bf16.msra.mxu0 %v158
    %1280 = vmatmul.bf16.gmra.mxu0 %v1270
    %v1281 = vpop.f32.mrf.mxu0
    %v1282 = vadd.f32 %v148, %v1281
    %v1283 = vpop.f32.mrf.mxu0
    %1284 = vdwg.mxu0
    %v1285 = vunpack.c.l.bf16 %v1265
    %v1286 = vadd.f32 %v1285, %v1282
    %v1287 = vxor.u32 %v1286, 2147483648
    %v1288 = vmul.f32 %v1287, 1.442695
    %v1289 = vpow.pop %v1288
    %v1290 = vadd.f32 %v1289, 1.0
    %v1291 = vrcp.pop %v1290
    %v1292 = vmul.f32 %v1290, %v1291
    %v1293 = vsub.f32 1.0, %v1292
    %v1294 = vmul.f32 %v1291, %v1293
    %v1295 = vadd.f32 %v1291, %v1294
    %vm1296 = vweird.f32 %v1290
    %vm1297 = vweird.f32 %v1291
    %vm1298 = vmor %vm1296, %vm1297
    %v1299 = vsel %vm1298, %v1291, %v1295
    %v1300 = vand.u32 2147483647, %v1290
    %vm1301 = vcmp.eq.f32.partialorder %v1300, 8.507059e+37
    %v1302 = vand.u32 %v1290, 2147483648
    %v1303 = vor.u32 1.1754944e-38, %v1302
    %v1304 = vsel %vm1301, %v1303, %v1299
    %v1305 = vmul.f32 1.0, %v1304
    %1307 = vrot.lane.b32.xlu0 %v1282, 64
    %v1308 = vpop.permute.xlu0 %1307
    %v1310 = vmul.f32 %v1305, %v1308
    %1312 = vrot.lane.b32.xlu0 %v1310, 64
    %v1313 = vpop.permute.xlu0 %1312
    %v1315 = vadd.f32 %v1285, %v1313
    %v1316 = vtanh.pop %v1315
    %v1317 = vsub.f32 1.0, %v1305
    %1319 = vrot.lane.b32.xlu0 %v1316, 96
    %v1320 = vpop.permute.xlu0 %1319
    %v1322 = vmul.f32 %v1317, %v1320
    %1324 = vrot.lane.b32.xlu0 %v1185, 32
    %v1325 = vpop.permute.xlu0 %1324
    %v1327 = vmul.f32 %v1305, %v1325
    %v1328 = vadd.f32 %v1322, %v1327
    %v1329 = vsel %vm1267, 1, 0
    %1330 = vset.pattern.permute.xlu0 0
    %1331 = vperm.xlu0 %1330, %v1329
    %v1332 = vpop.permute.xlu0 %1331
    %vm1333 = vcmp.eq.s32.totalorder %v1332, 1
    %1335 = vst [vmem:[#allocation1] ss:$4 sm:$0xff] %v1328
    %v1336 = vld.sshfl [vmem:[#allocation1] sm:$0xff pattern:$0x73625140]
    %1337 = vrot.lane.b32.xlu0 %v1336, 96
    %v1338 = vpop.permute.xlu0 %1337
    %v1340 = vsel %vm1333, %v1338, %v1185
    %v1341 = vld [vmem:[%s106] sm:$0x1]
    %v1342 = vstv %s139
    %vm1343 = vcmp.lt.s32.totalorder %v1342, %v126
    %v1344 = vpack.c.bf16 %v1262, %v1262
    %v1346 = vsel %vm162, %v1344, 0
    %1348 = vmatpush.bf16.msra.mxu0 0
    %1349 = vmatpush.bf16.msra.mxu0 0
    %1350 = vmatpush.bf16.msra.mxu0 0
    %1351 = vmatpush.bf16.msra.mxu0 0
    %1352 = vmatpush.bf16.msra.mxu0 0
    %1353 = vmatpush.bf16.msra.mxu0 0
    %1354 = vmatpush.bf16.msra.mxu0 %v252
    %1355 = vmatpush.bf16.msra.mxu0 %v251
    %1356 = vmatmul.bf16.gmra.mxu0 %v1346
    %v1357 = vpop.f32.mrf.mxu0
    %v1358 = vadd.f32 %v241, %v1357
    %v1359 = vpop.f32.mrf.mxu0
    %1360 = vdwg.mxu0
    %v1361 = vunpack.c.l.bf16 %v1341
    %v1362 = vadd.f32 %v1361, %v1358
    %v1363 = vxor.u32 %v1362, 2147483648
    %v1364 = vmul.f32 %v1363, 1.442695
    %v1365 = vpow.pop %v1364
    %v1366 = vadd.f32 %v1365, 1.0
    %v1367 = vrcp.pop %v1366
    %v1368 = vmul.f32 %v1366, %v1367
    %v1369 = vsub.f32 1.0, %v1368
    %v1370 = vmul.f32 %v1367, %v1369
    %v1371 = vadd.f32 %v1367, %v1370
    %vm1372 = vweird.f32 %v1366
    %vm1373 = vweird.f32 %v1367
    %vm1374 = vmor %vm1372, %vm1373
    %v1375 = vsel %vm1374, %v1367, %v1371
    %v1376 = vand.u32 2147483647, %v1366
    %vm1377 = vcmp.eq.f32.partialorder %v1376, 8.507059e+37
    %v1378 = vand.u32 %v1366, 2147483648
    %v1379 = vor.u32 1.1754944e-38, %v1378
    %v1380 = vsel %vm1377, %v1379, %v1375
    %v1381 = vmul.f32 1.0, %v1380
    %1383 = vrot.lane.b32.xlu0 %v1358, 64
    %v1384 = vpop.permute.xlu0 %1383
    %v1386 = vmul.f32 %v1381, %v1384
    %1388 = vrot.lane.b32.xlu0 %v1386, 64
    %v1389 = vpop.permute.xlu0 %1388
    %v1391 = vadd.f32 %v1361, %v1389
    %v1392 = vtanh.pop %v1391
    %v1393 = vsub.f32 1.0, %v1381
    %1395 = vrot.lane.b32.xlu0 %v1392, 96
    %v1396 = vpop.permute.xlu0 %1395
    %v1398 = vmul.f32 %v1393, %v1396
    %1400 = vrot.lane.b32.xlu0 %v1262, 32
    %v1401 = vpop.permute.xlu0 %1400
    %v1403 = vmul.f32 %v1381, %v1401
    %v1404 = vadd.f32 %v1398, %v1403
    %v1405 = vsel %vm1343, 1, 0
    %1406 = vset.pattern.permute.xlu0 0
    %1407 = vperm.xlu0 %1406, %v1405
    %v1408 = vpop.permute.xlu0 %1407
    %vm1409 = vcmp.eq.s32.totalorder %v1408, 1
    %1411 = vst [vmem:[#allocation1] ss:$4 sm:$0xff] %v1404
    %v1412 = vld.sshfl [vmem:[#allocation1] sm:$0xff pattern:$0x73625140]
    %1413 = vrot.lane.b32.xlu0 %v1412, 96
    %v1414 = vpop.permute.xlu0 %1413
    %v1416 = vsel %vm1409, %v1414, %v1262
    %vm1417 = vcmask 254976
    %1418 = vst.msk [vmem:[%s8] sm:$0x3] %vm1417, %v1340
    %1419 = vst.msk [vmem:[%s9] sm:$0x3] %vm1417, %v1416
    // Predicated region
    $region54: #{motion_encoder_bigru_co.4} parent=1 // pred_check
      _
    $region55: #{motion_encoder_bigru_co.4} parent=1 // pred_check_branch
      %1421 = sbr.rel (0) target = $region57
    $region56: #{motion_encoder_bigru_co.4} parent=1 // pred_region
      _
    $region57: #{motion_encoder_bigru_co.4} parent=1 // pred_fallthru
      _
    // Predicated region
    $region58: #{motion_encoder_bigru_co.4} parent=1 // pred_check
      _
    $region59: #{motion_encoder_bigru_co.4} parent=1 // pred_check_branch
      %1423 = sbr.rel (0) target = $region61
    $region60: #{motion_encoder_bigru_co.4} parent=1 // pred_region
      _
    $region61: #{motion_encoder_bigru_co.4} parent=1 // pred_fallthru
      _
    // Predicated region
    $region62: #{motion_encoder_bigru_co.4} parent=1 // pred_check
      _
    $region63: #{motion_encoder_bigru_co.4} parent=1 // pred_check_branch
      %1425 = sbr.rel (0) target = $region65
    $region64: #{motion_encoder_bigru_co.4} parent=1 // pred_region
      _
    $region65: #{motion_encoder_bigru_co.4} parent=1 // pred_fallthru
      _
    // Predicated region
    $region66: #{motion_encoder_bigru_co.4} parent=1 // pred_check
      _
    $region67: #{motion_encoder_bigru_co.4} parent=1 // pred_check_branch
      %1427 = sbr.rel (0) target = $region69
    $region68: #{motion_encoder_bigru_co.4} parent=1 // pred_region
      _
    $region69: #{motion_encoder_bigru_co.4} parent=1 // pred_fallthru
      _
    %1428 = vsyncpa [#allocation3], 1
    %1429 = vsyncpa [#allocation5], 1
    %1430 = vsyncpa [#allocation8], 1

</llo_original>
